<compile_context>
chip_gen: v6e
topology: v6e:2x2x1
jax: 0.10.0
libtpu: 0.0.40
codegen_flags: <defaults>
</compile_context>

<pallas_src>
import functools

import jax
import jax.numpy as jnp
from jax.experimental import pallas as pl
from jax.experimental.pallas import tpu as pltpu

EMB_DIM = 128
HIDDEN = 128
NUM_LAYERS = 8      # number of graph-conv layers in the gconvs loop
K = 32              # SortPooling k
VOCAB = 150
VOCAB_PAD = 256     # lane-dense padded vocab for the one-hot MXU lookup
HEAD_CHUNKS = 4     # conv3 reduction (K*HIDDEN = 4096) streamed in 4 chunks


# ----------------------------- in-kernel helpers -----------------------------


def _gat_attention(z, adj, neg_bias, al, ar, b):
    """GAT edge-softmax + aggregation + bias + fused ReLU.

    z        : (N, D) f32 projected node features
    adj      : (N, N) f32, adj[dst, src] = 1.0 for edge src -> dst
    neg_bias : (N, N) f32, 0 where edge, -1e30 elsewhere (precomputed once)
    """
    # attention projections on the MXU, kept in f32 (tiny matmuls)
    el_row = jax.lax.dot_general(al, z, (((1,), (1,)), ((), ())),
                                 preferred_element_type=jnp.float32)      # (1, N)  el[src]
    er_col = jax.lax.dot_general(z, ar, (((1,), (1,)), ((), ())),
                                 preferred_element_type=jnp.float32)      # (N, 1)  er[dst]
    e = er_col + el_row                          # e[dst, src] = er[dst] + el[src]
    e = jnp.where(e > 0, e, 0.2 * e)             # LeakyReLU(0.2)

    logits = e + neg_bias                        # hoisted mask (no per-layer select)
    m = jnp.max(logits, axis=-1, keepdims=True)
    p = jnp.exp(logits - m) * adj
    s = jnp.sum(p, axis=-1, keepdims=True)
    inv = jnp.where(s > 0, pl.reciprocal(s, approx=True), 0.0)  # zero in-degree -> alpha = 0
    alpha = p * inv                              # edge-softmax over incoming edges

    out = jnp.dot(alpha.astype(jnp.bfloat16), z.astype(jnp.bfloat16),
                  preferred_element_type=jnp.float32) + b
    return jnp.maximum(out, 0.0)                 # F.relu fused


def _gat_layer(h, adj, neg_bias, w_bf16, al, ar, b):
    """GATConv (num_heads=1, allow_zero_in_degree=True) + fused ReLU; w in bf16."""
    z = jnp.dot(h.astype(jnp.bfloat16), w_bf16,
                preferred_element_type=jnp.float32)                       # (N, D) f32
    return _gat_attention(z, adj, neg_bias, al, ar, b)


# --------------------------- fused per-node kernel ----------------------------
# grid axis = layer index; h is a persistent VMEM accumulator across layers.


def _node_stage_kernel(tok_ref, adj_ref, emb_ref,
                       wg_ref, alg_ref, arg_ref, bg_ref,
                       wf_ref, bf_ref, o_ref, h_scr, nb_scr):
    l = pl.program_id(0)
    n = tok_ref.shape[0]
    v = emb_ref.shape[0]
    adj = adj_ref[...]

    @pl.when(l == 0)
    def _():
        # token embedding lookup as a one-hot MXU matmul (exact: selects f32 rows), + ReLU
        iota = jax.lax.broadcasted_iota(jnp.int32, (n, v), 1)
        onehot = (iota == tok_ref[...]).astype(jnp.float32)
        h0 = jnp.dot(onehot, emb_ref[...], preferred_element_type=jnp.float32)
        h_scr[...] = jnp.maximum(h0, 0.0)
        # additive non-edge bias, computed once for all 8 layers
        nb_scr[...] = jnp.where(adj > 0, 0.0, -1e30)

    # one graph-attention layer per grid step; layer weights are double-buffered
    # behind the previous layer's compute by the BlockSpec pipeline.
    # TODO(synk): EGATConv edge-feature stream (e_token_emb, per-edge attention
    # term, updated edge outputs) is not modeled; node-only GAT attention is used.
    h = _gat_layer(h_scr[...], adj, nb_scr[...],
                   wg_ref[0], alg_ref[0], arg_ref[0], bg_ref[0])
    h_scr[...] = h

    @pl.when(l == pl.num_programs(0) - 1)
    def _():
        # linear_forward + ReLU epilogue (wf already bf16)
        y = jnp.dot(h.astype(jnp.bfloat16), wf_ref[...],
                    preferred_element_type=jnp.float32) + bf_ref[...]
        o_ref[...] = jnp.maximum(y, 0.0)


def node_stage_pallas(tokens, adj, w):
    n = tokens.shape[0]
    n_pad = max(128, pl.cdiv(n, 128) * 128)     # lane-dense node count
    d = EMB_DIM
    L = NUM_LAYERS

    tok = jnp.zeros((n_pad, 1), jnp.int32).at[:n, 0].set(tokens.astype(jnp.int32))
    adj_p = jnp.zeros((n_pad, n_pad), jnp.float32).at[:n, :n].set(adj)

    out = pl.pallas_call(
        _node_stage_kernel,
        out_shape=jax.ShapeDtypeStruct((n_pad, d), jnp.float32),
        grid=(L,),
        in_specs=[
            pl.BlockSpec((n_pad, 1), lambda l: (0, 0)),
            pl.BlockSpec((n_pad, n_pad), lambda l: (0, 0)),
            pl.BlockSpec((VOCAB_PAD, d), lambda l: (0, 0)),
            pl.BlockSpec((1, d, d), lambda l: (l, 0, 0)),   # per-layer bf16 weight
            pl.BlockSpec((1, 1, d), lambda l: (l, 0, 0)),
            pl.BlockSpec((1, 1, d), lambda l: (l, 0, 0)),
            pl.BlockSpec((1, 1, d), lambda l: (l, 0, 0)),
            pl.BlockSpec((d, d), lambda l: (0, 0)),
            pl.BlockSpec((1, d), lambda l: (0, 0)),
        ],
        out_specs=pl.BlockSpec((n_pad, d), lambda l: (0, 0)),
        scratch_shapes=[
            pltpu.VMEM((n_pad, d), jnp.float32),        # persistent h accumulator
            pltpu.VMEM((n_pad, n_pad), jnp.float32),    # hoisted -1e30 mask bias
        ],
        compiler_params=pltpu.CompilerParams(dimension_semantics=("arbitrary",)),
    )(tok, adj_p, w["emb"], w["wg"], w["alg"], w["arg"], w["bg"], w["wf"], w["bf"])
    return out[:n]


# ---------------------------- fused graph-level head --------------------------
# grid axis = chunk of the conv3 K=4096 reduction; z accumulates in VMEM so the
# 1 MiB bf16 conv3 weight DMA is overlapped with the matmul.


def _head_kernel(hp_ref, fg_ref, w3_ref, al3_ref, ar3_ref, b3_ref,
                 wl_ref, bl_ref, wc_ref, bc_ref, o_ref, z_acc):
    c = pl.program_id(0)

    @pl.when(c == 0)
    def _():
        z_acc[...] = jnp.zeros_like(z_acc)

    z_acc[...] += jnp.dot(hp_ref[...].astype(jnp.bfloat16), w3_ref[...],
                          preferred_element_type=jnp.float32)

    @pl.when(c == pl.num_programs(0) - 1)
    def _():
        # conv3 (GATConv on the fully connected graph-of-graphs) attention + ReLU
        fg = fg_ref[...]
        neg_bias = jnp.where(fg > 0, 0.0, -1e30)
        h = _gat_attention(z_acc[...], fg, neg_bias,
                           al3_ref[...], ar3_ref[...], b3_ref[...])
        # linear + ReLU (wl already bf16)
        h = jnp.dot(h.astype(jnp.bfloat16), wl_ref[...],
                    preferred_element_type=jnp.float32) + bl_ref[...]
        h = jnp.maximum(h, 0.0)
        # dropout(p=0.2): identity in eval mode
        # classifier (kept f32: tiny, preserves logit precision)
        o_ref[...] = jnp.dot(h, wc_ref[...],
                             preferred_element_type=jnp.float32) + bc_ref[...]


def head_pallas(h_pool, fg_adj, w):
    b = h_pool.shape[0]
    b_pad = pl.cdiv(b, 8) * 8                   # sublane-aligned batch
    din = h_pool.shape[1]                       # K * HIDDEN
    d = HIDDEN

    n_chunks = HEAD_CHUNKS
    if din % (n_chunks * 128) != 0:
        n_chunks = 1                            # fall back to one un-split reduction
    chunk = din // n_chunks

    hp = jnp.zeros((b_pad, din), jnp.float32).at[:b].set(h_pool)
    fg = jnp.zeros((b_pad, b_pad), jnp.float32).at[:b, :b].set(fg_adj)

    out = pl.pallas_call(
        _head_kernel,
        out_shape=jax.ShapeDtypeStruct((b_pad, 2), jnp.float32),
        grid=(n_chunks,),
        in_specs=[
            pl.BlockSpec((b_pad, chunk), lambda c: (0, c)),
            pl.BlockSpec((b_pad, b_pad), lambda c: (0, 0)),
            pl.BlockSpec((chunk, d), lambda c: (c, 0)),     # streamed bf16 conv3 weight
            pl.BlockSpec((1, d), lambda c: (0, 0)),
            pl.BlockSpec((1, d), lambda c: (0, 0)),
            pl.BlockSpec((1, d), lambda c: (0, 0)),
            pl.BlockSpec((d, d), lambda c: (0, 0)),
            pl.BlockSpec((1, d), lambda c: (0, 0)),
            pl.BlockSpec((d, 2), lambda c: (0, 0)),
            pl.BlockSpec((1, 2), lambda c: (0, 0)),
        ],
        out_specs=pl.BlockSpec((b_pad, 2), lambda c: (0, 0)),
        scratch_shapes=[pltpu.VMEM((b_pad, d), jnp.float32)],
        compiler_params=pltpu.CompilerParams(dimension_semantics=("arbitrary",)),
    )(hp, fg, w["w3"], w["al3"], w["ar3"], w["b3"],
      w["wl"], w["bl"], w["wc"], w["bc"])
    return out[:b]


# ------------------------------- JAX glue --------------------------------------


def sort_pooling(h, num_graphs, nodes_per_graph, k):
    # DGL SortPooling: sort each node's feature vector ascending, then per graph
    # take the top-k nodes by their last (largest) feature value, concatenate.
    # TODO(synk): no clean in-kernel sort on TPU Mosaic; left as XLA glue. Could
    # be fused into the node-stage epilogue with a 128-lane bitonic network
    # (pltpu.roll + jnp.where) if profiling shows this dominates wall-clock.
    # TODO(synk): graphs with fewer than k nodes would need zero padding; here
    # every graph has exactly k nodes so the padding path is not exercised.
    feat = jnp.sort(h, axis=-1)
    feat = feat.reshape(num_graphs, nodes_per_graph, -1)
    keys = feat[..., -1]                                        # (B, n_per)
    _, idx = jax.lax.top_k(keys, k)                             # descending
    pooled = jnp.take_along_axis(feat, idx[..., None], axis=1)  # (B, k, D)
    return pooled.reshape(num_graphs, k * feat.shape[-1])


def forward(tokens, g_adj, fg_adj, packed, num_graphs, nodes_per_graph):
    # fused: token_emb + ReLU + 8 graph convs + linear_forward + ReLU (one pallas_call)
    h = node_stage_pallas(tokens, g_adj, packed["node"])        # (N, 128)
    h = sort_pooling(h, num_graphs, nodes_per_graph, K)         # (B, K*128)
    # fused: conv3 + ReLU + linear + ReLU + dropout(id) + clasifier (one pallas_call)
    out = head_pallas(h, fg_adj, packed["head"])                # (B, 2)
    return out.reshape(-1, 2)


# ----------------- one-time parameter packing (bf16 weights) -------------------


def pack_params(params):
    """Stack / pad / bf16-cast parameters once, outside jit, so the per-call
    pallas kernels DMA half the weight bytes and do no in-kernel weight casts."""
    d = EMB_DIM
    L = NUM_LAYERS
    node = dict(
        emb=jnp.zeros((VOCAB_PAD, d), jnp.float32).at[:VOCAB].set(params["token_emb"]),
        wg=jnp.stack([params["gconvs"][i]["w"] for i in range(L)]).astype(jnp.bfloat16),
        alg=jnp.stack([params["gconvs"][i]["al"] for i in range(L)]),
        arg=jnp.stack([params["gconvs"][i]["ar"] for i in range(L)]),
        bg=jnp.stack([params["gconvs"][i]["b"].reshape(1, d) for i in range(L)]),
        wf=params["linear_forward"]["w"].astype(jnp.bfloat16),
        bf=params["linear_forward"]["b"].reshape(1, d),
    )
    head = dict(
        w3=params["conv3"]["w"].astype(jnp.bfloat16),
        al3=params["conv3"]["al"],
        ar3=params["conv3"]["ar"],
        b3=params["conv3"]["b"].reshape(1, d),
        wl=params["linear"]["w"].astype(jnp.bfloat16),
        bl=params["linear"]["b"].reshape(1, d),
        wc=params["clasifier"]["w"],
        bc=params["clasifier"]["b"].reshape(1, 2),
    )
    return dict(node=node, head=head)


# --------------------------- deterministic init ---------------------------------


def init_params(key):
    def xavier(k, shape, gain):
        fan_in, fan_out = shape
        std = gain * (2.0 / (fan_in + fan_out)) ** 0.5
        return std * jax.random.normal(k, shape, jnp.float32)

    def gat_params(k, din, dout):
        k1, k2, k3 = jax.random.split(k, 3)
        g = 2.0 ** 0.5
        return dict(
            w=xavier(k1, (din, dout), g),
            al=xavier(k2, (1, dout), g),
            ar=xavier(k3, (1, dout), g),
            b=jnp.zeros((dout,), jnp.float32),
        )

    def lin_params(k, din, dout, gain):
        k1, k2 = jax.random.split(k, 2)
        bound = 1.0 / (din ** 0.5)
        return dict(
            w=xavier(k1, (din, dout), gain),
            b=jax.random.uniform(k2, (dout,), jnp.float32, -bound, bound),
        )

    ks = jax.random.split(key, NUM_LAYERS + 5)
    gconvs = [gat_params(ks[i], EMB_DIM if i == 0 else HIDDEN, HIDDEN)
              for i in range(NUM_LAYERS)]
    # NOTE: conv4, linear1, linear2, linear3, linear_forward1, e_token_emb exist
    # in __init__ but are never used in forward(), so they are not instantiated.
    return dict(
        token_emb=xavier(ks[NUM_LAYERS], (VOCAB, EMB_DIM), 10.0),
        gconvs=gconvs,
        conv3=gat_params(ks[NUM_LAYERS + 1], K * HIDDEN, HIDDEN),
        linear_forward=lin_params(ks[NUM_LAYERS + 2], HIDDEN, HIDDEN, 3.0),
        linear=lin_params(ks[NUM_LAYERS + 3], HIDDEN, HIDDEN, 10.0),
        clasifier=lin_params(ks[NUM_LAYERS + 4], HIDDEN, 2, 10.0),
    )


# ----------------------------------- main ---------------------------------------


if __name__ == "__main__":
    B = 4            # number of graphs in the batched graph g
    n_per = K        # nodes per graph (== SortPooling k, so no padding path)
    N = B * n_per    # 128 total nodes -> already a lane-dense multiple of 128

    key = jax.random.PRNGKey(0)
    k_tok, k_g, k_p = jax.random.split(key, 3)

    tokens = jax.random.randint(k_tok, (N,), 0, VOCAB)                       # node token ids
    intra = (jax.random.uniform(k_g, (B, n_per, n_per)) < 0.3).astype(jnp.float32)
    g_adj = jnp.zeros((N, N), jnp.float32)                                   # block-diagonal batch graph
    for b_ in range(B):
        sl = slice(b_ * n_per, (b_ + 1) * n_per)
        g_adj = g_adj.at[sl, sl].set(intra[b_])
    fg_adj = jnp.ones((B, B), jnp.float32)                                   # fully connected graph-of-graphs

    params = init_params(k_p)
    packed = pack_params(params)        # one-time: stack + pad + bf16-cast weights

    fwd = jax.jit(functools.partial(forward, num_graphs=B, nodes_per_graph=n_per))
    out = fwd(tokens, g_adj, fg_adj, packed)
    jax.block_until_ready(out)
    assert out.shape == (B, 2) and out.dtype == jnp.float32
    assert bool(jnp.all(jnp.isfinite(out)))
    print("KERNEL_OK")
</pallas_src>

<mosaic_0001>
module attributes {stable_mosaic.version = 11 : i64} {
  func.func @_node_stage_kernel(%arg0: i32, %arg1: memref<128x1xi32, #tpu.memory_space<vmem>>, %arg2: memref<128x128xf32, #tpu.memory_space<vmem>>, %arg3: memref<256x128xf32, #tpu.memory_space<vmem>>, %arg4: memref<1x128x128xbf16, #tpu.memory_space<vmem>>, %arg5: memref<1x1x128xf32, #tpu.memory_space<vmem>>, %arg6: memref<1x1x128xf32, #tpu.memory_space<vmem>>, %arg7: memref<1x1x128xf32, #tpu.memory_space<vmem>>, %arg8: memref<128x128xbf16, #tpu.memory_space<vmem>>, %arg9: memref<1x128xf32, #tpu.memory_space<vmem>>, %arg10: memref<128x128xf32, #tpu.memory_space<vmem>>, %arg11: memref<128x128xf32, #tpu.memory_space<vmem>>, %arg12: memref<128x128xf32, #tpu.memory_space<vmem>>) attributes {dimension_semantics = [#tpu.dimension_semantics<arbitrary>], iteration_bounds = array<i64: 8>, scalar_prefetch = 0 : i64, scratch_operands = 2 : i64, tpu.core_type = #tpu.core_type<tc>, window_params = [{pipeline_mode = #tpu.pipeline_mode<synchronous>, transform_indices = @transform_0, window_bounds = array<i64: 128, 1>}, {pipeline_mode = #tpu.pipeline_mode<synchronous>, transform_indices = @transform_1, window_bounds = array<i64: 128, 128>}, {pipeline_mode = #tpu.pipeline_mode<synchronous>, transform_indices = @transform_2, window_bounds = array<i64: 256, 128>}, {transform_indices = @transform_3, window_bounds = array<i64: 1, 128, 128>}, {transform_indices = @transform_4, window_bounds = array<i64: 1, 1, 128>}, {transform_indices = @transform_5, window_bounds = array<i64: 1, 1, 128>}, {transform_indices = @transform_6, window_bounds = array<i64: 1, 1, 128>}, {pipeline_mode = #tpu.pipeline_mode<synchronous>, transform_indices = @transform_7, window_bounds = array<i64: 128, 128>}, {pipeline_mode = #tpu.pipeline_mode<synchronous>, transform_indices = @transform_8, window_bounds = array<i64: 1, 128>}, {pipeline_mode = #tpu.pipeline_mode<synchronous>, transform_indices = @transform_9, window_bounds = array<i64: 128, 128>}]} {
    %c0 = arith.constant 0 : index
    %c0_0 = arith.constant 0 : index
    %0 = vector.load %arg2[%c0, %c0_0] : memref<128x128xf32, #tpu.memory_space<vmem>>, vector<128x128xf32>
    %c0_i32 = arith.constant 0 : i32
    %1 = arith.cmpi eq, %arg0, %c0_i32 : i32
    %2 = arith.extui %1 : i1 to i32
    %c0_i32_1 = arith.constant 0 : i32
    %3 = arith.cmpi ne, %2, %c0_i32_1 : i32
    scf.if %3 {
      %53 = tpu.iota {dimensions = array<i32: 1>} : vector<128x256xi32>
      %c0_31 = arith.constant 0 : index
      %c0_32 = arith.constant 0 : index
      %54 = vector.load %arg1[%c0_31, %c0_32] : memref<128x1xi32, #tpu.memory_space<vmem>>, vector<128x1xi32>
      %55 = vector.broadcast %54 : vector<128x1xi32> to vector<128x256xi32>
      %56 = arith.cmpi eq, %53, %55 : vector<128x256xi32>
      %57 = arith.extui %56 : vector<128x256xi1> to vector<128x256xi32>
      %58 = arith.sitofp %57 : vector<128x256xi32> to vector<128x256xf32>
      %c0_33 = arith.constant 0 : index
      %c0_34 = arith.constant 0 : index
      %59 = vector.load %arg3[%c0_33, %c0_34] : memref<256x128xf32, #tpu.memory_space<vmem>>, vector<256x128xf32>
      %cst_35 = arith.constant dense<0.000000e+00> : vector<128x128xf32>
      %60 = tpu.matmul %58, %59, %cst_35 {dimension_numbers = #tpu.dot_dimension_numbers<[1], [0], [0], [1], [0, 0, 1, 1], [], []>} : vector<128x256xf32>, vector<256x128xf32>, vector<128x128xf32> -> vector<128x128xf32>
      %cst_36 = arith.constant 0.000000e+00 : f32
      %61 = vector.broadcast %cst_36 : f32 to vector<128x128xf32>
      %62 = arith.maximumf %60, %61 : vector<128x128xf32>
      %c0_37 = arith.constant 0 : index
      %c0_38 = arith.constant 0 : index
      %63 = vector.load %arg11[%c0_37, %c0_38] : memref<128x128xf32, #tpu.memory_space<vmem>>, vector<128x128xf32>
      tpu.vector_store %arg11[%c0_37, %c0_38], %62 {strides = array<i32>} : memref<128x128xf32, #tpu.memory_space<vmem>>, vector<128x128xf32>,
      %cst_39 = arith.constant 0.000000e+00 : f32
      %64 = vector.broadcast %cst_39 : f32 to vector<128x128xf32>
      %65 = arith.cmpf ogt, %0, %64 : vector<128x128xf32>
      %cst_40 = arith.constant 0.000000e+00 : f32
      %cst_41 = arith.constant -1.000000e+30 : f32
      %66 = vector.broadcast %cst_40 : f32 to vector<128x128xf32>
      %67 = vector.broadcast %cst_41 : f32 to vector<128x128xf32>
      %68 = arith.select %65, %66, %67 : vector<128x128xi1>, vector<128x128xf32>
      %c0_42 = arith.constant 0 : index
      %c0_43 = arith.constant 0 : index
      %69 = vector.load %arg12[%c0_42, %c0_43] : memref<128x128xf32, #tpu.memory_space<vmem>>, vector<128x128xf32>
      tpu.vector_store %arg12[%c0_42, %c0_43], %68 {strides = array<i32>} : memref<128x128xf32, #tpu.memory_space<vmem>>, vector<128x128xf32>,
    } else {
    }
    %c0_2 = arith.constant 0 : index
    %c0_3 = arith.constant 0 : index
    %4 = vector.load %arg11[%c0_2, %c0_3] : memref<128x128xf32, #tpu.memory_space<vmem>>, vector<128x128xf32>
    %c0_4 = arith.constant 0 : index
    %c0_5 = arith.constant 0 : index
    %5 = vector.load %arg12[%c0_4, %c0_5] : memref<128x128xf32, #tpu.memory_space<vmem>>, vector<128x128xf32>
    %c0_6 = arith.constant 0 : index
    %c0_7 = arith.constant 0 : index
    %c0_8 = arith.constant 0 : index
    %6 = vector.load %arg4[%c0_6, %c0_7, %c0_8] : memref<1x128x128xbf16, #tpu.memory_space<vmem>>, vector<1x128x128xbf16>
    %7 = vector.shape_cast %6 : vector<1x128x128xbf16> to vector<128x128xbf16>
    %c0_9 = arith.constant 0 : index
    %c0_10 = arith.constant 0 : index
    %c0_11 = arith.constant 0 : index
    %8 = vector.load %arg5[%c0_9, %c0_10, %c0_11] : memref<1x1x128xf32, #tpu.memory_space<vmem>>, vector<1x1x128xf32>
    %9 = vector.shape_cast %8 : vector<1x1x128xf32> to vector<1x128xf32>
    %c0_12 = arith.constant 0 : index
    %c0_13 = arith.constant 0 : index
    %c0_14 = arith.constant 0 : index
    %10 = vector.load %arg6[%c0_12, %c0_13, %c0_14] : memref<1x1x128xf32, #tpu.memory_space<vmem>>, vector<1x1x128xf32>
    %11 = vector.shape_cast %10 : vector<1x1x128xf32> to vector<1x128xf32>
    %c0_15 = arith.constant 0 : index
    %c0_16 = arith.constant 0 : index
    %c0_17 = arith.constant 0 : index
    %12 = vector.load %arg7[%c0_15, %c0_16, %c0_17] : memref<1x1x128xf32, #tpu.memory_space<vmem>>, vector<1x1x128xf32>
    %13 = vector.shape_cast %12 : vector<1x1x128xf32> to vector<1x128xf32>
    %14 = arith.truncf %4 : vector<128x128xf32> to vector<128x128xbf16>
    %cst = arith.constant dense<0.000000e+00> : vector<128x128xf32>
    %15 = tpu.matmul %14, %7, %cst {dimension_numbers = #tpu.dot_dimension_numbers<[1], [0], [0], [1], [0, 0, 1, 1], [], []>} : vector<128x128xbf16>, vector<128x128xbf16>, vector<128x128xf32> -> vector<128x128xf32>
    %cst_18 = arith.constant dense<0.000000e+00> : vector<1x128xf32>
    %16 = tpu.matmul %9, %15, %cst_18 {dimension_numbers = #tpu.dot_dimension_numbers<[1], [1], [0], [0], [0, 0, 1, 0], [], []>} : vector<1x128xf32>, vector<128x128xf32>, vector<1x128xf32> -> vector<1x128xf32>
    %cst_19 = arith.constant dense<0.000000e+00> : vector<128x1xf32>
    %17 = tpu.matmul %15, %11, %cst_19 {dimension_numbers = #tpu.dot_dimension_numbers<[1], [1], [0], [0], [0, 0, 1, 0], [], []>} : vector<128x128xf32>, vector<1x128xf32>, vector<128x1xf32> -> vector<128x1xf32>
    %18 = vector.broadcast %17 : vector<128x1xf32> to vector<128x128xf32>
    %19 = vector.broadcast %16 : vector<1x128xf32> to vector<128x128xf32>
    %20 = arith.addf %18, %19 : vector<128x128xf32>
    %cst_20 = arith.constant 0.000000e+00 : f32
    %21 = vector.broadcast %cst_20 : f32 to vector<128x128xf32>
    %22 = arith.cmpf ogt, %20, %21 : vector<128x128xf32>
    %cst_21 = arith.constant 2.000000e-01 : f32
    %23 = vector.broadcast %cst_21 : f32 to vector<128x128xf32>
    %24 = arith.mulf %23, %20 : vector<128x128xf32>
    %25 = arith.select %22, %20, %24 : vector<128x128xi1>, vector<128x128xf32>
    %26 = arith.addf %25, %5 : vector<128x128xf32>
    %cst_22 = arith.constant dense<0xFF800000> : vector<128xf32>
    %27 = vector.multi_reduction <maximumf>, %26, %cst_22 [1] : vector<128x128xf32> to vector<128xf32>
    %28 = vector.shape_cast %27 : vector<128xf32> to vector<128x1xf32>
    %29 = vector.broadcast %28 : vector<128x1xf32> to vector<128x128xf32>
    %30 = arith.subf %26, %29 : vector<128x128xf32>
    %31 = math.exp %30 : vector<128x128xf32>
    %32 = arith.mulf %31, %0 : vector<128x128xf32>
    %cst_23 = arith.constant dense<0.000000e+00> : vector<128xf32>
    %33 = vector.multi_reduction <add>, %32, %cst_23 [1] : vector<128x128xf32> to vector<128xf32>
    %34 = vector.shape_cast %33 : vector<128xf32> to vector<128x1xf32>
    %cst_24 = arith.constant 0.000000e+00 : f32
    %35 = vector.broadcast %cst_24 : f32 to vector<128x1xf32>
    %36 = arith.cmpf ogt, %34, %35 : vector<128x1xf32>
    %37 = tpu.reciprocal %34 {approx = true} : vector<128x1xf32> -> vector<128x1xf32>
    %cst_25 = arith.constant 0.000000e+00 : f32
    %38 = vector.broadcast %cst_25 : f32 to vector<128x1xf32>
    %39 = arith.select %36, %37, %38 : vector<128x1xi1>, vector<128x1xf32>
    %40 = vector.broadcast %39 : vector<128x1xf32> to vector<128x128xf32>
    %41 = arith.mulf %32, %40 : vector<128x128xf32>
    %42 = arith.truncf %41 : vector<128x128xf32> to vector<128x128xbf16>
    %43 = arith.truncf %15 : vector<128x128xf32> to vector<128x128xbf16>
    %cst_26 = arith.constant dense<0.000000e+00> : vector<128x128xf32>
    %44 = tpu.matmul %42, %43, %cst_26 {dimension_numbers = #tpu.dot_dimension_numbers<[1], [0], [0], [1], [0, 0, 1, 1], [], []>} : vector<128x128xbf16>, vector<128x128xbf16>, vector<128x128xf32> -> vector<128x128xf32>
    %45 = vector.broadcast %13 : vector<1x128xf32> to vector<128x128xf32>
    %46 = arith.addf %44, %45 : vector<128x128xf32>
    %cst_27 = arith.constant 0.000000e+00 : f32
    %47 = vector.broadcast %cst_27 : f32 to vector<128x128xf32>
    %48 = arith.maximumf %46, %47 : vector<128x128xf32>
    %c0_28 = arith.constant 0 : index
    %c0_29 = arith.constant 0 : index
    %49 = vector.load %arg11[%c0_28, %c0_29] : memref<128x128xf32, #tpu.memory_space<vmem>>, vector<128x128xf32>
    tpu.vector_store %arg11[%c0_28, %c0_29], %48 {strides = array<i32>} : memref<128x128xf32, #tpu.memory_space<vmem>>, vector<128x128xf32>,
    %c7_i32 = arith.constant 7 : i32
    %50 = arith.cmpi eq, %arg0, %c7_i32 : i32
    %51 = arith.extui %50 : i1 to i32
    %c0_i32_30 = arith.constant 0 : i32
    %52 = arith.cmpi ne, %51, %c0_i32_30 : i32
    scf.if %52 {
      %53 = arith.truncf %48 : vector<128x128xf32> to vector<128x128xbf16>
      %c0_31 = arith.constant 0 : index
      %c0_32 = arith.constant 0 : index
      %54 = vector.load %arg8[%c0_31, %c0_32] : memref<128x128xbf16, #tpu.memory_space<vmem>>, vector<128x128xbf16>
      %cst_33 = arith.constant dense<0.000000e+00> : vector<128x128xf32>
      %55 = tpu.matmul %53, %54, %cst_33 {dimension_numbers = #tpu.dot_dimension_numbers<[1], [0], [0], [1], [0, 0, 1, 1], [], []>} : vector<128x128xbf16>, vector<128x128xbf16>, vector<128x128xf32> -> vector<128x128xf32>
      %c0_34 = arith.constant 0 : index
      %c0_35 = arith.constant 0 : index
      %56 = vector.load %arg9[%c0_34, %c0_35] : memref<1x128xf32, #tpu.memory_space<vmem>>, vector<1x128xf32>
      %57 = vector.broadcast %56 : vector<1x128xf32> to vector<128x128xf32>
      %58 = arith.addf %55, %57 : vector<128x128xf32>
      %cst_36 = arith.constant 0.000000e+00 : f32
      %59 = vector.broadcast %cst_36 : f32 to vector<128x128xf32>
      %60 = arith.maximumf %58, %59 : vector<128x128xf32>
      %c0_37 = arith.constant 0 : index
      %c0_38 = arith.constant 0 : index
      %61 = vector.load %arg10[%c0_37, %c0_38] : memref<128x128xf32, #tpu.memory_space<vmem>>, vector<128x128xf32>
      tpu.vector_store %arg10[%c0_37, %c0_38], %60 {strides = array<i32>} : memref<128x128xf32, #tpu.memory_space<vmem>>, vector<128x128xf32>,
    } else {
    }
    return
  }
  func.func @transform_0(%arg0: i32) -> (i32, i32) {
    %c0_i32 = arith.constant 0 : i32
    %c0_i32_0 = arith.constant 0 : i32
    %c0_i32_1 = arith.constant 0 : i32
    return %c0_i32, %c0_i32_0 : i32, i32
  }
  func.func @transform_1(%arg0: i32) -> (i32, i32) {
    %c0_i32 = arith.constant 0 : i32
    %c0_i32_0 = arith.constant 0 : i32
    %c0_i32_1 = arith.constant 0 : i32
    return %c0_i32, %c0_i32_0 : i32, i32
  }
  func.func @transform_2(%arg0: i32) -> (i32, i32) {
    %c0_i32 = arith.constant 0 : i32
    %c0_i32_0 = arith.constant 0 : i32
    %c0_i32_1 = arith.constant 0 : i32
    return %c0_i32, %c0_i32_0 : i32, i32
  }
  func.func @transform_3(%arg0: i32) -> (i32, i32, i32) {
    %c0_i32 = arith.constant 0 : i32
    %c0_i32_0 = arith.constant 0 : i32
    %c0_i32_1 = arith.constant 0 : i32
    return %arg0, %c0_i32, %c0_i32_0 : i32, i32, i32
  }
  func.func @transform_4(%arg0: i32) -> (i32, i32, i32) {
    %c0_i32 = arith.constant 0 : i32
    %c0_i32_0 = arith.constant 0 : i32
    %c0_i32_1 = arith.constant 0 : i32
    return %arg0, %c0_i32, %c0_i32_0 : i32, i32, i32
  }
  func.func @transform_5(%arg0: i32) -> (i32, i32, i32) {
    %c0_i32 = arith.constant 0 : i32
    %c0_i32_0 = arith.constant 0 : i32
    %c0_i32_1 = arith.constant 0 : i32
    return %arg0, %c0_i32, %c0_i32_0 : i32, i32, i32
  }
  func.func @transform_6(%arg0: i32) -> (i32, i32, i32) {
    %c0_i32 = arith.constant 0 : i32
    %c0_i32_0 = arith.constant 0 : i32
    %c0_i32_1 = arith.constant 0 : i32
    return %arg0, %c0_i32, %c0_i32_0 : i32, i32, i32
  }
  func.func @transform_7(%arg0: i32) -> (i32, i32) {
    %c0_i32 = arith.constant 0 : i32
    %c0_i32_0 = arith.constant 0 : i32
    %c0_i32_1 = arith.constant 0 : i32
    return %c0_i32, %c0_i32_0 : i32, i32
  }
  func.func @transform_8(%arg0: i32) -> (i32, i32) {
    %c0_i32 = arith.constant 0 : i32
    %c0_i32_0 = arith.constant 0 : i32
    %c0_i32_1 = arith.constant 0 : i32
    return %c0_i32, %c0_i32_0 : i32, i32
  }
  func.func @transform_9(%arg0: i32) -> (i32, i32) {
    %c0_i32 = arith.constant 0 : i32
    %c0_i32_0 = arith.constant 0 : i32
    %c0_i32_1 = arith.constant 0 : i32
    return %c0_i32, %c0_i32_0 : i32, i32
  }
}

module attributes {stable_mosaic.version = 11 : i64} {
  func.func @_head_kernel(%arg0: i32, %arg1: memref<8x1024xf32, #tpu.memory_space<vmem>>, %arg2: memref<8x8xf32, #tpu.memory_space<vmem>>, %arg3: memref<1024x128xbf16, #tpu.memory_space<vmem>>, %arg4: memref<1x128xf32, #tpu.memory_space<vmem>>, %arg5: memref<1x128xf32, #tpu.memory_space<vmem>>, %arg6: memref<1x128xf32, #tpu.memory_space<vmem>>, %arg7: memref<128x128xbf16, #tpu.memory_space<vmem>>, %arg8: memref<1x128xf32, #tpu.memory_space<vmem>>, %arg9: memref<128x2xf32, #tpu.memory_space<vmem>>, %arg10: memref<1x2xf32, #tpu.memory_space<vmem>>, %arg11: memref<8x2xf32, #tpu.memory_space<vmem>>, %arg12: memref<8x128xf32, #tpu.memory_space<vmem>>) attributes {dimension_semantics = [#tpu.dimension_semantics<arbitrary>], iteration_bounds = array<i64: 4>, scalar_prefetch = 0 : i64, scratch_operands = 1 : i64, tpu.core_type = #tpu.core_type<tc>, window_params = [{transform_indices = @transform_0, window_bounds = array<i64: 8, 1024>}, {pipeline_mode = #tpu.pipeline_mode<synchronous>, transform_indices = @transform_1, window_bounds = array<i64: 8, 8>}, {transform_indices = @transform_2, window_bounds = array<i64: 1024, 128>}, {pipeline_mode = #tpu.pipeline_mode<synchronous>, transform_indices = @transform_3, window_bounds = array<i64: 1, 128>}, {pipeline_mode = #tpu.pipeline_mode<synchronous>, transform_indices = @transform_4, window_bounds = array<i64: 1, 128>}, {pipeline_mode = #tpu.pipeline_mode<synchronous>, transform_indices = @transform_5, window_bounds = array<i64: 1, 128>}, {pipeline_mode = #tpu.pipeline_mode<synchronous>, transform_indices = @transform_6, window_bounds = array<i64: 128, 128>}, {pipeline_mode = #tpu.pipeline_mode<synchronous>, transform_indices = @transform_7, window_bounds = array<i64: 1, 128>}, {pipeline_mode = #tpu.pipeline_mode<synchronous>, transform_indices = @transform_8, window_bounds = array<i64: 128, 2>}, {pipeline_mode = #tpu.pipeline_mode<synchronous>, transform_indices = @transform_9, window_bounds = array<i64: 1, 2>}, {pipeline_mode = #tpu.pipeline_mode<synchronous>, transform_indices = @transform_10, window_bounds = array<i64: 8, 2>}]} {
    %c0_i32 = arith.constant 0 : i32
    %0 = arith.cmpi eq, %arg0, %c0_i32 : i32
    %1 = arith.extui %0 : i1 to i32
    %c0_i32_0 = arith.constant 0 : i32
    %2 = arith.cmpi ne, %1, %c0_i32_0 : i32
    scf.if %2 {
      %cst_9 = arith.constant 0.000000e+00 : f32
      %13 = vector.broadcast %cst_9 : f32 to vector<8x128xf32>
      %c0_10 = arith.constant 0 : index
      %c0_11 = arith.constant 0 : index
      %14 = vector.load %arg12[%c0_10, %c0_11] : memref<8x128xf32, #tpu.memory_space<vmem>>, vector<8x128xf32>
      tpu.vector_store %arg12[%c0_10, %c0_11], %13 {strides = array<i32>} : memref<8x128xf32, #tpu.memory_space<vmem>>, vector<8x128xf32>,
    } else {
    }
    %c0 = arith.constant 0 : index
    %c0_1 = arith.constant 0 : index
    %3 = vector.load %arg12[%c0, %c0_1] : memref<8x128xf32, #tpu.memory_space<vmem>>, vector<8x128xf32>
    %c0_2 = arith.constant 0 : index
    %c0_3 = arith.constant 0 : index
    %4 = vector.load %arg1[%c0_2, %c0_3] : memref<8x1024xf32, #tpu.memory_space<vmem>>, vector<8x1024xf32>
    %5 = arith.truncf %4 : vector<8x1024xf32> to vector<8x1024xbf16>
    %c0_4 = arith.constant 0 : index
    %c0_5 = arith.constant 0 : index
    %6 = vector.load %arg3[%c0_4, %c0_5] : memref<1024x128xbf16, #tpu.memory_space<vmem>>, vector<1024x128xbf16>
    %cst = arith.constant dense<0.000000e+00> : vector<8x128xf32>
    %7 = tpu.matmul %5, %6, %cst {dimension_numbers = #tpu.dot_dimension_numbers<[1], [0], [0], [1], [0, 0, 1, 1], [], []>} : vector<8x1024xbf16>, vector<1024x128xbf16>, vector<8x128xf32> -> vector<8x128xf32>
    %8 = arith.addf %3, %7 : vector<8x128xf32>
    %c0_6 = arith.constant 0 : index
    %c0_7 = arith.constant 0 : index
    %9 = vector.load %arg12[%c0_6, %c0_7] : memref<8x128xf32, #tpu.memory_space<vmem>>, vector<8x128xf32>
    tpu.vector_store %arg12[%c0_6, %c0_7], %8 {strides = array<i32>} : memref<8x128xf32, #tpu.memory_space<vmem>>, vector<8x128xf32>,
    %c3_i32 = arith.constant 3 : i32
    %10 = arith.cmpi eq, %arg0, %c3_i32 : i32
    %11 = arith.extui %10 : i1 to i32
    %c0_i32_8 = arith.constant 0 : i32
    %12 = arith.cmpi ne, %11, %c0_i32_8 : i32
    scf.if %12 {
      %c0_9 = arith.constant 0 : index
      %c0_10 = arith.constant 0 : index
      %13 = vector.load %arg2[%c0_9, %c0_10] : memref<8x8xf32, #tpu.memory_space<vmem>>, vector<8x8xf32>
      %cst_11 = arith.constant 0.000000e+00 : f32
      %14 = vector.broadcast %cst_11 : f32 to vector<8x8xf32>
      %15 = arith.cmpf ogt, %13, %14 : vector<8x8xf32>
      %cst_12 = arith.constant 0.000000e+00 : f32
      %cst_13 = arith.constant -1.000000e+30 : f32
      %16 = vector.broadcast %cst_12 : f32 to vector<8x8xf32>
      %17 = vector.broadcast %cst_13 : f32 to vector<8x8xf32>
      %18 = arith.select %15, %16, %17 : vector<8x8xi1>, vector<8x8xf32>
      %c0_14 = arith.constant 0 : index
      %c0_15 = arith.constant 0 : index
      %19 = vector.load %arg12[%c0_14, %c0_15] : memref<8x128xf32, #tpu.memory_space<vmem>>, vector<8x128xf32>
      %c0_16 = arith.constant 0 : index
      %c0_17 = arith.constant 0 : index
      %20 = vector.load %arg4[%c0_16, %c0_17] : memref<1x128xf32, #tpu.memory_space<vmem>>, vector<1x128xf32>
      %c0_18 = arith.constant 0 : index
      %c0_19 = arith.constant 0 : index
      %21 = vector.load %arg5[%c0_18, %c0_19] : memref<1x128xf32, #tpu.memory_space<vmem>>, vector<1x128xf32>
      %c0_20 = arith.constant 0 : index
      %c0_21 = arith.constant 0 : index
      %22 = vector.load %arg6[%c0_20, %c0_21] : memref<1x128xf32, #tpu.memory_space<vmem>>, vector<1x128xf32>
      %cst_22 = arith.constant dense<0.000000e+00> : vector<1x8xf32>
      %23 = tpu.matmul %20, %19, %cst_22 {dimension_numbers = #tpu.dot_dimension_numbers<[1], [1], [0], [0], [0, 0, 1, 0], [], []>} : vector<1x128xf32>, vector<8x128xf32>, vector<1x8xf32> -> vector<1x8xf32>
      %cst_23 = arith.constant dense<0.000000e+00> : vector<8x1xf32>
      %24 = tpu.matmul %19, %21, %cst_23 {dimension_numbers = #tpu.dot_dimension_numbers<[1], [1], [0], [0], [0, 0, 1, 0], [], []>} : vector<8x128xf32>, vector<1x128xf32>, vector<8x1xf32> -> vector<8x1xf32>
      %25 = vector.broadcast %24 : vector<8x1xf32> to vector<8x8xf32>
      %26 = vector.broadcast %23 : vector<1x8xf32> to vector<8x8xf32>
      %27 = arith.addf %25, %26 : vector<8x8xf32>
      %cst_24 = arith.constant 0.000000e+00 : f32
      %28 = vector.broadcast %cst_24 : f32 to vector<8x8xf32>
      %29 = arith.cmpf ogt, %27, %28 : vector<8x8xf32>
      %cst_25 = arith.constant 2.000000e-01 : f32
      %30 = vector.broadcast %cst_25 : f32 to vector<8x8xf32>
      %31 = arith.mulf %30, %27 : vector<8x8xf32>
      %32 = arith.select %29, %27, %31 : vector<8x8xi1>, vector<8x8xf32>
      %33 = arith.addf %32, %18 : vector<8x8xf32>
      %cst_26 = arith.constant dense<0xFF800000> : vector<8xf32>
      %34 = vector.multi_reduction <maximumf>, %33, %cst_26 [1] : vector<8x8xf32> to vector<8xf32>
      %35 = vector.shape_cast %34 : vector<8xf32> to vector<8x1xf32>
      %36 = vector.broadcast %35 : vector<8x1xf32> to vector<8x8xf32>
      %37 = arith.subf %33, %36 : vector<8x8xf32>
      %38 = math.exp %37 : vector<8x8xf32>
      %39 = arith.mulf %38, %13 : vector<8x8xf32>
      %cst_27 = arith.constant dense<0.000000e+00> : vector<8xf32>
      %40 = vector.multi_reduction <add>, %39, %cst_27 [1] : vector<8x8xf32> to vector<8xf32>
      %41 = vector.shape_cast %40 : vector<8xf32> to vector<8x1xf32>
      %cst_28 = arith.constant 0.000000e+00 : f32
      %42 = vector.broadcast %cst_28 : f32 to vector<8x1xf32>
      %43 = arith.cmpf ogt, %41, %42 : vector<8x1xf32>
      %44 = tpu.reciprocal %41 {approx = true} : vector<8x1xf32> -> vector<8x1xf32>
      %cst_29 = arith.constant 0.000000e+00 : f32
      %45 = vector.broadcast %cst_29 : f32 to vector<8x1xf32>
      %46 = arith.select %43, %44, %45 : vector<8x1xi1>, vector<8x1xf32>
      %47 = vector.broadcast %46 : vector<8x1xf32> to vector<8x8xf32>
      %48 = arith.mulf %39, %47 : vector<8x8xf32>
      %49 = arith.truncf %48 : vector<8x8xf32> to vector<8x8xbf16>
      %50 = arith.truncf %19 : vector<8x128xf32> to vector<8x128xbf16>
      %cst_30 = arith.constant dense<0.000000e+00> : vector<8x128xf32>
      %51 = tpu.matmul %49, %50, %cst_30 {dimension_numbers = #tpu.dot_dimension_numbers<[1], [0], [0], [1], [0, 0, 1, 1], [], []>} : vector<8x8xbf16>, vector<8x128xbf16>, vector<8x128xf32> -> vector<8x128xf32>
      %52 = vector.broadcast %22 : vector<1x128xf32> to vector<8x128xf32>
      %53 = arith.addf %51, %52 : vector<8x128xf32>
      %cst_31 = arith.constant 0.000000e+00 : f32
      %54 = vector.broadcast %cst_31 : f32 to vector<8x128xf32>
      %55 = arith.maximumf %53, %54 : vector<8x128xf32>
      %56 = arith.truncf %55 : vector<8x128xf32> to vector<8x128xbf16>
      %c0_32 = arith.constant 0 : index
      %c0_33 = arith.constant 0 : index
      %57 = vector.load %arg7[%c0_32, %c0_33] : memref<128x128xbf16, #tpu.memory_space<vmem>>, vector<128x128xbf16>
      %cst_34 = arith.constant dense<0.000000e+00> : vector<8x128xf32>
      %58 = tpu.matmul %56, %57, %cst_34 {dimension_numbers = #tpu.dot_dimension_numbers<[1], [0], [0], [1], [0, 0, 1, 1], [], []>} : vector<8x128xbf16>, vector<128x128xbf16>, vector<8x128xf32> -> vector<8x128xf32>
      %c0_35 = arith.constant 0 : index
      %c0_36 = arith.constant 0 : index
      %59 = vector.load %arg8[%c0_35, %c0_36] : memref<1x128xf32, #tpu.memory_space<vmem>>, vector<1x128xf32>
      %60 = vector.broadcast %59 : vector<1x128xf32> to vector<8x128xf32>
      %61 = arith.addf %58, %60 : vector<8x128xf32>
      %cst_37 = arith.constant 0.000000e+00 : f32
      %62 = vector.broadcast %cst_37 : f32 to vector<8x128xf32>
      %63 = arith.maximumf %61, %62 : vector<8x128xf32>
      %c0_38 = arith.constant 0 : index
      %c0_39 = arith.constant 0 : index
      %64 = vector.load %arg9[%c0_38, %c0_39] : memref<128x2xf32, #tpu.memory_space<vmem>>, vector<128x2xf32>
      %cst_40 = arith.constant dense<0.000000e+00> : vector<8x2xf32>
      %65 = tpu.matmul %63, %64, %cst_40 {dimension_numbers = #tpu.dot_dimension_numbers<[1], [0], [0], [1], [0, 0, 1, 1], [], []>} : vector<8x128xf32>, vector<128x2xf32>, vector<8x2xf32> -> vector<8x2xf32>
      %c0_41 = arith.constant 0 : index
      %c0_42 = arith.constant 0 : index
      %66 = vector.load %arg10[%c0_41, %c0_42] : memref<1x2xf32, #tpu.memory_space<vmem>>, vector<1x2xf32>
      %67 = vector.broadcast %66 : vector<1x2xf32> to vector<8x2xf32>
      %68 = arith.addf %65, %67 : vector<8x2xf32>
      %c0_43 = arith.constant 0 : index
      %c0_44 = arith.constant 0 : index
      %69 = vector.load %arg11[%c0_43, %c0_44] : memref<8x2xf32, #tpu.memory_space<vmem>>, vector<8x2xf32>
      tpu.vector_store %arg11[%c0_43, %c0_44], %68 {strides = array<i32>} : memref<8x2xf32, #tpu.memory_space<vmem>>, vector<8x2xf32>,
    } else {
    }
    return
  }
  func.func @transform_0(%arg0: i32) -> (i32, i32) {
    %c0_i32 = arith.constant 0 : i32
    %c0_i32_0 = arith.constant 0 : i32
    return %c0_i32, %arg0 : i32, i32
  }
  func.func @transform_1(%arg0: i32) -> (i32, i32) {
    %c0_i32 = arith.constant 0 : i32
    %c0_i32_0 = arith.constant 0 : i32
    %c0_i32_1 = arith.constant 0 : i32
    return %c0_i32, %c0_i32_0 : i32, i32
  }
  func.func @transform_2(%arg0: i32) -> (i32, i32) {
    %c0_i32 = arith.constant 0 : i32
    %c0_i32_0 = arith.constant 0 : i32
    return %arg0, %c0_i32 : i32, i32
  }
  func.func @transform_3(%arg0: i32) -> (i32, i32) {
    %c0_i32 = arith.constant 0 : i32
    %c0_i32_0 = arith.constant 0 : i32
    %c0_i32_1 = arith.constant 0 : i32
    return %c0_i32, %c0_i32_0 : i32, i32
  }
  func.func @transform_4(%arg0: i32) -> (i32, i32) {
    %c0_i32 = arith.constant 0 : i32
    %c0_i32_0 = arith.constant 0 : i32
    %c0_i32_1 = arith.constant 0 : i32
    return %c0_i32, %c0_i32_0 : i32, i32
  }
  func.func @transform_5(%arg0: i32) -> (i32, i32) {
    %c0_i32 = arith.constant 0 : i32
    %c0_i32_0 = arith.constant 0 : i32
    %c0_i32_1 = arith.constant 0 : i32
    return %c0_i32, %c0_i32_0 : i32, i32
  }
  func.func @transform_6(%arg0: i32) -> (i32, i32) {
    %c0_i32 = arith.constant 0 : i32
    %c0_i32_0 = arith.constant 0 : i32
    %c0_i32_1 = arith.constant 0 : i32
    return %c0_i32, %c0_i32_0 : i32, i32
  }
  func.func @transform_7(%arg0: i32) -> (i32, i32) {
    %c0_i32 = arith.constant 0 : i32
    %c0_i32_0 = arith.constant 0 : i32
    %c0_i32_1 = arith.constant 0 : i32
    return %c0_i32, %c0_i32_0 : i32, i32
  }
  func.func @transform_8(%arg0: i32) -> (i32, i32) {
    %c0_i32 = arith.constant 0 : i32
    %c0_i32_0 = arith.constant 0 : i32
    %c0_i32_1 = arith.constant 0 : i32
    return %c0_i32, %c0_i32_0 : i32, i32
  }
  func.func @transform_9(%arg0: i32) -> (i32, i32) {
    %c0_i32 = arith.constant 0 : i32
    %c0_i32_0 = arith.constant 0 : i32
    %c0_i32_1 = arith.constant 0 : i32
    return %c0_i32, %c0_i32_0 : i32, i32
  }
  func.func @transform_10(%arg0: i32) -> (i32, i32) {
    %c0_i32 = arith.constant 0 : i32
    %c0_i32_0 = arith.constant 0 : i32
    %c0_i32_1 = arith.constant 0 : i32
    return %c0_i32, %c0_i32_0 : i32, i32
  }
}

</mosaic_0001>

<llo_original>
// kernel: forward.2
$region0: #{forward.2}
  #allocation0 [shape = 'u32[]', space=smem, size = 0x4, offset = 0x4, fixed_abs, tag = 'smem constant byte address 0x4 - core index']
  #allocation1 [shape = 'u32[144,128]{1,0:T(1,128)}', space=vmem, size = 0x12000, scoped, tag = 'internal scratch']
  #allocation2 [shape = 'f32[128,128]{1,0:T(8,128)}', space=vmem, size = 0x10000, scoped, tag = 'scratch operand']
  #allocation3 [shape = 'f32[128,128]{1,0:T(8,128)}', space=vmem, size = 0x10000, scoped, tag = 'scratch operand']
  %s0 = inlined_call_operand.vmem [shape: s32[128,1], index: 0, kind: input, shape index: {}]
  %s1 = inlined_call_operand.vmem [shape: f32[128,128], index: 1, kind: input, shape index: {}]
  %s2 = inlined_call_operand.hbm [shape: f32[256,128], index: 2, kind: input, shape index: {}]
  %s3 = inlined_call_operand.hbm [shape: bf16[8,128,128], index: 3, kind: input, shape index: {}]
  %s4 = inlined_call_operand.vmem [shape: f32[8,1,128], index: 4, kind: input, shape index: {}]
  %s5 = inlined_call_operand.vmem [shape: f32[8,1,128], index: 5, kind: input, shape index: {}]
  %s6 = inlined_call_operand.vmem [shape: f32[8,1,128], index: 6, kind: input, shape index: {}]
  %s7 = inlined_call_operand.hbm [shape: bf16[128,128], index: 7, kind: input, shape index: {}]
  %s8 = inlined_call_operand.vmem [shape: f32[1,128], index: 8, kind: input, shape index: {}]
  %s9 = inlined_call_operand.vmem [shape: f32[128,128], index: 9, kind: output, shape index: {}]
  %s10 = sld [smem:[#allocation0]]
  $region89: #{forward.2} parent=0
    _
  %s12 = ssub.s32 1, %s10
  %s13 = scalar_select 0, %s12, %s10
  $region1: #{forward.2} parent=0
    #allocation4 [shape = 'u8[131072]{0}', space=vmem, size = 0x20000, scoped, tag = 'input window, operand 2, single buffered']
    #allocation5 [shape = 's32[2]{0}', space=sflag, size = 0x8, scoped, tag = 'scoped memory for forward.2']
    #allocation6 [shape = 'u8[65536]{0}', space=vmem, size = 0x10000, scoped, tag = 'input window, operand 3']
    #allocation7 [shape = 's32[2]{0}', space=sflag, size = 0x8, scoped, tag = 'scoped memory for forward.2']
    #allocation8 [shape = 'u8[32768]{0}', space=vmem, size = 0x8000, scoped, tag = 'input window, operand 7, single buffered']
    %14 = vsyncpa [#allocation5], 0
    %15 = vsyncpa [#allocation7], 0
    %s16 = scalar_lea.sflag [#allocation7], 1
    %17 = vsyncpa %s16, 0
    loop: start=0, step=1, limit=10
    $region2: #{forward.2} parent=1 // loop_pre_header
      _
    $region3: #{forward.2} parent=1 // loop_header
      %s19 = sphi 0, %s23
      %p20 = scmp.ge.s32.totalorder %s19, 10
      %s27 = sphi 0, %s27
      %s29 = sphi 0, %s27
      %s30 = sphi 0, %s29
      %s44 = sphi 0, %s30
      %s48 = sphi 0, %s48
      %s50 = sphi 0, %s48
      %s51 = sphi 0, %s50
      %s65 = sphi 0, %s51
      %s69 = sphi 0, %s69
      %s71 = sphi 0, %s69
      %s72 = sphi 0, %s71
      %s86 = sphi 0, %s72
      %s92 = sphi 0, %s94
      %s95 = sphi 0, %s92
      %s96 = sphi 0, %s95
      %s112 = sphi 0, %s96
      %s118 = sphi 0, %s120
      %s121 = sphi 0, %s118
      %s122 = sphi 0, %s121
      %s138 = sphi 0, %s122
      %s144 = sphi 0, %s146
      %s147 = sphi 0, %s144
      %s148 = sphi 0, %s147
      %s164 = sphi 0, %s148
      %s170 = sphi 0, %s172
      %s173 = sphi 0, %s170
      %s174 = sphi 0, %s173
      %s190 = sphi 0, %s174
      %s194 = sphi 0, %s194
      %s196 = sphi 0, %s194
      %s197 = sphi 0, %s196
      %s211 = sphi 0, %s197
      %s215 = sphi 0, %s215
      %s217 = sphi 0, %s215
      %s218 = sphi 0, %s217
      %s232 = sphi 0, %s218
      %s236 = sphi 0, %s236
      %s238 = sphi 0, %s236
      %s239 = sphi 0, %s238
      %s253 = sphi 0, %s239
    $region4: #{forward.2} parent=1 // loop_header_branch
      %22 = sbr.rel (%p20) target = $region8
    $region5: #{forward.2} parent=1 // loop_body
      %s24 = ssub.s32 %s19, 1
      %s25 = ssub.s32 %s19, 2
      %s26 = sadd.s32 %s19, 1
      %s28 = sadd.s32 %s27, 1
      %p31 = scmp.eq.s32.totalorder %s19, 7
      %p32 = scmp.ne.s32.totalorder %s27, %s29
      %p33 = scmp.eq.s32.totalorder %s19, 0
      %p34 = por %p32, %p33
      %p35 = scmp.ne.s32.totalorder %s27, %s29
      %p36 = scmp.eq.s32.totalorder %s24, 7
      %p37 = por %p35, %p36
      %p38 = scmp.ne.s32.totalorder %s29, %s30
      %p39 = scmp.eq.s32.totalorder %s24, 0
      %p40 = por %p38, %p39
      %p41 = scmp.ne.s32.totalorder %s29, %s30
      %p42 = scmp.eq.s32.totalorder %s25, 7
      %p43 = por %p41, %p42
      %p45 = scmp.ne.s32.totalorder %s30, %s44
      %p46 = scmp.eq.s32.totalorder %s25, 0
      %p47 = por %p45, %p46
      %s49 = sadd.s32 %s48, 1
      %p52 = scmp.eq.s32.totalorder %s19, 7
      %p53 = scmp.ne.s32.totalorder %s48, %s50
      %p54 = scmp.eq.s32.totalorder %s19, 0
      %p55 = por %p53, %p54
      %p56 = scmp.ne.s32.totalorder %s48, %s50
      %p57 = scmp.eq.s32.totalorder %s24, 7
      %p58 = por %p56, %p57
      %p59 = scmp.ne.s32.totalorder %s50, %s51
      %p60 = scmp.eq.s32.totalorder %s24, 0
      %p61 = por %p59, %p60
      %p62 = scmp.ne.s32.totalorder %s50, %s51
      %p63 = scmp.eq.s32.totalorder %s25, 7
      %p64 = por %p62, %p63
      %p66 = scmp.ne.s32.totalorder %s51, %s65
      %p67 = scmp.eq.s32.totalorder %s25, 0
      %p68 = por %p66, %p67
      %s70 = sadd.s32 %s69, 1
      %p73 = scmp.eq.s32.totalorder %s19, 7
      %p74 = scmp.ne.s32.totalorder %s69, %s71
      %p75 = scmp.eq.s32.totalorder %s19, 0
      %p76 = por %p74, %p75
      %p77 = scmp.ne.s32.totalorder %s69, %s71
      %p78 = scmp.eq.s32.totalorder %s24, 7
      %p79 = por %p77, %p78
      %p80 = scmp.ne.s32.totalorder %s71, %s72
      %p81 = scmp.eq.s32.totalorder %s24, 0
      %p82 = por %p80, %p81
      %p83 = scmp.ne.s32.totalorder %s71, %s72
      %p84 = scmp.eq.s32.totalorder %s25, 7
      %p85 = por %p83, %p84
      %p87 = scmp.ne.s32.totalorder %s72, %s86
      %p88 = scmp.eq.s32.totalorder %s25, 0
      %p89 = por %p87, %p88
      %s90 = ssub.s32 %s19, %s26
      %p91 = scmp.eq.s32.totalorder %s90, 0
      %s93 = sadd.s32 %s92, 1
      %s94 = scalar_select %p91, %s92, %s93
      %p97 = pneg %p91
      %p98 = scmp.eq.s32.totalorder %s19, 7
      %p99 = por %p97, %p98
      %p100 = scmp.ne.s32.totalorder %s92, %s95
      %p101 = scmp.eq.s32.totalorder %s19, 0
      %p102 = por %p100, %p101
      %p103 = scmp.ne.s32.totalorder %s92, %s95
      %p104 = scmp.eq.s32.totalorder %s24, 7
      %p105 = por %p103, %p104
      %p106 = scmp.ne.s32.totalorder %s95, %s96
      %p107 = scmp.eq.s32.totalorder %s24, 0
      %p108 = por %p106, %p107
      %p109 = scmp.ne.s32.totalorder %s95, %s96
      %p110 = scmp.eq.s32.totalorder %s25, 7
      %p111 = por %p109, %p110
      %p113 = scmp.ne.s32.totalorder %s96, %s112
      %p114 = scmp.eq.s32.totalorder %s25, 0
      %p115 = por %p113, %p114
      %s116 = ssub.s32 %s19, %s26
      %p117 = scmp.eq.s32.totalorder %s116, 0
      %s119 = sadd.s32 %s118, 1
      %s120 = scalar_select %p117, %s118, %s119
      %p123 = pneg %p117
      %p124 = scmp.eq.s32.totalorder %s19, 7
      %p125 = por %p123, %p124
      %p126 = scmp.ne.s32.totalorder %s118, %s121
      %p127 = scmp.eq.s32.totalorder %s19, 0
      %p128 = por %p126, %p127
      %p129 = scmp.ne.s32.totalorder %s118, %s121
      %p130 = scmp.eq.s32.totalorder %s24, 7
      %p131 = por %p129, %p130
      %p132 = scmp.ne.s32.totalorder %s121, %s122
      %p133 = scmp.eq.s32.totalorder %s24, 0
      %p134 = por %p132, %p133
      %p135 = scmp.ne.s32.totalorder %s121, %s122
      %p136 = scmp.eq.s32.totalorder %s25, 7
      %p137 = por %p135, %p136
      %p139 = scmp.ne.s32.totalorder %s122, %s138
      %p140 = scmp.eq.s32.totalorder %s25, 0
      %p141 = por %p139, %p140
      %s142 = ssub.s32 %s19, %s26
      %p143 = scmp.eq.s32.totalorder %s142, 0
      %s145 = sadd.s32 %s144, 1
      %s146 = scalar_select %p143, %s144, %s145
      %p149 = pneg %p143
      %p150 = scmp.eq.s32.totalorder %s19, 7
      %p151 = por %p149, %p150
      %p152 = scmp.ne.s32.totalorder %s144, %s147
      %p153 = scmp.eq.s32.totalorder %s19, 0
      %p154 = por %p152, %p153
      %p155 = scmp.ne.s32.totalorder %s144, %s147
      %p156 = scmp.eq.s32.totalorder %s24, 7
      %p157 = por %p155, %p156
      %p158 = scmp.ne.s32.totalorder %s147, %s148
      %p159 = scmp.eq.s32.totalorder %s24, 0
      %p160 = por %p158, %p159
      %p161 = scmp.ne.s32.totalorder %s147, %s148
      %p162 = scmp.eq.s32.totalorder %s25, 7
      %p163 = por %p161, %p162
      %p165 = scmp.ne.s32.totalorder %s148, %s164
      %p166 = scmp.eq.s32.totalorder %s25, 0
      %p167 = por %p165, %p166
      %s168 = ssub.s32 %s19, %s26
      %p169 = scmp.eq.s32.totalorder %s168, 0
      %s171 = sadd.s32 %s170, 1
      %s172 = scalar_select %p169, %s170, %s171
      %p175 = pneg %p169
      %p176 = scmp.eq.s32.totalorder %s19, 7
      %p177 = por %p175, %p176
      %p178 = scmp.ne.s32.totalorder %s170, %s173
      %p179 = scmp.eq.s32.totalorder %s19, 0
      %p180 = por %p178, %p179
      %p181 = scmp.ne.s32.totalorder %s170, %s173
      %p182 = scmp.eq.s32.totalorder %s24, 7
      %p183 = por %p181, %p182
      %p184 = scmp.ne.s32.totalorder %s173, %s174
      %p185 = scmp.eq.s32.totalorder %s24, 0
      %p186 = por %p184, %p185
      %p187 = scmp.ne.s32.totalorder %s173, %s174
      %p188 = scmp.eq.s32.totalorder %s25, 7
      %p189 = por %p187, %p188
      %p191 = scmp.ne.s32.totalorder %s174, %s190
      %p192 = scmp.eq.s32.totalorder %s25, 0
      %p193 = por %p191, %p192
      %s195 = sadd.s32 %s194, 1
      %p198 = scmp.eq.s32.totalorder %s19, 7
      %p199 = scmp.ne.s32.totalorder %s194, %s196
      %p200 = scmp.eq.s32.totalorder %s19, 0
      %p201 = por %p199, %p200
      %p202 = scmp.ne.s32.totalorder %s194, %s196
      %p203 = scmp.eq.s32.totalorder %s24, 7
      %p204 = por %p202, %p203
      %p205 = scmp.ne.s32.totalorder %s196, %s197
      %p206 = scmp.eq.s32.totalorder %s24, 0
      %p207 = por %p205, %p206
      %p208 = scmp.ne.s32.totalorder %s196, %s197
      %p209 = scmp.eq.s32.totalorder %s25, 7
      %p210 = por %p208, %p209
      %p212 = scmp.ne.s32.totalorder %s197, %s211
      %p213 = scmp.eq.s32.totalorder %s25, 0
      %p214 = por %p212, %p213
      %s216 = sadd.s32 %s215, 1
      %p219 = scmp.eq.s32.totalorder %s19, 7
      %p220 = scmp.ne.s32.totalorder %s215, %s217
      %p221 = scmp.eq.s32.totalorder %s19, 0
      %p222 = por %p220, %p221
      %p223 = scmp.ne.s32.totalorder %s215, %s217
      %p224 = scmp.eq.s32.totalorder %s24, 7
      %p225 = por %p223, %p224
      %p226 = scmp.ne.s32.totalorder %s217, %s218
      %p227 = scmp.eq.s32.totalorder %s24, 0
      %p228 = por %p226, %p227
      %p229 = scmp.ne.s32.totalorder %s217, %s218
      %p230 = scmp.eq.s32.totalorder %s25, 7
      %p231 = por %p229, %p230
      %p233 = scmp.ne.s32.totalorder %s218, %s232
      %p234 = scmp.eq.s32.totalorder %s25, 0
      %p235 = por %p233, %p234
      %s237 = sadd.s32 %s236, 1
      %p240 = scmp.eq.s32.totalorder %s19, 7
      %p241 = scmp.ne.s32.totalorder %s236, %s238
      %p242 = scmp.eq.s32.totalorder %s19, 0
      %p243 = por %p241, %p242
      %p244 = scmp.ne.s32.totalorder %s236, %s238
      %p245 = scmp.eq.s32.totalorder %s24, 7
      %p246 = por %p244, %p245
      %p247 = scmp.ne.s32.totalorder %s238, %s239
      %p248 = scmp.eq.s32.totalorder %s24, 0
      %p249 = por %p247, %p248
      %p250 = scmp.ne.s32.totalorder %s238, %s239
      %p251 = scmp.eq.s32.totalorder %s25, 7
      %p252 = por %p250, %p251
      %p254 = scmp.ne.s32.totalorder %s239, %s253
      %p255 = scmp.eq.s32.totalorder %s25, 0
      %p256 = por %p254, %p255
      %p257 = scmp.le.s32.totalorder 1, %s19
      %p258 = scmp.lt.s32.totalorder %s19, 9
      %p259 = pnand %p257, %p258
      %p260 = pneg %p259
      // Predicated region
      $region9: #{forward.2} parent=5 // pred_check
        _
      $region10: #{forward.2} parent=5 // pred_check_branch
        %262 = sbr.rel (%p259) target = $region12
      $region11: #{forward.2} parent=5 // pred_region
        %s263 = ssub.s32 %s19, 1
        // Predicated region
        $region13: #{forward.2} parent=11 // pred_check
          %p264 = pneg %p40
        $region14: #{forward.2} parent=11 // pred_check_branch
          %266 = sbr.rel (%p264) target = $region16
        $region15: #{forward.2} parent=11 // pred_region
          _
        $region16: #{forward.2} parent=11 // pred_fallthru
          _
        // Predicated region
        $region17: #{forward.2} parent=11 // pred_check
          %p267 = pneg %p61
        $region18: #{forward.2} parent=11 // pred_check_branch
          %269 = sbr.rel (%p267) target = $region20
        $region19: #{forward.2} parent=11 // pred_region
          _
        $region20: #{forward.2} parent=11 // pred_fallthru
          _
        // Predicated region
        $region21: #{forward.2} parent=11 // pred_check
          %p270 = pneg %p82
        $region22: #{forward.2} parent=11 // pred_check_branch
          %272 = sbr.rel (%p270) target = $region24
        $region23: #{forward.2} parent=11 // pred_region
          %s274 = ssub.s32 4096, 4096
          %275 = vsyncadd [#allocation5], %s274
          %s276 = sshll.u32 [#allocation4], 4
          %s277 = int_to_ptr.vmem [resolvable:$true] %s276
          %282 = dma.hbm_to_vmem [thread:$0]  %s2, 4096, %s277, [#allocation5], 128, 128, 8
        $region24: #{forward.2} parent=11 // pred_fallthru
          _
        // Predicated region
        $region25: #{forward.2} parent=11 // pred_check
          %p283 = pneg %p207
        $region26: #{forward.2} parent=11 // pred_check_branch
          %285 = sbr.rel (%p283) target = $region28
        $region27: #{forward.2} parent=11 // pred_region
          %s287 = ssub.s32 1024, 1024
          %288 = vsyncadd [#allocation7], %s287
          %s289 = sshll.u32 [#allocation8], 4
          %s290 = int_to_ptr.vmem [resolvable:$true] %s289
          %295 = dma.hbm_to_vmem [thread:$0]  %s7, 1024, %s290, [#allocation7], 64, 64, 4
        $region28: #{forward.2} parent=11 // pred_fallthru
          _
        // Predicated region
        $region29: #{forward.2} parent=11 // pred_check
          %p296 = pneg %p228
        $region30: #{forward.2} parent=11 // pred_check_branch
          %298 = sbr.rel (%p296) target = $region32
        $region31: #{forward.2} parent=11 // pred_region
          _
        $region32: #{forward.2} parent=11 // pred_fallthru
          _
      $region12: #{forward.2} parent=5 // pred_fallthru
        _
      %p299 = scmp.lt.s32.totalorder %s19, 8
      // Predicated region
      $region33: #{forward.2} parent=5 // pred_check
        %p300 = pneg %p299
      $region34: #{forward.2} parent=5 // pred_check_branch
        %302 = sbr.rel (%p300) target = $region36
      $region35: #{forward.2} parent=5 // pred_region
        // Predicated region
        $region37: #{forward.2} parent=35 // pred_check
          %p303 = pneg %p102
        $region38: #{forward.2} parent=35 // pred_check_branch
          %305 = sbr.rel (%p303) target = $region40
        $region39: #{forward.2} parent=35 // pred_region
          %s306 = sand.u32 %s19, 1
          %s307 = scalar_lea.sflag [#allocation7], %s306
          %s308 = sand.u32 %s92, 1
          %s309 = smul.addr %s308, 64
          %s310 = scalar_lea.vmem [#allocation6], %s309
          %s312 = ssub.s32 1024, 1024
          %313 = vsyncadd %s307, %s312
          %s314 = smul.addr %s19, 16
          %s315 = smul.addr %s314, 64
          %s316 = scalar_lea.hbm %s3, %s315
          %s317 = sshll.u32 %s310, 4
          %s318 = int_to_ptr.vmem [resolvable:$true] %s317
          %323 = dma.hbm_to_vmem [thread:$0]  %s316, 1024, %s318, %s307, 64, 64, 4
        $region40: #{forward.2} parent=35 // pred_fallthru
          _
        // Predicated region
        $region41: #{forward.2} parent=35 // pred_check
          %p324 = pneg %p128
        $region42: #{forward.2} parent=35 // pred_check_branch
          %326 = sbr.rel (%p324) target = $region44
        $region43: #{forward.2} parent=35 // pred_region
          %p327 = scmp.lt.s32.totalorder %s19, 7
          %s328 = scalar_select %p327, %s19, 7
          %s329 = scalar_lea.vmem %s4, %s328
        $region44: #{forward.2} parent=35 // pred_fallthru
          _
        // Predicated region
        $region45: #{forward.2} parent=35 // pred_check
          %p330 = pneg %p154
        $region46: #{forward.2} parent=35 // pred_check_branch
          %332 = sbr.rel (%p330) target = $region48
        $region47: #{forward.2} parent=35 // pred_region
          %p333 = scmp.lt.s32.totalorder %s19, 7
          %s334 = scalar_select %p333, %s19, 7
          %s335 = scalar_lea.vmem %s5, %s334
        $region48: #{forward.2} parent=35 // pred_fallthru
          _
        // Predicated region
        $region49: #{forward.2} parent=35 // pred_check
          %p336 = pneg %p180
        $region50: #{forward.2} parent=35 // pred_check_branch
          %338 = sbr.rel (%p336) target = $region52
        $region51: #{forward.2} parent=35 // pred_region
          %p339 = scmp.lt.s32.totalorder %s19, 7
          %s340 = scalar_select %p339, %s19, 7
          %s341 = scalar_lea.vmem %s6, %s340
        $region52: #{forward.2} parent=35 // pred_fallthru
          _
      $region36: #{forward.2} parent=5 // pred_fallthru
        _
      %p342 = scmp.le.s32.totalorder 1, %s19
      %p343 = scmp.lt.s32.totalorder %s19, 9
      %p344 = pnand %p342, %p343
      %p345 = pneg %p344
      // Predicated region
      $region53: #{forward.2} parent=5 // pred_check
        _
      $region54: #{forward.2} parent=5 // pred_check_branch
        %347 = sbr.rel (%p344) target = $region56
      $region55: #{forward.2} parent=5 // pred_region
        %s348 = ssub.s32 %s19, 1
        // Predicated region
        $region57: #{forward.2} parent=55 // pred_check
          %p349 = pneg %p82
        $region58: #{forward.2} parent=55 // pred_check_branch
          %351 = sbr.rel (%p349) target = $region60
        $region59: #{forward.2} parent=55 // pred_region
          %352 = dma.done [#allocation5], 4096
        $region60: #{forward.2} parent=55 // pred_fallthru
          _
        %s353 = sand.u32 %s24, 1
        %s354 = scalar_lea.sflag [#allocation7], %s353
        %s355 = sand.u32 %s95, 1
        %s356 = smul.addr %s355, 64
        %s357 = scalar_lea.vmem [#allocation6], %s356
        // Predicated region
        $region61: #{forward.2} parent=55 // pred_check
          %p358 = pneg %p108
        $region62: #{forward.2} parent=55 // pred_check_branch
          %360 = sbr.rel (%p358) target = $region64
        $region63: #{forward.2} parent=55 // pred_region
          %361 = dma.done %s354, 1024
        $region64: #{forward.2} parent=55 // pred_fallthru
          _
        // Predicated region
        $region65: #{forward.2} parent=55 // pred_check
          %p362 = pneg %p207
        $region66: #{forward.2} parent=55 // pred_check_branch
          %364 = sbr.rel (%p362) target = $region68
        $region67: #{forward.2} parent=55 // pred_region
          %365 = dma.done [#allocation7], 1024
        $region68: #{forward.2} parent=55 // pred_fallthru
          _
        %p366 = pneg %p40
        %p367 = pneg %p37
        %p368 = pneg %p61
        %p369 = pneg %p58
        %p370 = pneg %p82
        %p371 = pneg %p79
        %s372 = sand.u32 %s24, 1
        %s373 = scalar_lea.sflag [#allocation7], %s372
        %s374 = sand.u32 %s95, 1
        %s375 = smul.addr %s374, 64
        %s376 = scalar_lea.vmem [#allocation6], %s375
        %p377 = pneg %p108
        %p378 = pneg %p105
        %p379 = scmp.lt.s32.totalorder %s24, 7
        %s380 = scalar_select %p379, %s24, 7
        %s381 = scalar_lea.vmem %s4, %s380
        %p382 = pneg %p134
        %p383 = pneg %p131
        %p384 = scmp.lt.s32.totalorder %s24, 7
        %s385 = scalar_select %p384, %s24, 7
        %s386 = scalar_lea.vmem %s5, %s385
        %p387 = pneg %p160
        %p388 = pneg %p157
        %p389 = scmp.lt.s32.totalorder %s24, 7
        %s390 = scalar_select %p389, %s24, 7
        %s391 = scalar_lea.vmem %s6, %s390
        %p392 = pneg %p186
        %p393 = pneg %p183
        %p394 = pneg %p207
        %p395 = pneg %p204
        %p396 = pneg %p228
        %p397 = pneg %p225
        %p398 = pneg %p249
        %p399 = pneg %p246
        %p400 = scmp.lt.s32.totalorder %s24, 7
        %s401 = scalar_select %p400, %s24, 7
        %s402 = scalar_lea.vmem %s4, %s401
        %p403 = scmp.lt.s32.totalorder %s24, 7
        %s404 = scalar_select %p403, %s24, 7
        %s405 = scalar_lea.vmem %s5, %s404
        %p406 = scmp.lt.s32.totalorder %s24, 7
        %s407 = scalar_select %p406, %s24, 7
        %s408 = scalar_lea.vmem %s6, %s407
        %v410 = vld [vmem:[%s1] sm:$0xff]
        %v411 = vld [vmem:[%s1 + $0x8] sm:$0xff]
        %v412 = vld [vmem:[%s1 + $0x10] sm:$0xff]
        %v413 = vld [vmem:[%s1 + $0x18] sm:$0xff]
        %v414 = vld [vmem:[%s1 + $0x20] sm:$0xff]
        %v415 = vld [vmem:[%s1 + $0x28] sm:$0xff]
        %v416 = vld [vmem:[%s1 + $0x30] sm:$0xff]
        %v417 = vld [vmem:[%s1 + $0x38] sm:$0xff]
        %v418 = vld [vmem:[%s1 + $0x40] sm:$0xff]
        %v419 = vld [vmem:[%s1 + $0x48] sm:$0xff]
        %v420 = vld [vmem:[%s1 + $0x50] sm:$0xff]
        %v421 = vld [vmem:[%s1 + $0x58] sm:$0xff]
        %v422 = vld [vmem:[%s1 + $0x60] sm:$0xff]
        %v423 = vld [vmem:[%s1 + $0x68] sm:$0xff]
        %v424 = vld [vmem:[%s1 + $0x70] sm:$0xff]
        %v425 = vld [vmem:[%s1 + $0x78] sm:$0xff]
        %p426 = scmp.eq.s32.totalorder %s24, 0
        // Predicated region
        $region69: #{forward.2} parent=55 // pred_check
          %p427 = pneg %p426
        $region70: #{forward.2} parent=55 // pred_check_branch
          %429 = sbr.rel (%p427) target = $region72
        $region71: #{forward.2} parent=55 // pred_region
          %v430 = vlaneseq
          %v431 = vand.u32 %v430, 127
          %v432 = vadd.s32 %v431, 128
          %v433 = vld [vmem:[%s0] sm:$0xff]
          %v434 = vld [vmem:[%s0 + $0x8] sm:$0xff]
          %v435 = vld [vmem:[%s0 + $0x10] sm:$0xff]
          %v436 = vld [vmem:[%s0 + $0x18] sm:$0xff]
          %v437 = vld [vmem:[%s0 + $0x20] sm:$0xff]
          %v438 = vld [vmem:[%s0 + $0x28] sm:$0xff]
          %v439 = vld [vmem:[%s0 + $0x30] sm:$0xff]
          %v440 = vld [vmem:[%s0 + $0x38] sm:$0xff]
          %v441 = vld [vmem:[%s0 + $0x40] sm:$0xff]
          %v442 = vld [vmem:[%s0 + $0x48] sm:$0xff]
          %v443 = vld [vmem:[%s0 + $0x50] sm:$0xff]
          %v444 = vld [vmem:[%s0 + $0x58] sm:$0xff]
          %v445 = vld [vmem:[%s0 + $0x60] sm:$0xff]
          %v446 = vld [vmem:[%s0 + $0x68] sm:$0xff]
          %v447 = vld [vmem:[%s0 + $0x70] sm:$0xff]
          %v448 = vld [vmem:[%s0 + $0x78] sm:$0xff]
          %449 = vset.pattern.permute.xlu0 0
          %450 = vperm.xlu0 %449, %v433
          %v451 = vpop.permute.xlu0 %450
          %452 = vset.pattern.permute.xlu0 0
          %453 = vperm.xlu0 %452, %v434
          %v454 = vpop.permute.xlu0 %453
          %455 = vset.pattern.permute.xlu0 0
          %456 = vperm.xlu0 %455, %v435
          %v457 = vpop.permute.xlu0 %456
          %458 = vset.pattern.permute.xlu0 0
          %459 = vperm.xlu0 %458, %v436
          %v460 = vpop.permute.xlu0 %459
          %461 = vset.pattern.permute.xlu0 0
          %462 = vperm.xlu0 %461, %v437
          %v463 = vpop.permute.xlu0 %462
          %464 = vset.pattern.permute.xlu0 0
          %465 = vperm.xlu0 %464, %v438
          %v466 = vpop.permute.xlu0 %465
          %467 = vset.pattern.permute.xlu0 0
          %468 = vperm.xlu0 %467, %v439
          %v469 = vpop.permute.xlu0 %468
          %470 = vset.pattern.permute.xlu0 0
          %471 = vperm.xlu0 %470, %v440
          %v472 = vpop.permute.xlu0 %471
          %473 = vset.pattern.permute.xlu0 0
          %474 = vperm.xlu0 %473, %v441
          %v475 = vpop.permute.xlu0 %474
          %476 = vset.pattern.permute.xlu0 0
          %477 = vperm.xlu0 %476, %v442
          %v478 = vpop.permute.xlu0 %477
          %479 = vset.pattern.permute.xlu0 0
          %480 = vperm.xlu0 %479, %v443
          %v481 = vpop.permute.xlu0 %480
          %482 = vset.pattern.permute.xlu0 0
          %483 = vperm.xlu0 %482, %v444
          %v484 = vpop.permute.xlu0 %483
          %485 = vset.pattern.permute.xlu0 0
          %486 = vperm.xlu0 %485, %v445
          %v487 = vpop.permute.xlu0 %486
          %488 = vset.pattern.permute.xlu0 0
          %489 = vperm.xlu0 %488, %v446
          %v490 = vpop.permute.xlu0 %489
          %491 = vset.pattern.permute.xlu0 0
          %492 = vperm.xlu0 %491, %v447
          %v493 = vpop.permute.xlu0 %492
          %494 = vset.pattern.permute.xlu0 0
          %495 = vperm.xlu0 %494, %v448
          %v496 = vpop.permute.xlu0 %495
          %vm497 = vcmp.eq.s32.totalorder %v431, %v451
          %vm498 = vcmp.eq.s32.totalorder %v432, %v451
          %vm499 = vcmp.eq.s32.totalorder %v431, %v454
          %vm500 = vcmp.eq.s32.totalorder %v432, %v454
          %vm501 = vcmp.eq.s32.totalorder %v431, %v457
          %vm502 = vcmp.eq.s32.totalorder %v432, %v457
          %vm503 = vcmp.eq.s32.totalorder %v431, %v460
          %vm504 = vcmp.eq.s32.totalorder %v432, %v460
          %vm505 = vcmp.eq.s32.totalorder %v431, %v463
          %vm506 = vcmp.eq.s32.totalorder %v432, %v463
          %vm507 = vcmp.eq.s32.totalorder %v431, %v466
          %vm508 = vcmp.eq.s32.totalorder %v432, %v466
          %vm509 = vcmp.eq.s32.totalorder %v431, %v469
          %vm510 = vcmp.eq.s32.totalorder %v432, %v469
          %vm511 = vcmp.eq.s32.totalorder %v431, %v472
          %vm512 = vcmp.eq.s32.totalorder %v432, %v472
          %vm513 = vcmp.eq.s32.totalorder %v431, %v475
          %vm514 = vcmp.eq.s32.totalorder %v432, %v475
          %vm515 = vcmp.eq.s32.totalorder %v431, %v478
          %vm516 = vcmp.eq.s32.totalorder %v432, %v478
          %vm517 = vcmp.eq.s32.totalorder %v431, %v481
          %vm518 = vcmp.eq.s32.totalorder %v432, %v481
          %vm519 = vcmp.eq.s32.totalorder %v431, %v484
          %vm520 = vcmp.eq.s32.totalorder %v432, %v484
          %vm521 = vcmp.eq.s32.totalorder %v431, %v487
          %vm522 = vcmp.eq.s32.totalorder %v432, %v487
          %vm523 = vcmp.eq.s32.totalorder %v431, %v490
          %vm524 = vcmp.eq.s32.totalorder %v432, %v490
          %vm525 = vcmp.eq.s32.totalorder %v431, %v493
          %vm526 = vcmp.eq.s32.totalorder %v432, %v493
          %vm527 = vcmp.eq.s32.totalorder %v431, %v496
          %vm528 = vcmp.eq.s32.totalorder %v432, %v496
          %v529 = vsel %vm497, 1, 0
          %v530 = vsel %vm498, 1, 0
          %v531 = vsel %vm499, 1, 0
          %v532 = vsel %vm500, 1, 0
          %v533 = vsel %vm501, 1, 0
          %v534 = vsel %vm502, 1, 0
          %v535 = vsel %vm503, 1, 0
          %v536 = vsel %vm504, 1, 0
          %v537 = vsel %vm505, 1, 0
          %v538 = vsel %vm506, 1, 0
          %v539 = vsel %vm507, 1, 0
          %v540 = vsel %vm508, 1, 0
          %v541 = vsel %vm509, 1, 0
          %v542 = vsel %vm510, 1, 0
          %v543 = vsel %vm511, 1, 0
          %v544 = vsel %vm512, 1, 0
          %v545 = vsel %vm513, 1, 0
          %v546 = vsel %vm514, 1, 0
          %v547 = vsel %vm515, 1, 0
          %v548 = vsel %vm516, 1, 0
          %v549 = vsel %vm517, 1, 0
          %v550 = vsel %vm518, 1, 0
          %v551 = vsel %vm519, 1, 0
          %v552 = vsel %vm520, 1, 0
          %v553 = vsel %vm521, 1, 0
          %v554 = vsel %vm522, 1, 0
          %v555 = vsel %vm523, 1, 0
          %v556 = vsel %vm524, 1, 0
          %v557 = vsel %vm525, 1, 0
          %v558 = vsel %vm526, 1, 0
          %v559 = vsel %vm527, 1, 0
          %v560 = vsel %vm528, 1, 0
          %v561 = vcvt.s32.f32 %v529
          %v562 = vcvt.s32.f32 %v530
          %v563 = vcvt.s32.f32 %v531
          %v564 = vcvt.s32.f32 %v532
          %v565 = vcvt.s32.f32 %v533
          %v566 = vcvt.s32.f32 %v534
          %v567 = vcvt.s32.f32 %v535
          %v568 = vcvt.s32.f32 %v536
          %v569 = vcvt.s32.f32 %v537
          %v570 = vcvt.s32.f32 %v538
          %v571 = vcvt.s32.f32 %v539
          %v572 = vcvt.s32.f32 %v540
          %v573 = vcvt.s32.f32 %v541
          %v574 = vcvt.s32.f32 %v542
          %v575 = vcvt.s32.f32 %v543
          %v576 = vcvt.s32.f32 %v544
          %v577 = vcvt.s32.f32 %v545
          %v578 = vcvt.s32.f32 %v546
          %v579 = vcvt.s32.f32 %v547
          %v580 = vcvt.s32.f32 %v548
          %v581 = vcvt.s32.f32 %v549
          %v582 = vcvt.s32.f32 %v550
          %v583 = vcvt.s32.f32 %v551
          %v584 = vcvt.s32.f32 %v552
          %v585 = vcvt.s32.f32 %v553
          %v586 = vcvt.s32.f32 %v554
          %v587 = vcvt.s32.f32 %v555
          %v588 = vcvt.s32.f32 %v556
          %v589 = vcvt.s32.f32 %v557
          %v590 = vcvt.s32.f32 %v558
          %v591 = vcvt.s32.f32 %v559
          %v592 = vcvt.s32.f32 %v560
          %v593 = vld [vmem:[#allocation4] sm:$0xff]
          %v594 = vld [vmem:[#allocation4 + $0x8] sm:$0xff]
          %v595 = vld [vmem:[#allocation4 + $0x10] sm:$0xff]
          %v596 = vld [vmem:[#allocation4 + $0x18] sm:$0xff]
          %v597 = vld [vmem:[#allocation4 + $0x20] sm:$0xff]
          %v598 = vld [vmem:[#allocation4 + $0x28] sm:$0xff]
          %v599 = vld [vmem:[#allocation4 + $0x30] sm:$0xff]
          %v600 = vld [vmem:[#allocation4 + $0x38] sm:$0xff]
          %v601 = vld [vmem:[#allocation4 + $0x40] sm:$0xff]
          %v602 = vld [vmem:[#allocation4 + $0x48] sm:$0xff]
          %v603 = vld [vmem:[#allocation4 + $0x50] sm:$0xff]
          %v604 = vld [vmem:[#allocation4 + $0x58] sm:$0xff]
          %v605 = vld [vmem:[#allocation4 + $0x60] sm:$0xff]
          %v606 = vld [vmem:[#allocation4 + $0x68] sm:$0xff]
          %v607 = vld [vmem:[#allocation4 + $0x70] sm:$0xff]
          %v608 = vld [vmem:[#allocation4 + $0x78] sm:$0xff]
          %v609 = vld [vmem:[#allocation4 + $0x80] sm:$0xff]
          %v610 = vld [vmem:[#allocation4 + $0x88] sm:$0xff]
          %v611 = vld [vmem:[#allocation4 + $0x90] sm:$0xff]
          %v612 = vld [vmem:[#allocation4 + $0x98] sm:$0xff]
          %v613 = vld [vmem:[#allocation4 + $0xa0] sm:$0xff]
          %v614 = vld [vmem:[#allocation4 + $0xa8] sm:$0xff]
          %v615 = vld [vmem:[#allocation4 + $0xb0] sm:$0xff]
          %v616 = vld [vmem:[#allocation4 + $0xb8] sm:$0xff]
          %v617 = vld [vmem:[#allocation4 + $0xc0] sm:$0xff]
          %v618 = vld [vmem:[#allocation4 + $0xc8] sm:$0xff]
          %v619 = vld [vmem:[#allocation4 + $0xd0] sm:$0xff]
          %v620 = vld [vmem:[#allocation4 + $0xd8] sm:$0xff]
          %v621 = vld [vmem:[#allocation4 + $0xe0] sm:$0xff]
          %v622 = vld [vmem:[#allocation4 + $0xe8] sm:$0xff]
          %v623 = vld [vmem:[#allocation4 + $0xf0] sm:$0xff]
          %v624 = vld [vmem:[#allocation4 + $0xf8] sm:$0xff]
          %625 = vmatprep.subr.mxu0 0.0
          %626 = vmatpush1.msra.mxu0 %v608
          %627 = vmatprep.subr.mxu0 0.0
          %628 = vmatpush1.msra.mxu0 %v607
          %629 = vmatprep.subr.mxu0 0.0
          %630 = vmatpush1.msra.mxu0 %v606
          %631 = vmatprep.subr.mxu0 0.0
          %632 = vmatpush1.msra.mxu0 %v605
          %633 = vmatprep.subr.mxu0 0.0
          %634 = vmatpush1.msra.mxu0 %v604
          %635 = vmatprep.subr.mxu0 0.0
          %636 = vmatpush1.msra.mxu0 %v603
          %637 = vmatprep.subr.mxu0 0.0
          %638 = vmatpush1.msra.mxu0 %v602
          %639 = vmatprep.subr.mxu0 0.0
          %640 = vmatpush1.msra.mxu0 %v601
          %641 = vmatprep.subr.mxu0 0.0
          %642 = vmatpush1.msra.mxu0 %v600
          %643 = vmatprep.subr.mxu0 0.0
          %644 = vmatpush1.msra.mxu0 %v599
          %645 = vmatprep.subr.mxu0 0.0
          %646 = vmatpush1.msra.mxu0 %v598
          %647 = vmatprep.subr.mxu0 0.0
          %648 = vmatpush1.msra.mxu0 %v597
          %649 = vmatprep.subr.mxu0 0.0
          %650 = vmatpush1.msra.mxu0 %v596
          %651 = vmatprep.subr.mxu0 0.0
          %652 = vmatpush1.msra.mxu0 %v595
          %653 = vmatprep.subr.mxu0 0.0
          %654 = vmatpush1.msra.mxu0 %v594
          %655 = vmatprep.subr.mxu0 0.0
          %656 = vmatpush1.msra.mxu0 %v593
          %657 = vmatprep.subr.mxu0 0.0
          %658 = vmatpush2.msra.mxu0 %v624
          %659 = vmatprep.subr.mxu0 0.0
          %660 = vmatpush2.msra.mxu0 %v623
          %661 = vmatprep.subr.mxu0 0.0
          %662 = vmatpush2.msra.mxu0 %v622
          %663 = vmatprep.subr.mxu0 0.0
          %664 = vmatpush2.msra.mxu0 %v621
          %665 = vmatprep.subr.mxu0 0.0
          %666 = vmatpush2.msra.mxu0 %v620
          %667 = vmatprep.subr.mxu0 0.0
          %668 = vmatpush2.msra.mxu0 %v619
          %669 = vmatprep.subr.mxu0 0.0
          %670 = vmatpush2.msra.mxu0 %v618
          %671 = vmatprep.subr.mxu0 0.0
          %672 = vmatpush2.msra.mxu0 %v617
          %673 = vmatprep.subr.mxu0 0.0
          %674 = vmatpush2.msra.mxu0 %v616
          %675 = vmatprep.subr.mxu0 0.0
          %676 = vmatpush2.msra.mxu0 %v615
          %677 = vmatprep.subr.mxu0 0.0
          %678 = vmatpush2.msra.mxu0 %v614
          %679 = vmatprep.subr.mxu0 0.0
          %680 = vmatpush2.msra.mxu0 %v613
          %681 = vmatprep.subr.mxu0 0.0
          %682 = vmatpush2.msra.mxu0 %v612
          %683 = vmatprep.subr.mxu0 0.0
          %684 = vmatpush2.msra.mxu0 %v611
          %685 = vmatprep.subr.mxu0 0.0
          %686 = vmatpush2.msra.mxu0 %v610
          %687 = vmatprep.subr.mxu0 0.0
          %688 = vmatpush2.msra.mxu0 %v609
          %689 = vmatprep.mubr.f32.mxu0 %v562
          %690 = vmatmul.mubr.f32.gmra.mxu0 %v561
          %v691 = vpop.f32.mrf.mxu0
          %v692 = vadd.f32 0.0, %v691
          %v693 = vpop.f32.mrf.mxu0
          %694 = vmatprep.mubr.f32.mxu0 %v564
          %695 = vmatmul.mubr.f32.gmra.mxu0 %v563
          %v696 = vpop.f32.mrf.mxu0
          %v697 = vadd.f32 0.0, %v696
          %v698 = vpop.f32.mrf.mxu0
          %699 = vmatprep.mubr.f32.mxu0 %v566
          %700 = vmatmul.mubr.f32.gmra.mxu0 %v565
          %v701 = vpop.f32.mrf.mxu0
          %v702 = vadd.f32 0.0, %v701
          %v703 = vpop.f32.mrf.mxu0
          %704 = vmatprep.mubr.f32.mxu0 %v568
          %705 = vmatmul.mubr.f32.gmra.mxu0 %v567
          %v706 = vpop.f32.mrf.mxu0
          %v707 = vadd.f32 0.0, %v706
          %v708 = vpop.f32.mrf.mxu0
          %709 = vmatprep.mubr.f32.mxu0 %v570
          %710 = vmatmul.mubr.f32.gmra.mxu0 %v569
          %v711 = vpop.f32.mrf.mxu0
          %v712 = vadd.f32 0.0, %v711
          %v713 = vpop.f32.mrf.mxu0
          %714 = vmatprep.mubr.f32.mxu0 %v572
          %715 = vmatmul.mubr.f32.gmra.mxu0 %v571
          %v716 = vpop.f32.mrf.mxu0
          %v717 = vadd.f32 0.0, %v716
          %v718 = vpop.f32.mrf.mxu0
          %719 = vmatprep.mubr.f32.mxu0 %v574
          %720 = vmatmul.mubr.f32.gmra.mxu0 %v573
          %v721 = vpop.f32.mrf.mxu0
          %v722 = vadd.f32 0.0, %v721
          %v723 = vpop.f32.mrf.mxu0
          %724 = vmatprep.mubr.f32.mxu0 %v576
          %725 = vmatmul.mubr.f32.gmra.mxu0 %v575
          %v726 = vpop.f32.mrf.mxu0
          %v727 = vadd.f32 0.0, %v726
          %v728 = vpop.f32.mrf.mxu0
          %729 = vmatprep.mubr.f32.mxu0 %v578
          %730 = vmatmul.mubr.f32.gmra.mxu0 %v577
          %v731 = vpop.f32.mrf.mxu0
          %v732 = vadd.f32 0.0, %v731
          %v733 = vpop.f32.mrf.mxu0
          %734 = vmatprep.mubr.f32.mxu0 %v580
          %735 = vmatmul.mubr.f32.gmra.mxu0 %v579
          %v736 = vpop.f32.mrf.mxu0
          %v737 = vadd.f32 0.0, %v736
          %v738 = vpop.f32.mrf.mxu0
          %739 = vmatprep.mubr.f32.mxu0 %v582
          %740 = vmatmul.mubr.f32.gmra.mxu0 %v581
          %v741 = vpop.f32.mrf.mxu0
          %v742 = vadd.f32 0.0, %v741
          %v743 = vpop.f32.mrf.mxu0
          %744 = vmatprep.mubr.f32.mxu0 %v584
          %745 = vmatmul.mubr.f32.gmra.mxu0 %v583
          %v746 = vpop.f32.mrf.mxu0
          %v747 = vadd.f32 0.0, %v746
          %v748 = vpop.f32.mrf.mxu0
          %749 = vmatprep.mubr.f32.mxu0 %v586
          %750 = vmatmul.mubr.f32.gmra.mxu0 %v585
          %v751 = vpop.f32.mrf.mxu0
          %v752 = vadd.f32 0.0, %v751
          %v753 = vpop.f32.mrf.mxu0
          %754 = vmatprep.mubr.f32.mxu0 %v588
          %755 = vmatmul.mubr.f32.gmra.mxu0 %v587
          %v756 = vpop.f32.mrf.mxu0
          %v757 = vadd.f32 0.0, %v756
          %v758 = vpop.f32.mrf.mxu0
          %759 = vmatprep.mubr.f32.mxu0 %v590
          %760 = vmatmul.mubr.f32.gmra.mxu0 %v589
          %v761 = vpop.f32.mrf.mxu0
          %v762 = vadd.f32 0.0, %v761
          %v763 = vpop.f32.mrf.mxu0
          %764 = vmatprep.mubr.f32.mxu0 %v592
          %765 = vmatmul.mubr.f32.gmra.mxu0 %v591
          %v766 = vpop.f32.mrf.mxu0
          %v767 = vadd.f32 0.0, %v766
          %v768 = vpop.f32.mrf.mxu0
          %769 = vdwg.mxu0
          %v770 = vmax.f32 %v692, 0.0
          %v771 = vmax.f32 %v697, 0.0
          %v772 = vmax.f32 %v702, 0.0
          %v773 = vmax.f32 %v707, 0.0
          %v774 = vmax.f32 %v712, 0.0
          %v775 = vmax.f32 %v717, 0.0
          %v776 = vmax.f32 %v722, 0.0
          %v777 = vmax.f32 %v727, 0.0
          %v778 = vmax.f32 %v732, 0.0
          %v779 = vmax.f32 %v737, 0.0
          %v780 = vmax.f32 %v742, 0.0
          %v781 = vmax.f32 %v747, 0.0
          %v782 = vmax.f32 %v752, 0.0
          %v783 = vmax.f32 %v757, 0.0
          %v784 = vmax.f32 %v762, 0.0
          %v785 = vmax.f32 %v767, 0.0
          %786 = vst [vmem:[#allocation2] sm:$0xff] %v770
          %787 = vst [vmem:[#allocation2 + $0x8] sm:$0xff] %v771
          %788 = vst [vmem:[#allocation2 + $0x10] sm:$0xff] %v772
          %789 = vst [vmem:[#allocation2 + $0x18] sm:$0xff] %v773
          %790 = vst [vmem:[#allocation2 + $0x20] sm:$0xff] %v774
          %791 = vst [vmem:[#allocation2 + $0x28] sm:$0xff] %v775
          %792 = vst [vmem:[#allocation2 + $0x30] sm:$0xff] %v776
          %793 = vst [vmem:[#allocation2 + $0x38] sm:$0xff] %v777
          %794 = vst [vmem:[#allocation2 + $0x40] sm:$0xff] %v778
          %795 = vst [vmem:[#allocation2 + $0x48] sm:$0xff] %v779
          %796 = vst [vmem:[#allocation2 + $0x50] sm:$0xff] %v780
          %797 = vst [vmem:[#allocation2 + $0x58] sm:$0xff] %v781
          %798 = vst [vmem:[#allocation2 + $0x60] sm:$0xff] %v782
          %799 = vst [vmem:[#allocation2 + $0x68] sm:$0xff] %v783
          %800 = vst [vmem:[#allocation2 + $0x70] sm:$0xff] %v784
          %801 = vst [vmem:[#allocation2 + $0x78] sm:$0xff] %v785
          %vm802 = vcmp.gt.f32.partialorder %v410, 0.0
          %vm803 = vcmp.gt.f32.partialorder %v411, 0.0
          %vm804 = vcmp.gt.f32.partialorder %v412, 0.0
          %vm805 = vcmp.gt.f32.partialorder %v413, 0.0
          %vm806 = vcmp.gt.f32.partialorder %v414, 0.0
          %vm807 = vcmp.gt.f32.partialorder %v415, 0.0
          %vm808 = vcmp.gt.f32.partialorder %v416, 0.0
          %vm809 = vcmp.gt.f32.partialorder %v417, 0.0
          %vm810 = vcmp.gt.f32.partialorder %v418, 0.0
          %vm811 = vcmp.gt.f32.partialorder %v419, 0.0
          %vm812 = vcmp.gt.f32.partialorder %v420, 0.0
          %vm813 = vcmp.gt.f32.partialorder %v421, 0.0
          %vm814 = vcmp.gt.f32.partialorder %v422, 0.0
          %vm815 = vcmp.gt.f32.partialorder %v423, 0.0
          %vm816 = vcmp.gt.f32.partialorder %v424, 0.0
          %vm817 = vcmp.gt.f32.partialorder %v425, 0.0
          %v818 = vsel %vm802, 0.0, -1e+30
          %v819 = vsel %vm803, 0.0, -1e+30
          %v820 = vsel %vm804, 0.0, -1e+30
          %v821 = vsel %vm805, 0.0, -1e+30
          %v822 = vsel %vm806, 0.0, -1e+30
          %v823 = vsel %vm807, 0.0, -1e+30
          %v824 = vsel %vm808, 0.0, -1e+30
          %v825 = vsel %vm809, 0.0, -1e+30
          %v826 = vsel %vm810, 0.0, -1e+30
          %v827 = vsel %vm811, 0.0, -1e+30
          %v828 = vsel %vm812, 0.0, -1e+30
          %v829 = vsel %vm813, 0.0, -1e+30
          %v830 = vsel %vm814, 0.0, -1e+30
          %v831 = vsel %vm815, 0.0, -1e+30
          %v832 = vsel %vm816, 0.0, -1e+30
          %v833 = vsel %vm817, 0.0, -1e+30
          %834 = vst [vmem:[#allocation3] sm:$0xff] %v818
          %835 = vst [vmem:[#allocation3 + $0x8] sm:$0xff] %v819
          %836 = vst [vmem:[#allocation3 + $0x10] sm:$0xff] %v820
          %837 = vst [vmem:[#allocation3 + $0x18] sm:$0xff] %v821
          %838 = vst [vmem:[#allocation3 + $0x20] sm:$0xff] %v822
          %839 = vst [vmem:[#allocation3 + $0x28] sm:$0xff] %v823
          %840 = vst [vmem:[#allocation3 + $0x30] sm:$0xff] %v824
          %841 = vst [vmem:[#allocation3 + $0x38] sm:$0xff] %v825
          %842 = vst [vmem:[#allocation3 + $0x40] sm:$0xff] %v826
          %843 = vst [vmem:[#allocation3 + $0x48] sm:$0xff] %v827
          %844 = vst [vmem:[#allocation3 + $0x50] sm:$0xff] %v828
          %845 = vst [vmem:[#allocation3 + $0x58] sm:$0xff] %v829
          %846 = vst [vmem:[#allocation3 + $0x60] sm:$0xff] %v830
          %847 = vst [vmem:[#allocation3 + $0x68] sm:$0xff] %v831
          %848 = vst [vmem:[#allocation3 + $0x70] sm:$0xff] %v832
          %849 = vst [vmem:[#allocation3 + $0x78] sm:$0xff] %v833
        $region72: #{forward.2} parent=55 // pred_fallthru
          _
        %v850 = vld [vmem:[#allocation2] sm:$0xff]
        %v851 = vld [vmem:[#allocation2 + $0x8] sm:$0xff]
        %v852 = vld [vmem:[#allocation2 + $0x10] sm:$0xff]
        %v853 = vld [vmem:[#allocation2 + $0x18] sm:$0xff]
        %v854 = vld [vmem:[#allocation2 + $0x20] sm:$0xff]
        %v855 = vld [vmem:[#allocation2 + $0x28] sm:$0xff]
        %v856 = vld [vmem:[#allocation2 + $0x30] sm:$0xff]
        %v857 = vld [vmem:[#allocation2 + $0x38] sm:$0xff]
        %v858 = vld [vmem:[#allocation2 + $0x40] sm:$0xff]
        %v859 = vld [vmem:[#allocation2 + $0x48] sm:$0xff]
        %v860 = vld [vmem:[#allocation2 + $0x50] sm:$0xff]
        %v861 = vld [vmem:[#allocation2 + $0x58] sm:$0xff]
        %v862 = vld [vmem:[#allocation2 + $0x60] sm:$0xff]
        %v863 = vld [vmem:[#allocation2 + $0x68] sm:$0xff]
        %v864 = vld [vmem:[#allocation2 + $0x70] sm:$0xff]
        %v865 = vld [vmem:[#allocation2 + $0x78] sm:$0xff]
        %v866 = vld [vmem:[#allocation3] sm:$0xff]
        %v867 = vld [vmem:[#allocation3 + $0x8] sm:$0xff]
        %v868 = vld [vmem:[#allocation3 + $0x10] sm:$0xff]
        %v869 = vld [vmem:[#allocation3 + $0x18] sm:$0xff]
        %v870 = vld [vmem:[#allocation3 + $0x20] sm:$0xff]
        %v871 = vld [vmem:[#allocation3 + $0x28] sm:$0xff]
        %v872 = vld [vmem:[#allocation3 + $0x30] sm:$0xff]
        %v873 = vld [vmem:[#allocation3 + $0x38] sm:$0xff]
        %v874 = vld [vmem:[#allocation3 + $0x40] sm:$0xff]
        %v875 = vld [vmem:[#allocation3 + $0x48] sm:$0xff]
        %v876 = vld [vmem:[#allocation3 + $0x50] sm:$0xff]
        %v877 = vld [vmem:[#allocation3 + $0x58] sm:$0xff]
        %v878 = vld [vmem:[#allocation3 + $0x60] sm:$0xff]
        %v879 = vld [vmem:[#allocation3 + $0x68] sm:$0xff]
        %v880 = vld [vmem:[#allocation3 + $0x70] sm:$0xff]
        %v881 = vld [vmem:[#allocation3 + $0x78] sm:$0xff]
        %v882 = vld [vmem:[%s357] sm:$0xf]
        %v883 = vld [vmem:[%s357 + $0x4] sm:$0xf]
        %v884 = vld [vmem:[%s357 + $0x8] sm:$0xf]
        %v885 = vld [vmem:[%s357 + $0xc] sm:$0xf]
        %v886 = vld [vmem:[%s357 + $0x10] sm:$0xf]
        %v887 = vld [vmem:[%s357 + $0x14] sm:$0xf]
        %v888 = vld [vmem:[%s357 + $0x18] sm:$0xf]
        %v889 = vld [vmem:[%s357 + $0x1c] sm:$0xf]
        %v890 = vld [vmem:[%s357 + $0x20] sm:$0xf]
        %v891 = vld [vmem:[%s357 + $0x24] sm:$0xf]
        %v892 = vld [vmem:[%s357 + $0x28] sm:$0xf]
        %v893 = vld [vmem:[%s357 + $0x2c] sm:$0xf]
        %v894 = vld [vmem:[%s357 + $0x30] sm:$0xf]
        %v895 = vld [vmem:[%s357 + $0x34] sm:$0xf]
        %v896 = vld [vmem:[%s357 + $0x38] sm:$0xf]
        %v897 = vld [vmem:[%s357 + $0x3c] sm:$0xf]
        %v898 = vld [vmem:[%s402] sm:$0x1]
        %v899 = vld [vmem:[%s405] sm:$0x1]
        %v900 = vld [vmem:[%s408] sm:$0x1]
        %v901 = vpack.c.bf16 %v851, %v850
        %v902 = vpack.c.bf16 %v853, %v852
        %v903 = vpack.c.bf16 %v855, %v854
        %v904 = vpack.c.bf16 %v857, %v856
        %v905 = vpack.c.bf16 %v859, %v858
        %v906 = vpack.c.bf16 %v861, %v860
        %v907 = vpack.c.bf16 %v863, %v862
        %v908 = vpack.c.bf16 %v865, %v864
        %v925 = vunpack.c.l.b16 %v882
        %v926 = vunpack.c.l.b16 %v883
        %v927 = vunpack.c.l.b16 %v884
        %v928 = vunpack.c.l.b16 %v885
        %v929 = vunpack.c.l.b16 %v886
        %v930 = vunpack.c.l.b16 %v887
        %v931 = vunpack.c.l.b16 %v888
        %v932 = vunpack.c.l.b16 %v889
        %v933 = vunpack.c.l.b16 %v890
        %v934 = vunpack.c.l.b16 %v891
        %v935 = vunpack.c.l.b16 %v892
        %v936 = vunpack.c.l.b16 %v893
        %v937 = vunpack.c.l.b16 %v894
        %v938 = vunpack.c.l.b16 %v895
        %v939 = vunpack.c.l.b16 %v896
        %v940 = vunpack.c.l.b16 %v897
        %v941 = vpack.c.b16 %v926, %v925
        %v942 = vpack.c.b16 %v928, %v927
        %v943 = vpack.c.b16 %v930, %v929
        %v944 = vpack.c.b16 %v932, %v931
        %v945 = vpack.c.b16 %v934, %v933
        %v946 = vpack.c.b16 %v936, %v935
        %v947 = vpack.c.b16 %v938, %v937
        %v948 = vpack.c.b16 %v940, %v939
        %957 = vmatprep.subr.bf16.mxu0 0
        %958 = vmatpush1.bf16.msra.mxu0 %v948
        %959 = vmatprep.subr.bf16.mxu0 0
        %960 = vmatpush1.bf16.msra.mxu0 %v947
        %961 = vmatprep.subr.bf16.mxu0 0
        %962 = vmatpush1.bf16.msra.mxu0 %v946
        %963 = vmatprep.subr.bf16.mxu0 0
        %964 = vmatpush1.bf16.msra.mxu0 %v945
        %965 = vmatprep.subr.bf16.mxu0 0
        %966 = vmatpush1.bf16.msra.mxu0 %v944
        %967 = vmatprep.subr.bf16.mxu0 0
        %968 = vmatpush1.bf16.msra.mxu0 %v943
        %969 = vmatprep.subr.bf16.mxu0 0
        %970 = vmatpush1.bf16.msra.mxu0 %v942
        %971 = vmatprep.subr.bf16.mxu0 0
        %972 = vmatpush1.bf16.msra.mxu0 %v941
        %973 = vmatprep.subr.bf16.mxu0 0
        %974 = vmatpush2.bf16.msra.mxu0 0
        %975 = vmatprep.subr.bf16.mxu0 0
        %976 = vmatpush2.bf16.msra.mxu0 0
        %977 = vmatprep.subr.bf16.mxu0 0
        %978 = vmatpush2.bf16.msra.mxu0 0
        %979 = vmatprep.subr.bf16.mxu0 0
        %980 = vmatpush2.bf16.msra.mxu0 0
        %981 = vmatprep.subr.bf16.mxu0 0
        %982 = vmatpush2.bf16.msra.mxu0 0
        %983 = vmatprep.subr.bf16.mxu0 0
        %984 = vmatpush2.bf16.msra.mxu0 0
        %985 = vmatprep.subr.bf16.mxu0 0
        %986 = vmatpush2.bf16.msra.mxu0 0
        %987 = vmatprep.subr.bf16.mxu0 0
        %988 = vmatpush2.bf16.msra.mxu0 0
        %989 = vmatprep.mubr.bf16.mxu0 0
        %990 = vmatmul.mubr.bf16.gmra.mxu0 %v901
        %v991 = vpop.f32.mrf.mxu0
        %v992 = vadd.f32 0.0, %v991
        %v993 = vpop.f32.mrf.mxu0
        %v994 = vpop.f32.mrf.mxu0
        %v995 = vadd.f32 0.0, %v994
        %v996 = vpop.f32.mrf.mxu0
        %997 = vmatprep.mubr.bf16.mxu0 0
        %998 = vmatmul.mubr.bf16.gmra.mxu0 %v902
        %v999 = vpop.f32.mrf.mxu0
        %v1000 = vadd.f32 0.0, %v999
        %v1001 = vpop.f32.mrf.mxu0
        %v1002 = vpop.f32.mrf.mxu0
        %v1003 = vadd.f32 0.0, %v1002
        %v1004 = vpop.f32.mrf.mxu0
        %1005 = vmatprep.mubr.bf16.mxu0 0
        %1006 = vmatmul.mubr.bf16.gmra.mxu0 %v903
        %v1007 = vpop.f32.mrf.mxu0
        %v1008 = vadd.f32 0.0, %v1007
        %v1009 = vpop.f32.mrf.mxu0
        %v1010 = vpop.f32.mrf.mxu0
        %v1011 = vadd.f32 0.0, %v1010
        %v1012 = vpop.f32.mrf.mxu0
        %1013 = vmatprep.mubr.bf16.mxu0 0
        %1014 = vmatmul.mubr.bf16.gmra.mxu0 %v904
        %v1015 = vpop.f32.mrf.mxu0
        %v1016 = vadd.f32 0.0, %v1015
        %v1017 = vpop.f32.mrf.mxu0
        %v1018 = vpop.f32.mrf.mxu0
        %v1019 = vadd.f32 0.0, %v1018
        %v1020 = vpop.f32.mrf.mxu0
        %1021 = vmatprep.mubr.bf16.mxu0 0
        %1022 = vmatmul.mubr.bf16.gmra.mxu0 %v905
        %v1023 = vpop.f32.mrf.mxu0
        %v1024 = vadd.f32 0.0, %v1023
        %v1025 = vpop.f32.mrf.mxu0
        %v1026 = vpop.f32.mrf.mxu0
        %v1027 = vadd.f32 0.0, %v1026
        %v1028 = vpop.f32.mrf.mxu0
        %1029 = vmatprep.mubr.bf16.mxu0 0
        %1030 = vmatmul.mubr.bf16.gmra.mxu0 %v906
        %v1031 = vpop.f32.mrf.mxu0
        %v1032 = vadd.f32 0.0, %v1031
        %v1033 = vpop.f32.mrf.mxu0
        %v1034 = vpop.f32.mrf.mxu0
        %v1035 = vadd.f32 0.0, %v1034
        %v1036 = vpop.f32.mrf.mxu0
        %1037 = vmatprep.mubr.bf16.mxu0 0
        %1038 = vmatmul.mubr.bf16.gmra.mxu0 %v907
        %v1039 = vpop.f32.mrf.mxu0
        %v1040 = vadd.f32 0.0, %v1039
        %v1041 = vpop.f32.mrf.mxu0
        %v1042 = vpop.f32.mrf.mxu0
        %v1043 = vadd.f32 0.0, %v1042
        %v1044 = vpop.f32.mrf.mxu0
        %1045 = vmatprep.mubr.bf16.mxu0 0
        %1046 = vmatmul.mubr.bf16.gmra.mxu0 %v908
        %v1047 = vpop.f32.mrf.mxu0
        %v1048 = vadd.f32 0.0, %v1047
        %v1049 = vpop.f32.mrf.mxu0
        %v1050 = vpop.f32.mrf.mxu0
        %v1051 = vadd.f32 0.0, %v1050
        %v1052 = vpop.f32.mrf.mxu0
        %1053 = vdwg.mxu0
        %1054 = vmatprep.subr.mxu0 0.0
        %1055 = vmatpush1.xpose.msra.mxu0 %v1051
        %1056 = vmatprep.subr.mxu0 0.0
        %1057 = vmatpush1.xpose.msra.mxu0 %v1048
        %1058 = vmatprep.subr.mxu0 0.0
        %1059 = vmatpush1.xpose.msra.mxu0 %v1043
        %1060 = vmatprep.subr.mxu0 0.0
        %1061 = vmatpush1.xpose.msra.mxu0 %v1040
        %1062 = vmatprep.subr.mxu0 0.0
        %1063 = vmatpush1.xpose.msra.mxu0 %v1035
        %1064 = vmatprep.subr.mxu0 0.0
        %1065 = vmatpush1.xpose.msra.mxu0 %v1032
        %1066 = vmatprep.subr.mxu0 0.0
        %1067 = vmatpush1.xpose.msra.mxu0 %v1027
        %1068 = vmatprep.subr.mxu0 0.0
        %1069 = vmatpush1.xpose.msra.mxu0 %v1024
        %1070 = vmatprep.subr.mxu0 0.0
        %1071 = vmatpush1.xpose.msra.mxu0 %v1019
        %1072 = vmatprep.subr.mxu0 0.0
        %1073 = vmatpush1.xpose.msra.mxu0 %v1016
        %1074 = vmatprep.subr.mxu0 0.0
        %1075 = vmatpush1.xpose.msra.mxu0 %v1011
        %1076 = vmatprep.subr.mxu0 0.0
        %1077 = vmatpush1.xpose.msra.mxu0 %v1008
        %1078 = vmatprep.subr.mxu0 0.0
        %1079 = vmatpush1.xpose.msra.mxu0 %v1003
        %1080 = vmatprep.subr.mxu0 0.0
        %1081 = vmatpush1.xpose.msra.mxu0 %v1000
        %1082 = vmatprep.subr.mxu0 0.0
        %1083 = vmatpush1.xpose.msra.mxu0 %v995
        %1084 = vmatprep.subr.mxu0 0.0
        %1085 = vmatpush1.xpose.msra.mxu0 %v992
        %1086 = vmatprep.subr.mxu0 0.0
        %1087 = vmatpush2.xpose.msra.mxu0 0.0
        %1088 = vmatprep.subr.mxu0 0.0
        %1089 = vmatpush2.xpose.msra.mxu0 0.0
        %1090 = vmatprep.subr.mxu0 0.0
        %1091 = vmatpush2.xpose.msra.mxu0 0.0
        %1092 = vmatprep.subr.mxu0 0.0
        %1093 = vmatpush2.xpose.msra.mxu0 0.0
        %1094 = vmatprep.subr.mxu0 0.0
        %1095 = vmatpush2.xpose.msra.mxu0 0.0
        %1096 = vmatprep.subr.mxu0 0.0
        %1097 = vmatpush2.xpose.msra.mxu0 0.0
        %1098 = vmatprep.subr.mxu0 0.0
        %1099 = vmatpush2.xpose.msra.mxu0 0.0
        %1100 = vmatprep.subr.mxu0 0.0
        %1101 = vmatpush2.xpose.msra.mxu0 0.0
        %1102 = vmatprep.subr.mxu0 0.0
        %1103 = vmatpush2.xpose.msra.mxu0 0.0
        %1104 = vmatprep.subr.mxu0 0.0
        %1105 = vmatpush2.xpose.msra.mxu0 0.0
        %1106 = vmatprep.subr.mxu0 0.0
        %1107 = vmatpush2.xpose.msra.mxu0 0.0
        %1108 = vmatprep.subr.mxu0 0.0
        %1109 = vmatpush2.xpose.msra.mxu0 0.0
        %1110 = vmatprep.subr.mxu0 0.0
        %1111 = vmatpush2.xpose.msra.mxu0 0.0
        %1112 = vmatprep.subr.mxu0 0.0
        %1113 = vmatpush2.xpose.msra.mxu0 0.0
        %1114 = vmatprep.subr.mxu0 0.0
        %1115 = vmatpush2.xpose.msra.mxu0 0.0
        %1116 = vmatprep.subr.mxu0 0.0
        %1117 = vmatpush2.xpose.msra.mxu0 0.0
        %1118 = vmatprep.mubr.f32.mxu0 0.0
        %1119 = vmatmul.mubr.f32.gmra.mxu0 %v898
        %v1120 = vpop.f32.mrf.mxu0
        %v1121 = vadd.f32 0.0, %v1120
        %v1122 = vpop.f32.mrf.mxu0
        %1123 = vdwg.mxu0
        %v1125 = vlaneseq
        %v1126 = vshrl.u32 %v1125, 7
        %v1127 = vsub.s32 0, %v1126
        %v1128 = vrot.slane %v899, %v1127
        %v1130 = vmul.f32 %v992, %v1128
        %v1131 = vmul.f32 %v995, %v1128
        %v1132 = vmul.f32 %v1000, %v1128
        %v1133 = vmul.f32 %v1003, %v1128
        %v1134 = vmul.f32 %v1008, %v1128
        %v1135 = vmul.f32 %v1011, %v1128
        %v1136 = vmul.f32 %v1016, %v1128
        %v1137 = vmul.f32 %v1019, %v1128
        %v1138 = vmul.f32 %v1024, %v1128
        %v1139 = vmul.f32 %v1027, %v1128
        %v1140 = vmul.f32 %v1032, %v1128
        %v1141 = vmul.f32 %v1035, %v1128
        %v1142 = vmul.f32 %v1040, %v1128
        %v1143 = vmul.f32 %v1043, %v1128
        %v1144 = vmul.f32 %v1048, %v1128
        %v1145 = vmul.f32 %v1051, %v1128
        %1146 = vadd.xlane.f32.xlu0 %v1130
        %v1147 = vpop.xlane.xlu0 %1146
        %1148 = vadd.xlane.f32.xlu0 %v1131
        %v1149 = vpop.xlane.xlu0 %1148
        %1150 = vadd.xlane.f32.xlu0 %v1132
        %v1151 = vpop.xlane.xlu0 %1150
        %1152 = vadd.xlane.f32.xlu0 %v1133
        %v1153 = vpop.xlane.xlu0 %1152
        %1154 = vadd.xlane.f32.xlu0 %v1134
        %v1155 = vpop.xlane.xlu0 %1154
        %1156 = vadd.xlane.f32.xlu0 %v1135
        %v1157 = vpop.xlane.xlu0 %1156
        %1158 = vadd.xlane.f32.xlu0 %v1136
        %v1159 = vpop.xlane.xlu0 %1158
        %1160 = vadd.xlane.f32.xlu0 %v1137
        %v1161 = vpop.xlane.xlu0 %1160
        %1162 = vadd.xlane.f32.xlu0 %v1138
        %v1163 = vpop.xlane.xlu0 %1162
        %1164 = vadd.xlane.f32.xlu0 %v1139
        %v1165 = vpop.xlane.xlu0 %1164
        %1166 = vadd.xlane.f32.xlu0 %v1140
        %v1167 = vpop.xlane.xlu0 %1166
        %1168 = vadd.xlane.f32.xlu0 %v1141
        %v1169 = vpop.xlane.xlu0 %1168
        %1170 = vadd.xlane.f32.xlu0 %v1142
        %v1171 = vpop.xlane.xlu0 %1170
        %1172 = vadd.xlane.f32.xlu0 %v1143
        %v1173 = vpop.xlane.xlu0 %1172
        %1174 = vadd.xlane.f32.xlu0 %v1144
        %v1175 = vpop.xlane.xlu0 %1174
        %1176 = vadd.xlane.f32.xlu0 %v1145
        %v1177 = vpop.xlane.xlu0 %1176
        %v1178 = vlaneseq
        %v1179 = vshrl.u32 %v1178, 7
        %v1180 = vsub.s32 0, %v1179
        %v1181 = vrot.slane %v1121, %v1180
        %v1182 = vadd.f32 %v1147, %v1181
        %v1183 = vadd.f32 %v1149, %v1181
        %v1184 = vadd.f32 %v1151, %v1181
        %v1185 = vadd.f32 %v1153, %v1181
        %v1186 = vadd.f32 %v1155, %v1181
        %v1187 = vadd.f32 %v1157, %v1181
        %v1188 = vadd.f32 %v1159, %v1181
        %v1189 = vadd.f32 %v1161, %v1181
        %v1190 = vadd.f32 %v1163, %v1181
        %v1191 = vadd.f32 %v1165, %v1181
        %v1192 = vadd.f32 %v1167, %v1181
        %v1193 = vadd.f32 %v1169, %v1181
        %v1194 = vadd.f32 %v1171, %v1181
        %v1195 = vadd.f32 %v1173, %v1181
        %v1196 = vadd.f32 %v1175, %v1181
        %v1197 = vadd.f32 %v1177, %v1181
        %vm1198 = vcmp.gt.f32.partialorder %v1182, 0.0
        %vm1199 = vcmp.gt.f32.partialorder %v1183, 0.0
        %vm1200 = vcmp.gt.f32.partialorder %v1184, 0.0
        %vm1201 = vcmp.gt.f32.partialorder %v1185, 0.0
        %vm1202 = vcmp.gt.f32.partialorder %v1186, 0.0
        %vm1203 = vcmp.gt.f32.partialorder %v1187, 0.0
        %vm1204 = vcmp.gt.f32.partialorder %v1188, 0.0
        %vm1205 = vcmp.gt.f32.partialorder %v1189, 0.0
        %vm1206 = vcmp.gt.f32.partialorder %v1190, 0.0
        %vm1207 = vcmp.gt.f32.partialorder %v1191, 0.0
        %vm1208 = vcmp.gt.f32.partialorder %v1192, 0.0
        %vm1209 = vcmp.gt.f32.partialorder %v1193, 0.0
        %vm1210 = vcmp.gt.f32.partialorder %v1194, 0.0
        %vm1211 = vcmp.gt.f32.partialorder %v1195, 0.0
        %vm1212 = vcmp.gt.f32.partialorder %v1196, 0.0
        %vm1213 = vcmp.gt.f32.partialorder %v1197, 0.0
        %v1214 = vmul.f32 %v1182, 0.2
        %v1215 = vmul.f32 %v1183, 0.2
        %v1216 = vmul.f32 %v1184, 0.2
        %v1217 = vmul.f32 %v1185, 0.2
        %v1218 = vmul.f32 %v1186, 0.2
        %v1219 = vmul.f32 %v1187, 0.2
        %v1220 = vmul.f32 %v1188, 0.2
        %v1221 = vmul.f32 %v1189, 0.2
        %v1222 = vmul.f32 %v1190, 0.2
        %v1223 = vmul.f32 %v1191, 0.2
        %v1224 = vmul.f32 %v1192, 0.2
        %v1225 = vmul.f32 %v1193, 0.2
        %v1226 = vmul.f32 %v1194, 0.2
        %v1227 = vmul.f32 %v1195, 0.2
        %v1228 = vmul.f32 %v1196, 0.2
        %v1229 = vmul.f32 %v1197, 0.2
        %v1230 = vsel %vm1198, %v1182, %v1214
        %v1231 = vsel %vm1199, %v1183, %v1215
        %v1232 = vsel %vm1200, %v1184, %v1216
        %v1233 = vsel %vm1201, %v1185, %v1217
        %v1234 = vsel %vm1202, %v1186, %v1218
        %v1235 = vsel %vm1203, %v1187, %v1219
        %v1236 = vsel %vm1204, %v1188, %v1220
        %v1237 = vsel %vm1205, %v1189, %v1221
        %v1238 = vsel %vm1206, %v1190, %v1222
        %v1239 = vsel %vm1207, %v1191, %v1223
        %v1240 = vsel %vm1208, %v1192, %v1224
        %v1241 = vsel %vm1209, %v1193, %v1225
        %v1242 = vsel %vm1210, %v1194, %v1226
        %v1243 = vsel %vm1211, %v1195, %v1227
        %v1244 = vsel %vm1212, %v1196, %v1228
        %v1245 = vsel %vm1213, %v1197, %v1229
        %v1246 = vadd.f32 %v1230, %v866
        %v1247 = vadd.f32 %v1231, %v867
        %v1248 = vadd.f32 %v1232, %v868
        %v1249 = vadd.f32 %v1233, %v869
        %v1250 = vadd.f32 %v1234, %v870
        %v1251 = vadd.f32 %v1235, %v871
        %v1252 = vadd.f32 %v1236, %v872
        %v1253 = vadd.f32 %v1237, %v873
        %v1254 = vadd.f32 %v1238, %v874
        %v1255 = vadd.f32 %v1239, %v875
        %v1256 = vadd.f32 %v1240, %v876
        %v1257 = vadd.f32 %v1241, %v877
        %v1258 = vadd.f32 %v1242, %v878
        %v1259 = vadd.f32 %v1243, %v879
        %v1260 = vadd.f32 %v1244, %v880
        %v1261 = vadd.f32 %v1245, %v881
        %1262 = vmax.xlane.f32.xlu0 %v1246
        %v1263 = vpop.xlane.xlu0 %1262
        %1264 = vmax.xlane.f32.xlu0 %v1247
        %v1265 = vpop.xlane.xlu0 %1264
        %1266 = vmax.xlane.f32.xlu0 %v1248
        %v1267 = vpop.xlane.xlu0 %1266
        %1268 = vmax.xlane.f32.xlu0 %v1249
        %v1269 = vpop.xlane.xlu0 %1268
        %1270 = vmax.xlane.f32.xlu0 %v1250
        %v1271 = vpop.xlane.xlu0 %1270
        %1272 = vmax.xlane.f32.xlu0 %v1251
        %v1273 = vpop.xlane.xlu0 %1272
        %1274 = vmax.xlane.f32.xlu0 %v1252
        %v1275 = vpop.xlane.xlu0 %1274
        %1276 = vmax.xlane.f32.xlu0 %v1253
        %v1277 = vpop.xlane.xlu0 %1276
        %1278 = vmax.xlane.f32.xlu0 %v1254
        %v1279 = vpop.xlane.xlu0 %1278
        %1280 = vmax.xlane.f32.xlu0 %v1255
        %v1281 = vpop.xlane.xlu0 %1280
        %1282 = vmax.xlane.f32.xlu0 %v1256
        %v1283 = vpop.xlane.xlu0 %1282
        %1284 = vmax.xlane.f32.xlu0 %v1257
        %v1285 = vpop.xlane.xlu0 %1284
        %1286 = vmax.xlane.f32.xlu0 %v1258
        %v1287 = vpop.xlane.xlu0 %1286
        %1288 = vmax.xlane.f32.xlu0 %v1259
        %v1289 = vpop.xlane.xlu0 %1288
        %1290 = vmax.xlane.f32.xlu0 %v1260
        %v1291 = vpop.xlane.xlu0 %1290
        %1292 = vmax.xlane.f32.xlu0 %v1261
        %v1293 = vpop.xlane.xlu0 %1292
        %v1294 = vsub.f32 %v1246, %v1263
        %v1295 = vsub.f32 %v1247, %v1265
        %v1296 = vsub.f32 %v1248, %v1267
        %v1297 = vsub.f32 %v1249, %v1269
        %v1298 = vsub.f32 %v1250, %v1271
        %v1299 = vsub.f32 %v1251, %v1273
        %v1300 = vsub.f32 %v1252, %v1275
        %v1301 = vsub.f32 %v1253, %v1277
        %v1302 = vsub.f32 %v1254, %v1279
        %v1303 = vsub.f32 %v1255, %v1281
        %v1304 = vsub.f32 %v1256, %v1283
        %v1305 = vsub.f32 %v1257, %v1285
        %v1306 = vsub.f32 %v1258, %v1287
        %v1307 = vsub.f32 %v1259, %v1289
        %v1308 = vsub.f32 %v1260, %v1291
        %v1309 = vsub.f32 %v1261, %v1293
        %v1310 = vmul.f32 %v1294, 1.442695
        %v1311 = vpow.pop %v1310
        %v1312 = vmul.f32 %v1295, 1.442695
        %v1313 = vpow.pop %v1312
        %v1314 = vmul.f32 %v1296, 1.442695
        %v1315 = vpow.pop %v1314
        %v1316 = vmul.f32 %v1297, 1.442695
        %v1317 = vpow.pop %v1316
        %v1318 = vmul.f32 %v1298, 1.442695
        %v1319 = vpow.pop %v1318
        %v1320 = vmul.f32 %v1299, 1.442695
        %v1321 = vpow.pop %v1320
        %v1322 = vmul.f32 %v1300, 1.442695
        %v1323 = vpow.pop %v1322
        %v1324 = vmul.f32 %v1301, 1.442695
        %v1325 = vpow.pop %v1324
        %v1326 = vmul.f32 %v1302, 1.442695
        %v1327 = vpow.pop %v1326
        %v1328 = vmul.f32 %v1303, 1.442695
        %v1329 = vpow.pop %v1328
        %v1330 = vmul.f32 %v1304, 1.442695
        %v1331 = vpow.pop %v1330
        %v1332 = vmul.f32 %v1305, 1.442695
        %v1333 = vpow.pop %v1332
        %v1334 = vmul.f32 %v1306, 1.442695
        %v1335 = vpow.pop %v1334
        %v1336 = vmul.f32 %v1307, 1.442695
        %v1337 = vpow.pop %v1336
        %v1338 = vmul.f32 %v1308, 1.442695
        %v1339 = vpow.pop %v1338
        %v1340 = vmul.f32 %v1309, 1.442695
        %v1341 = vpow.pop %v1340
        %v1342 = vmul.f32 %v1311, %v410
        %v1343 = vmul.f32 %v1313, %v411
        %v1344 = vmul.f32 %v1315, %v412
        %v1345 = vmul.f32 %v1317, %v413
        %v1346 = vmul.f32 %v1319, %v414
        %v1347 = vmul.f32 %v1321, %v415
        %v1348 = vmul.f32 %v1323, %v416
        %v1349 = vmul.f32 %v1325, %v417
        %v1350 = vmul.f32 %v1327, %v418
        %v1351 = vmul.f32 %v1329, %v419
        %v1352 = vmul.f32 %v1331, %v420
        %v1353 = vmul.f32 %v1333, %v421
        %v1354 = vmul.f32 %v1335, %v422
        %v1355 = vmul.f32 %v1337, %v423
        %v1356 = vmul.f32 %v1339, %v424
        %v1357 = vmul.f32 %v1341, %v425
        %1358 = vadd.xlane.f32.xlu0 %v1342
        %v1359 = vpop.xlane.xlu0 %1358
        %1360 = vadd.xlane.f32.xlu0 %v1343
        %v1361 = vpop.xlane.xlu0 %1360
        %1362 = vadd.xlane.f32.xlu0 %v1344
        %v1363 = vpop.xlane.xlu0 %1362
        %1364 = vadd.xlane.f32.xlu0 %v1345
        %v1365 = vpop.xlane.xlu0 %1364
        %1366 = vadd.xlane.f32.xlu0 %v1346
        %v1367 = vpop.xlane.xlu0 %1366
        %1368 = vadd.xlane.f32.xlu0 %v1347
        %v1369 = vpop.xlane.xlu0 %1368
        %1370 = vadd.xlane.f32.xlu0 %v1348
        %v1371 = vpop.xlane.xlu0 %1370
        %1372 = vadd.xlane.f32.xlu0 %v1349
        %v1373 = vpop.xlane.xlu0 %1372
        %1374 = vadd.xlane.f32.xlu0 %v1350
        %v1375 = vpop.xlane.xlu0 %1374
        %1376 = vadd.xlane.f32.xlu0 %v1351
        %v1377 = vpop.xlane.xlu0 %1376
        %1378 = vadd.xlane.f32.xlu0 %v1352
        %v1379 = vpop.xlane.xlu0 %1378
        %1380 = vadd.xlane.f32.xlu0 %v1353
        %v1381 = vpop.xlane.xlu0 %1380
        %1382 = vadd.xlane.f32.xlu0 %v1354
        %v1383 = vpop.xlane.xlu0 %1382
        %1384 = vadd.xlane.f32.xlu0 %v1355
        %v1385 = vpop.xlane.xlu0 %1384
        %1386 = vadd.xlane.f32.xlu0 %v1356
        %v1387 = vpop.xlane.xlu0 %1386
        %1388 = vadd.xlane.f32.xlu0 %v1357
        %v1389 = vpop.xlane.xlu0 %1388
        %vm1390 = vcmp.gt.f32.partialorder %v1359, 0.0
        %vm1391 = vcmp.gt.f32.partialorder %v1361, 0.0
        %vm1392 = vcmp.gt.f32.partialorder %v1363, 0.0
        %vm1393 = vcmp.gt.f32.partialorder %v1365, 0.0
        %vm1394 = vcmp.gt.f32.partialorder %v1367, 0.0
        %vm1395 = vcmp.gt.f32.partialorder %v1369, 0.0
        %vm1396 = vcmp.gt.f32.partialorder %v1371, 0.0
        %vm1397 = vcmp.gt.f32.partialorder %v1373, 0.0
        %vm1398 = vcmp.gt.f32.partialorder %v1375, 0.0
        %vm1399 = vcmp.gt.f32.partialorder %v1377, 0.0
        %vm1400 = vcmp.gt.f32.partialorder %v1379, 0.0
        %vm1401 = vcmp.gt.f32.partialorder %v1381, 0.0
        %vm1402 = vcmp.gt.f32.partialorder %v1383, 0.0
        %vm1403 = vcmp.gt.f32.partialorder %v1385, 0.0
        %vm1404 = vcmp.gt.f32.partialorder %v1387, 0.0
        %vm1405 = vcmp.gt.f32.partialorder %v1389, 0.0
        %v1406 = vrcp.pop %v1359
        %v1407 = vrcp.pop %v1361
        %v1408 = vrcp.pop %v1363
        %v1409 = vrcp.pop %v1365
        %v1410 = vrcp.pop %v1367
        %v1411 = vrcp.pop %v1369
        %v1412 = vrcp.pop %v1371
        %v1413 = vrcp.pop %v1373
        %v1414 = vrcp.pop %v1375
        %v1415 = vrcp.pop %v1377
        %v1416 = vrcp.pop %v1379
        %v1417 = vrcp.pop %v1381
        %v1418 = vrcp.pop %v1383
        %v1419 = vrcp.pop %v1385
        %v1420 = vrcp.pop %v1387
        %v1421 = vrcp.pop %v1389
        %v1422 = vsel %vm1390, %v1406, 0.0
        %v1423 = vsel %vm1391, %v1407, 0.0
        %v1424 = vsel %vm1392, %v1408, 0.0
        %v1425 = vsel %vm1393, %v1409, 0.0
        %v1426 = vsel %vm1394, %v1410, 0.0
        %v1427 = vsel %vm1395, %v1411, 0.0
        %v1428 = vsel %vm1396, %v1412, 0.0
        %v1429 = vsel %vm1397, %v1413, 0.0
        %v1430 = vsel %vm1398, %v1414, 0.0
        %v1431 = vsel %vm1399, %v1415, 0.0
        %v1432 = vsel %vm1400, %v1416, 0.0
        %v1433 = vsel %vm1401, %v1417, 0.0
        %v1434 = vsel %vm1402, %v1418, 0.0
        %v1435 = vsel %vm1403, %v1419, 0.0
        %v1436 = vsel %vm1404, %v1420, 0.0
        %v1437 = vsel %vm1405, %v1421, 0.0
        %v1438 = vmul.f32 %v1342, %v1422
        %v1439 = vmul.f32 %v1343, %v1423
        %v1440 = vmul.f32 %v1344, %v1424
        %v1441 = vmul.f32 %v1345, %v1425
        %v1442 = vmul.f32 %v1346, %v1426
        %v1443 = vmul.f32 %v1347, %v1427
        %v1444 = vmul.f32 %v1348, %v1428
        %v1445 = vmul.f32 %v1349, %v1429
        %v1446 = vmul.f32 %v1350, %v1430
        %v1447 = vmul.f32 %v1351, %v1431
        %v1448 = vmul.f32 %v1352, %v1432
        %v1449 = vmul.f32 %v1353, %v1433
        %v1450 = vmul.f32 %v1354, %v1434
        %v1451 = vmul.f32 %v1355, %v1435
        %v1452 = vmul.f32 %v1356, %v1436
        %v1453 = vmul.f32 %v1357, %v1437
        %v1454 = vpack.c.bf16 %v1439, %v1438
        %v1455 = vpack.c.bf16 %v1441, %v1440
        %v1456 = vpack.c.bf16 %v1443, %v1442
        %v1457 = vpack.c.bf16 %v1445, %v1444
        %v1458 = vpack.c.bf16 %v1447, %v1446
        %v1459 = vpack.c.bf16 %v1449, %v1448
        %v1460 = vpack.c.bf16 %v1451, %v1450
        %v1461 = vpack.c.bf16 %v1453, %v1452
        %v1462 = vpack.c.bf16 %v995, %v992
        %v1463 = vpack.c.bf16 %v1003, %v1000
        %v1464 = vpack.c.bf16 %v1011, %v1008
        %v1465 = vpack.c.bf16 %v1019, %v1016
        %v1466 = vpack.c.bf16 %v1027, %v1024
        %v1467 = vpack.c.bf16 %v1035, %v1032
        %v1468 = vpack.c.bf16 %v1043, %v1040
        %v1469 = vpack.c.bf16 %v1051, %v1048
        %v1471 = vlaneseq
        %v1472 = vshrl.u32 %v1471, 7
        %v1473 = vsub.s32 0, %v1472
        %v1474 = vrot.slane %v900, %v1473
        %1476 = vmatprep.subr.bf16.mxu0 0
        %1477 = vmatpush1.bf16.msra.mxu0 %v1469
        %1478 = vmatprep.subr.bf16.mxu0 0
        %1479 = vmatpush1.bf16.msra.mxu0 %v1468
        %1480 = vmatprep.subr.bf16.mxu0 0
        %1481 = vmatpush1.bf16.msra.mxu0 %v1467
        %1482 = vmatprep.subr.bf16.mxu0 0
        %1483 = vmatpush1.bf16.msra.mxu0 %v1466
        %1484 = vmatprep.subr.bf16.mxu0 0
        %1485 = vmatpush1.bf16.msra.mxu0 %v1465
        %1486 = vmatprep.subr.bf16.mxu0 0
        %1487 = vmatpush1.bf16.msra.mxu0 %v1464
        %1488 = vmatprep.subr.bf16.mxu0 0
        %1489 = vmatpush1.bf16.msra.mxu0 %v1463
        %1490 = vmatprep.subr.bf16.mxu0 0
        %1491 = vmatpush1.bf16.msra.mxu0 %v1462
        %1492 = vmatprep.subr.bf16.mxu0 0
        %1493 = vmatpush2.bf16.msra.mxu0 0
        %1494 = vmatprep.subr.bf16.mxu0 0
        %1495 = vmatpush2.bf16.msra.mxu0 0
        %1496 = vmatprep.subr.bf16.mxu0 0
        %1497 = vmatpush2.bf16.msra.mxu0 0
        %1498 = vmatprep.subr.bf16.mxu0 0
        %1499 = vmatpush2.bf16.msra.mxu0 0
        %1500 = vmatprep.subr.bf16.mxu0 0
        %1501 = vmatpush2.bf16.msra.mxu0 0
        %1502 = vmatprep.subr.bf16.mxu0 0
        %1503 = vmatpush2.bf16.msra.mxu0 0
        %1504 = vmatprep.subr.bf16.mxu0 0
        %1505 = vmatpush2.bf16.msra.mxu0 0
        %1506 = vmatprep.subr.bf16.mxu0 0
        %1507 = vmatpush2.bf16.msra.mxu0 0
        %1508 = vmatprep.mubr.bf16.mxu0 0
        %1509 = vmatmul.mubr.bf16.gmra.mxu0 %v1454
        %v1510 = vpop.f32.mrf.mxu0
        %v1511 = vadd.f32 %v1474, %v1510
        %v1512 = vpop.f32.mrf.mxu0
        %v1513 = vpop.f32.mrf.mxu0
        %v1514 = vadd.f32 %v1474, %v1513
        %v1515 = vpop.f32.mrf.mxu0
        %1516 = vmatprep.mubr.bf16.mxu0 0
        %1517 = vmatmul.mubr.bf16.gmra.mxu0 %v1455
        %v1518 = vpop.f32.mrf.mxu0
        %v1519 = vadd.f32 %v1474, %v1518
        %v1520 = vpop.f32.mrf.mxu0
        %v1521 = vpop.f32.mrf.mxu0
        %v1522 = vadd.f32 %v1474, %v1521
        %v1523 = vpop.f32.mrf.mxu0
        %1524 = vmatprep.mubr.bf16.mxu0 0
        %1525 = vmatmul.mubr.bf16.gmra.mxu0 %v1456
        %v1526 = vpop.f32.mrf.mxu0
        %v1527 = vadd.f32 %v1474, %v1526
        %v1528 = vpop.f32.mrf.mxu0
        %v1529 = vpop.f32.mrf.mxu0
        %v1530 = vadd.f32 %v1474, %v1529
        %v1531 = vpop.f32.mrf.mxu0
        %1532 = vmatprep.mubr.bf16.mxu0 0
        %1533 = vmatmul.mubr.bf16.gmra.mxu0 %v1457
        %v1534 = vpop.f32.mrf.mxu0
        %v1535 = vadd.f32 %v1474, %v1534
        %v1536 = vpop.f32.mrf.mxu0
        %v1537 = vpop.f32.mrf.mxu0
        %v1538 = vadd.f32 %v1474, %v1537
        %v1539 = vpop.f32.mrf.mxu0
        %1540 = vmatprep.mubr.bf16.mxu0 0
        %1541 = vmatmul.mubr.bf16.gmra.mxu0 %v1458
        %v1542 = vpop.f32.mrf.mxu0
        %v1543 = vadd.f32 %v1474, %v1542
        %v1544 = vpop.f32.mrf.mxu0
        %v1545 = vpop.f32.mrf.mxu0
        %v1546 = vadd.f32 %v1474, %v1545
        %v1547 = vpop.f32.mrf.mxu0
        %1548 = vmatprep.mubr.bf16.mxu0 0
        %1549 = vmatmul.mubr.bf16.gmra.mxu0 %v1459
        %v1550 = vpop.f32.mrf.mxu0
        %v1551 = vadd.f32 %v1474, %v1550
        %v1552 = vpop.f32.mrf.mxu0
        %v1553 = vpop.f32.mrf.mxu0
        %v1554 = vadd.f32 %v1474, %v1553
        %v1555 = vpop.f32.mrf.mxu0
        %1556 = vmatprep.mubr.bf16.mxu0 0
        %1557 = vmatmul.mubr.bf16.gmra.mxu0 %v1460
        %v1558 = vpop.f32.mrf.mxu0
        %v1559 = vadd.f32 %v1474, %v1558
        %v1560 = vpop.f32.mrf.mxu0
        %v1561 = vpop.f32.mrf.mxu0
        %v1562 = vadd.f32 %v1474, %v1561
        %v1563 = vpop.f32.mrf.mxu0
        %1564 = vmatprep.mubr.bf16.mxu0 0
        %1565 = vmatmul.mubr.bf16.gmra.mxu0 %v1461
        %v1566 = vpop.f32.mrf.mxu0
        %v1567 = vadd.f32 %v1474, %v1566
        %v1568 = vpop.f32.mrf.mxu0
        %v1569 = vpop.f32.mrf.mxu0
        %v1570 = vadd.f32 %v1474, %v1569
        %v1571 = vpop.f32.mrf.mxu0
        %1572 = vdwg.mxu0
        %v1573 = vmax.f32 %v1511, 0.0
        %v1574 = vmax.f32 %v1514, 0.0
        %v1575 = vmax.f32 %v1519, 0.0
        %v1576 = vmax.f32 %v1522, 0.0
        %v1577 = vmax.f32 %v1527, 0.0
        %v1578 = vmax.f32 %v1530, 0.0
        %v1579 = vmax.f32 %v1535, 0.0
        %v1580 = vmax.f32 %v1538, 0.0
        %v1581 = vmax.f32 %v1543, 0.0
        %v1582 = vmax.f32 %v1546, 0.0
        %v1583 = vmax.f32 %v1551, 0.0
        %v1584 = vmax.f32 %v1554, 0.0
        %v1585 = vmax.f32 %v1559, 0.0
        %v1586 = vmax.f32 %v1562, 0.0
        %v1587 = vmax.f32 %v1567, 0.0
        %v1588 = vmax.f32 %v1570, 0.0
        %1589 = vst [vmem:[#allocation2] sm:$0xff] %v1573
        %1590 = vst [vmem:[#allocation2 + $0x8] sm:$0xff] %v1574
        %1591 = vst [vmem:[#allocation2 + $0x10] sm:$0xff] %v1575
        %1592 = vst [vmem:[#allocation2 + $0x18] sm:$0xff] %v1576
        %1593 = vst [vmem:[#allocation2 + $0x20] sm:$0xff] %v1577
        %1594 = vst [vmem:[#allocation2 + $0x28] sm:$0xff] %v1578
        %1595 = vst [vmem:[#allocation2 + $0x30] sm:$0xff] %v1579
        %1596 = vst [vmem:[#allocation2 + $0x38] sm:$0xff] %v1580
        %1597 = vst [vmem:[#allocation2 + $0x40] sm:$0xff] %v1581
        %1598 = vst [vmem:[#allocation2 + $0x48] sm:$0xff] %v1582
        %1599 = vst [vmem:[#allocation2 + $0x50] sm:$0xff] %v1583
        %1600 = vst [vmem:[#allocation2 + $0x58] sm:$0xff] %v1584
        %1601 = vst [vmem:[#allocation2 + $0x60] sm:$0xff] %v1585
        %1602 = vst [vmem:[#allocation2 + $0x68] sm:$0xff] %v1586
        %1603 = vst [vmem:[#allocation2 + $0x70] sm:$0xff] %v1587
        %1604 = vst [vmem:[#allocation2 + $0x78] sm:$0xff] %v1588
        %p1605 = scmp.eq.s32.totalorder %s24, 7
        // Predicated region
        $region73: #{forward.2} parent=55 // pred_check
          %p1606 = pneg %p1605
        $region74: #{forward.2} parent=55 // pred_check_branch
          %1608 = sbr.rel (%p1606) target = $region76
        $region75: #{forward.2} parent=55 // pred_region
          %v1609 = vpack.c.bf16 %v1574, %v1573
          %v1610 = vpack.c.bf16 %v1576, %v1575
          %v1611 = vpack.c.bf16 %v1578, %v1577
          %v1612 = vpack.c.bf16 %v1580, %v1579
          %v1613 = vpack.c.bf16 %v1582, %v1581
          %v1614 = vpack.c.bf16 %v1584, %v1583
          %v1615 = vpack.c.bf16 %v1586, %v1585
          %v1616 = vpack.c.bf16 %v1588, %v1587
          %v1617 = vld [vmem:[#allocation8] sm:$0xf]
          %v1618 = vld [vmem:[#allocation8 + $0x4] sm:$0xf]
          %v1619 = vld [vmem:[#allocation8 + $0x8] sm:$0xf]
          %v1620 = vld [vmem:[#allocation8 + $0xc] sm:$0xf]
          %v1621 = vld [vmem:[#allocation8 + $0x10] sm:$0xf]
          %v1622 = vld [vmem:[#allocation8 + $0x14] sm:$0xf]
          %v1623 = vld [vmem:[#allocation8 + $0x18] sm:$0xf]
          %v1624 = vld [vmem:[#allocation8 + $0x1c] sm:$0xf]
          %v1625 = vld [vmem:[#allocation8 + $0x20] sm:$0xf]
          %v1626 = vld [vmem:[#allocation8 + $0x24] sm:$0xf]
          %v1627 = vld [vmem:[#allocation8 + $0x28] sm:$0xf]
          %v1628 = vld [vmem:[#allocation8 + $0x2c] sm:$0xf]
          %v1629 = vld [vmem:[#allocation8 + $0x30] sm:$0xf]
          %v1630 = vld [vmem:[#allocation8 + $0x34] sm:$0xf]
          %v1631 = vld [vmem:[#allocation8 + $0x38] sm:$0xf]
          %v1632 = vld [vmem:[#allocation8 + $0x3c] sm:$0xf]
          %v1633 = vld [vmem:[%s8] sm:$0x1]
          %v1635 = vlaneseq
          %v1636 = vshrl.u32 %v1635, 7
          %v1637 = vsub.s32 0, %v1636
          %v1638 = vrot.slane %v1633, %v1637
          %v1656 = vunpack.c.l.b16 %v1617
          %v1657 = vunpack.c.l.b16 %v1618
          %v1658 = vunpack.c.l.b16 %v1619
          %v1659 = vunpack.c.l.b16 %v1620
          %v1660 = vunpack.c.l.b16 %v1621
          %v1661 = vunpack.c.l.b16 %v1622
          %v1662 = vunpack.c.l.b16 %v1623
          %v1663 = vunpack.c.l.b16 %v1624
          %v1664 = vunpack.c.l.b16 %v1625
          %v1665 = vunpack.c.l.b16 %v1626
          %v1666 = vunpack.c.l.b16 %v1627
          %v1667 = vunpack.c.l.b16 %v1628
          %v1668 = vunpack.c.l.b16 %v1629
          %v1669 = vunpack.c.l.b16 %v1630
          %v1670 = vunpack.c.l.b16 %v1631
          %v1671 = vunpack.c.l.b16 %v1632
          %v1672 = vpack.c.b16 %v1657, %v1656
          %v1673 = vpack.c.b16 %v1659, %v1658
          %v1674 = vpack.c.b16 %v1661, %v1660
          %v1675 = vpack.c.b16 %v1663, %v1662
          %v1676 = vpack.c.b16 %v1665, %v1664
          %v1677 = vpack.c.b16 %v1667, %v1666
          %v1678 = vpack.c.b16 %v1669, %v1668
          %v1679 = vpack.c.b16 %v1671, %v1670
          %1688 = vmatprep.subr.bf16.mxu0 0
          %1689 = vmatpush1.bf16.msra.mxu0 %v1679
          %1690 = vmatprep.subr.bf16.mxu0 0
          %1691 = vmatpush1.bf16.msra.mxu0 %v1678
          %1692 = vmatprep.subr.bf16.mxu0 0
          %1693 = vmatpush1.bf16.msra.mxu0 %v1677
          %1694 = vmatprep.subr.bf16.mxu0 0
          %1695 = vmatpush1.bf16.msra.mxu0 %v1676
          %1696 = vmatprep.subr.bf16.mxu0 0
          %1697 = vmatpush1.bf16.msra.mxu0 %v1675
          %1698 = vmatprep.subr.bf16.mxu0 0
          %1699 = vmatpush1.bf16.msra.mxu0 %v1674
          %1700 = vmatprep.subr.bf16.mxu0 0
          %1701 = vmatpush1.bf16.msra.mxu0 %v1673
          %1702 = vmatprep.subr.bf16.mxu0 0
          %1703 = vmatpush1.bf16.msra.mxu0 %v1672
          %1704 = vmatprep.subr.bf16.mxu0 0
          %1705 = vmatpush2.bf16.msra.mxu0 0
          %1706 = vmatprep.subr.bf16.mxu0 0
          %1707 = vmatpush2.bf16.msra.mxu0 0
          %1708 = vmatprep.subr.bf16.mxu0 0
          %1709 = vmatpush2.bf16.msra.mxu0 0
          %1710 = vmatprep.subr.bf16.mxu0 0
          %1711 = vmatpush2.bf16.msra.mxu0 0
          %1712 = vmatprep.subr.bf16.mxu0 0
          %1713 = vmatpush2.bf16.msra.mxu0 0
          %1714 = vmatprep.subr.bf16.mxu0 0
          %1715 = vmatpush2.bf16.msra.mxu0 0
          %1716 = vmatprep.subr.bf16.mxu0 0
          %1717 = vmatpush2.bf16.msra.mxu0 0
          %1718 = vmatprep.subr.bf16.mxu0 0
          %1719 = vmatpush2.bf16.msra.mxu0 0
          %1720 = vmatprep.mubr.bf16.mxu0 0
          %1721 = vmatmul.mubr.bf16.gmra.mxu0 %v1609
          %v1722 = vpop.f32.mrf.mxu0
          %v1723 = vadd.f32 %v1638, %v1722
          %v1724 = vpop.f32.mrf.mxu0
          %v1725 = vpop.f32.mrf.mxu0
          %v1726 = vadd.f32 %v1638, %v1725
          %v1727 = vpop.f32.mrf.mxu0
          %1728 = vmatprep.mubr.bf16.mxu0 0
          %1729 = vmatmul.mubr.bf16.gmra.mxu0 %v1610
          %v1730 = vpop.f32.mrf.mxu0
          %v1731 = vadd.f32 %v1638, %v1730
          %v1732 = vpop.f32.mrf.mxu0
          %v1733 = vpop.f32.mrf.mxu0
          %v1734 = vadd.f32 %v1638, %v1733
          %v1735 = vpop.f32.mrf.mxu0
          %1736 = vmatprep.mubr.bf16.mxu0 0
          %1737 = vmatmul.mubr.bf16.gmra.mxu0 %v1611
          %v1738 = vpop.f32.mrf.mxu0
          %v1739 = vadd.f32 %v1638, %v1738
          %v1740 = vpop.f32.mrf.mxu0
          %v1741 = vpop.f32.mrf.mxu0
          %v1742 = vadd.f32 %v1638, %v1741
          %v1743 = vpop.f32.mrf.mxu0
          %1744 = vmatprep.mubr.bf16.mxu0 0
          %1745 = vmatmul.mubr.bf16.gmra.mxu0 %v1612
          %v1746 = vpop.f32.mrf.mxu0
          %v1747 = vadd.f32 %v1638, %v1746
          %v1748 = vpop.f32.mrf.mxu0
          %v1749 = vpop.f32.mrf.mxu0
          %v1750 = vadd.f32 %v1638, %v1749
          %v1751 = vpop.f32.mrf.mxu0
          %1752 = vmatprep.mubr.bf16.mxu0 0
          %1753 = vmatmul.mubr.bf16.gmra.mxu0 %v1613
          %v1754 = vpop.f32.mrf.mxu0
          %v1755 = vadd.f32 %v1638, %v1754
          %v1756 = vpop.f32.mrf.mxu0
          %v1757 = vpop.f32.mrf.mxu0
          %v1758 = vadd.f32 %v1638, %v1757
          %v1759 = vpop.f32.mrf.mxu0
          %1760 = vmatprep.mubr.bf16.mxu0 0
          %1761 = vmatmul.mubr.bf16.gmra.mxu0 %v1614
          %v1762 = vpop.f32.mrf.mxu0
          %v1763 = vadd.f32 %v1638, %v1762
          %v1764 = vpop.f32.mrf.mxu0
          %v1765 = vpop.f32.mrf.mxu0
          %v1766 = vadd.f32 %v1638, %v1765
          %v1767 = vpop.f32.mrf.mxu0
          %1768 = vmatprep.mubr.bf16.mxu0 0
          %1769 = vmatmul.mubr.bf16.gmra.mxu0 %v1615
          %v1770 = vpop.f32.mrf.mxu0
          %v1771 = vadd.f32 %v1638, %v1770
          %v1772 = vpop.f32.mrf.mxu0
          %v1773 = vpop.f32.mrf.mxu0
          %v1774 = vadd.f32 %v1638, %v1773
          %v1775 = vpop.f32.mrf.mxu0
          %1776 = vmatprep.mubr.bf16.mxu0 0
          %1777 = vmatmul.mubr.bf16.gmra.mxu0 %v1616
          %v1778 = vpop.f32.mrf.mxu0
          %v1779 = vadd.f32 %v1638, %v1778
          %v1780 = vpop.f32.mrf.mxu0
          %v1781 = vpop.f32.mrf.mxu0
          %v1782 = vadd.f32 %v1638, %v1781
          %v1783 = vpop.f32.mrf.mxu0
          %1784 = vdwg.mxu0
          %v1785 = vmax.f32 %v1723, 0.0
          %v1786 = vmax.f32 %v1726, 0.0
          %v1787 = vmax.f32 %v1731, 0.0
          %v1788 = vmax.f32 %v1734, 0.0
          %v1789 = vmax.f32 %v1739, 0.0
          %v1790 = vmax.f32 %v1742, 0.0
          %v1791 = vmax.f32 %v1747, 0.0
          %v1792 = vmax.f32 %v1750, 0.0
          %v1793 = vmax.f32 %v1755, 0.0
          %v1794 = vmax.f32 %v1758, 0.0
          %v1795 = vmax.f32 %v1763, 0.0
          %v1796 = vmax.f32 %v1766, 0.0
          %v1797 = vmax.f32 %v1771, 0.0
          %v1798 = vmax.f32 %v1774, 0.0
          %v1799 = vmax.f32 %v1779, 0.0
          %v1800 = vmax.f32 %v1782, 0.0
          %1801 = vst [vmem:[%s9] sm:$0xff] %v1785
          %1802 = vst [vmem:[%s9 + $0x8] sm:$0xff] %v1786
          %1803 = vst [vmem:[%s9 + $0x10] sm:$0xff] %v1787
          %1804 = vst [vmem:[%s9 + $0x18] sm:$0xff] %v1788
          %1805 = vst [vmem:[%s9 + $0x20] sm:$0xff] %v1789
          %1806 = vst [vmem:[%s9 + $0x28] sm:$0xff] %v1790
          %1807 = vst [vmem:[%s9 + $0x30] sm:$0xff] %v1791
          %1808 = vst [vmem:[%s9 + $0x38] sm:$0xff] %v1792
          %1809 = vst [vmem:[%s9 + $0x40] sm:$0xff] %v1793
          %1810 = vst [vmem:[%s9 + $0x48] sm:$0xff] %v1794
          %1811 = vst [vmem:[%s9 + $0x50] sm:$0xff] %v1795
          %1812 = vst [vmem:[%s9 + $0x58] sm:$0xff] %v1796
          %1813 = vst [vmem:[%s9 + $0x60] sm:$0xff] %v1797
          %1814 = vst [vmem:[%s9 + $0x68] sm:$0xff] %v1798
          %1815 = vst [vmem:[%s9 + $0x70] sm:$0xff] %v1799
          %1816 = vst [vmem:[%s9 + $0x78] sm:$0xff] %v1800
        $region76: #{forward.2} parent=55 // pred_fallthru
          _
        // Predicated region
        $region77: #{forward.2} parent=55 // pred_check
          %p1817 = pneg %p246
        $region78: #{forward.2} parent=55 // pred_check_branch
          %1819 = sbr.rel (%p1817) target = $region80
        $region79: #{forward.2} parent=55 // pred_region
          _
        $region80: #{forward.2} parent=55 // pred_fallthru
          _
        // Predicated region
        $region81: #{forward.2} parent=55 // pred_check
          %p1820 = pneg %p246
        $region82: #{forward.2} parent=55 // pred_check_branch
          %1822 = sbr.rel (%p1820) target = $region84
        $region83: #{forward.2} parent=55 // pred_region
          _
        $region84: #{forward.2} parent=55 // pred_fallthru
          _
      $region56: #{forward.2} parent=5 // pred_fallthru
        _
      %p1823 = scmp.le.s32.totalorder 2, %s19
      // Predicated region
      $region85: #{forward.2} parent=5 // pred_check
        %p1824 = pneg %p1823
      $region86: #{forward.2} parent=5 // pred_check_branch
        %1826 = sbr.rel (%p1824) target = $region88
      $region87: #{forward.2} parent=5 // pred_region
        %s1827 = ssub.s32 %s19, 2
      $region88: #{forward.2} parent=5 // pred_fallthru
        _
    $region6: #{forward.2} parent=1 // loop_footer
      %s23 = sadd.s32 1, %s19
    $region7: #{forward.2} parent=1 // loop_footer_branch
      %18 = sbr.rel target = $region3
    $region8: #{forward.2} parent=1 // loop_exit
      _
    %1828 = vsyncpa [#allocation5], 1
    %s1829 = scalar_lea.sflag [#allocation5], 1
    %1830 = vsyncpa %s1829, 1
    %1831 = vsyncpa [#allocation7], 1
    %s1832 = scalar_lea.sflag [#allocation7], 1
    %1833 = vsyncpa %s1832, 1

// kernel: forward.3
$region0: #{forward.3}
  #allocation0 [shape = 'u32[]', space=smem, size = 0x4, offset = 0x4, fixed_abs, tag = 'smem constant byte address 0x4 - core index']
  #allocation1 [shape = 'u32[144,128]{1,0:T(1,128)}', space=vmem, size = 0x12000, scoped, tag = 'internal scratch']
  #allocation2 [shape = 'f32[8,128]{1,0:T(8,128)}', space=vmem, size = 0x1000, scoped, tag = 'scratch operand']
  %s0 = inlined_call_operand.vmem [shape: f32[8,4096], index: 0, kind: input, shape index: {}]
  %s1 = inlined_call_operand.vmem [shape: f32[8,8], index: 1, kind: input, shape index: {}]
  %s2 = inlined_call_operand.vmem [shape: bf16[4096,128], index: 2, kind: input, shape index: {}]
  %s3 = inlined_call_operand.vmem [shape: f32[1,128], index: 3, kind: input, shape index: {}]
  %s4 = inlined_call_operand.vmem [shape: f32[1,128], index: 4, kind: input, shape index: {}]
  %s5 = inlined_call_operand.vmem [shape: f32[1,128], index: 5, kind: input, shape index: {}]
  %s6 = inlined_call_operand.vmem [shape: bf16[128,128], index: 6, kind: input, shape index: {}]
  %s7 = inlined_call_operand.vmem [shape: f32[1,128], index: 7, kind: input, shape index: {}]
  %s8 = inlined_call_operand.vmem [shape: f32[128,2], index: 8, kind: input, shape index: {}]
  %s9 = inlined_call_operand.vmem [shape: f32[1,2], index: 9, kind: input, shape index: {}]
  %s10 = inlined_call_operand.vmem [shape: f32[8,2], index: 10, kind: output, shape index: {}]
  %s11 = sld [smem:[#allocation0]]
  $region81: #{forward.3} parent=0
    _
  %s13 = ssub.s32 1, %s11
  %s14 = scalar_select 0, %s13, %s11
  loop: start=0, step=1, limit=6
  $region2: #{forward.3} parent=0 // loop_pre_header
    _
  $region3: #{forward.3} parent=0 // loop_header
    %s16 = sphi 0, %s20
    %p17 = scmp.ge.s32.totalorder %s16, 6
    %s26 = sphi 0, %s28
    %s29 = sphi 0, %s26
    %s30 = sphi 0, %s29
    %s46 = sphi 0, %s30
    %s50 = sphi 0, %s50
    %s52 = sphi 0, %s50
    %s53 = sphi 0, %s52
    %s67 = sphi 0, %s53
    %s73 = sphi 0, %s75
    %s76 = sphi 0, %s73
    %s77 = sphi 0, %s76
    %s93 = sphi 0, %s77
    %s97 = sphi 0, %s97
    %s99 = sphi 0, %s97
    %s100 = sphi 0, %s99
    %s114 = sphi 0, %s100
    %s118 = sphi 0, %s118
    %s120 = sphi 0, %s118
    %s121 = sphi 0, %s120
    %s135 = sphi 0, %s121
    %s139 = sphi 0, %s139
    %s141 = sphi 0, %s139
    %s142 = sphi 0, %s141
    %s156 = sphi 0, %s142
    %s160 = sphi 0, %s160
    %s162 = sphi 0, %s160
    %s163 = sphi 0, %s162
    %s177 = sphi 0, %s163
    %s181 = sphi 0, %s181
    %s183 = sphi 0, %s181
    %s184 = sphi 0, %s183
    %s198 = sphi 0, %s184
    %s202 = sphi 0, %s202
    %s204 = sphi 0, %s202
    %s205 = sphi 0, %s204
    %s219 = sphi 0, %s205
    %s223 = sphi 0, %s223
    %s225 = sphi 0, %s223
    %s226 = sphi 0, %s225
    %s240 = sphi 0, %s226
    %s244 = sphi 0, %s244
    %s246 = sphi 0, %s244
    %s247 = sphi 0, %s246
    %s261 = sphi 0, %s247
  $region4: #{forward.3} parent=0 // loop_header_branch
    %19 = sbr.rel (%p17) target = $region8
  $region5: #{forward.3} parent=0 // loop_body
    %s21 = ssub.s32 %s16, 1
    %s22 = ssub.s32 %s16, 2
    %s23 = sadd.s32 %s16, 1
    %s24 = ssub.s32 %s16, %s23
    %p25 = scmp.eq.s32.totalorder %s24, 0
    %s27 = sadd.s32 %s26, 1
    %s28 = scalar_select %p25, %s26, %s27
    %p31 = pneg %p25
    %p32 = scmp.eq.s32.totalorder %s16, 3
    %p33 = por %p31, %p32
    %p34 = scmp.ne.s32.totalorder %s26, %s29
    %p35 = scmp.eq.s32.totalorder %s16, 0
    %p36 = por %p34, %p35
    %p37 = scmp.ne.s32.totalorder %s26, %s29
    %p38 = scmp.eq.s32.totalorder %s21, 3
    %p39 = por %p37, %p38
    %p40 = scmp.ne.s32.totalorder %s29, %s30
    %p41 = scmp.eq.s32.totalorder %s21, 0
    %p42 = por %p40, %p41
    %p43 = scmp.ne.s32.totalorder %s29, %s30
    %p44 = scmp.eq.s32.totalorder %s22, 3
    %p45 = por %p43, %p44
    %p47 = scmp.ne.s32.totalorder %s30, %s46
    %p48 = scmp.eq.s32.totalorder %s22, 0
    %p49 = por %p47, %p48
    %s51 = sadd.s32 %s50, 1
    %p54 = scmp.eq.s32.totalorder %s16, 3
    %p55 = scmp.ne.s32.totalorder %s50, %s52
    %p56 = scmp.eq.s32.totalorder %s16, 0
    %p57 = por %p55, %p56
    %p58 = scmp.ne.s32.totalorder %s50, %s52
    %p59 = scmp.eq.s32.totalorder %s21, 3
    %p60 = por %p58, %p59
    %p61 = scmp.ne.s32.totalorder %s52, %s53
    %p62 = scmp.eq.s32.totalorder %s21, 0
    %p63 = por %p61, %p62
    %p64 = scmp.ne.s32.totalorder %s52, %s53
    %p65 = scmp.eq.s32.totalorder %s22, 3
    %p66 = por %p64, %p65
    %p68 = scmp.ne.s32.totalorder %s53, %s67
    %p69 = scmp.eq.s32.totalorder %s22, 0
    %p70 = por %p68, %p69
    %s71 = ssub.s32 %s16, %s23
    %p72 = scmp.eq.s32.totalorder %s71, 0
    %s74 = sadd.s32 %s73, 1
    %s75 = scalar_select %p72, %s73, %s74
    %p78 = pneg %p72
    %p79 = scmp.eq.s32.totalorder %s16, 3
    %p80 = por %p78, %p79
    %p81 = scmp.ne.s32.totalorder %s73, %s76
    %p82 = scmp.eq.s32.totalorder %s16, 0
    %p83 = por %p81, %p82
    %p84 = scmp.ne.s32.totalorder %s73, %s76
    %p85 = scmp.eq.s32.totalorder %s21, 3
    %p86 = por %p84, %p85
    %p87 = scmp.ne.s32.totalorder %s76, %s77
    %p88 = scmp.eq.s32.totalorder %s21, 0
    %p89 = por %p87, %p88
    %p90 = scmp.ne.s32.totalorder %s76, %s77
    %p91 = scmp.eq.s32.totalorder %s22, 3
    %p92 = por %p90, %p91
    %p94 = scmp.ne.s32.totalorder %s77, %s93
    %p95 = scmp.eq.s32.totalorder %s22, 0
    %p96 = por %p94, %p95
    %s98 = sadd.s32 %s97, 1
    %p101 = scmp.eq.s32.totalorder %s16, 3
    %p102 = scmp.ne.s32.totalorder %s97, %s99
    %p103 = scmp.eq.s32.totalorder %s16, 0
    %p104 = por %p102, %p103
    %p105 = scmp.ne.s32.totalorder %s97, %s99
    %p106 = scmp.eq.s32.totalorder %s21, 3
    %p107 = por %p105, %p106
    %p108 = scmp.ne.s32.totalorder %s99, %s100
    %p109 = scmp.eq.s32.totalorder %s21, 0
    %p110 = por %p108, %p109
    %p111 = scmp.ne.s32.totalorder %s99, %s100
    %p112 = scmp.eq.s32.totalorder %s22, 3
    %p113 = por %p111, %p112
    %p115 = scmp.ne.s32.totalorder %s100, %s114
    %p116 = scmp.eq.s32.totalorder %s22, 0
    %p117 = por %p115, %p116
    %s119 = sadd.s32 %s118, 1
    %p122 = scmp.eq.s32.totalorder %s16, 3
    %p123 = scmp.ne.s32.totalorder %s118, %s120
    %p124 = scmp.eq.s32.totalorder %s16, 0
    %p125 = por %p123, %p124
    %p126 = scmp.ne.s32.totalorder %s118, %s120
    %p127 = scmp.eq.s32.totalorder %s21, 3
    %p128 = por %p126, %p127
    %p129 = scmp.ne.s32.totalorder %s120, %s121
    %p130 = scmp.eq.s32.totalorder %s21, 0
    %p131 = por %p129, %p130
    %p132 = scmp.ne.s32.totalorder %s120, %s121
    %p133 = scmp.eq.s32.totalorder %s22, 3
    %p134 = por %p132, %p133
    %p136 = scmp.ne.s32.totalorder %s121, %s135
    %p137 = scmp.eq.s32.totalorder %s22, 0
    %p138 = por %p136, %p137
    %s140 = sadd.s32 %s139, 1
    %p143 = scmp.eq.s32.totalorder %s16, 3
    %p144 = scmp.ne.s32.totalorder %s139, %s141
    %p145 = scmp.eq.s32.totalorder %s16, 0
    %p146 = por %p144, %p145
    %p147 = scmp.ne.s32.totalorder %s139, %s141
    %p148 = scmp.eq.s32.totalorder %s21, 3
    %p149 = por %p147, %p148
    %p150 = scmp.ne.s32.totalorder %s141, %s142
    %p151 = scmp.eq.s32.totalorder %s21, 0
    %p152 = por %p150, %p151
    %p153 = scmp.ne.s32.totalorder %s141, %s142
    %p154 = scmp.eq.s32.totalorder %s22, 3
    %p155 = por %p153, %p154
    %p157 = scmp.ne.s32.totalorder %s142, %s156
    %p158 = scmp.eq.s32.totalorder %s22, 0
    %p159 = por %p157, %p158
    %s161 = sadd.s32 %s160, 1
    %p164 = scmp.eq.s32.totalorder %s16, 3
    %p165 = scmp.ne.s32.totalorder %s160, %s162
    %p166 = scmp.eq.s32.totalorder %s16, 0
    %p167 = por %p165, %p166
    %p168 = scmp.ne.s32.totalorder %s160, %s162
    %p169 = scmp.eq.s32.totalorder %s21, 3
    %p170 = por %p168, %p169
    %p171 = scmp.ne.s32.totalorder %s162, %s163
    %p172 = scmp.eq.s32.totalorder %s21, 0
    %p173 = por %p171, %p172
    %p174 = scmp.ne.s32.totalorder %s162, %s163
    %p175 = scmp.eq.s32.totalorder %s22, 3
    %p176 = por %p174, %p175
    %p178 = scmp.ne.s32.totalorder %s163, %s177
    %p179 = scmp.eq.s32.totalorder %s22, 0
    %p180 = por %p178, %p179
    %s182 = sadd.s32 %s181, 1
    %p185 = scmp.eq.s32.totalorder %s16, 3
    %p186 = scmp.ne.s32.totalorder %s181, %s183
    %p187 = scmp.eq.s32.totalorder %s16, 0
    %p188 = por %p186, %p187
    %p189 = scmp.ne.s32.totalorder %s181, %s183
    %p190 = scmp.eq.s32.totalorder %s21, 3
    %p191 = por %p189, %p190
    %p192 = scmp.ne.s32.totalorder %s183, %s184
    %p193 = scmp.eq.s32.totalorder %s21, 0
    %p194 = por %p192, %p193
    %p195 = scmp.ne.s32.totalorder %s183, %s184
    %p196 = scmp.eq.s32.totalorder %s22, 3
    %p197 = por %p195, %p196
    %p199 = scmp.ne.s32.totalorder %s184, %s198
    %p200 = scmp.eq.s32.totalorder %s22, 0
    %p201 = por %p199, %p200
    %s203 = sadd.s32 %s202, 1
    %p206 = scmp.eq.s32.totalorder %s16, 3
    %p207 = scmp.ne.s32.totalorder %s202, %s204
    %p208 = scmp.eq.s32.totalorder %s16, 0
    %p209 = por %p207, %p208
    %p210 = scmp.ne.s32.totalorder %s202, %s204
    %p211 = scmp.eq.s32.totalorder %s21, 3
    %p212 = por %p210, %p211
    %p213 = scmp.ne.s32.totalorder %s204, %s205
    %p214 = scmp.eq.s32.totalorder %s21, 0
    %p215 = por %p213, %p214
    %p216 = scmp.ne.s32.totalorder %s204, %s205
    %p217 = scmp.eq.s32.totalorder %s22, 3
    %p218 = por %p216, %p217
    %p220 = scmp.ne.s32.totalorder %s205, %s219
    %p221 = scmp.eq.s32.totalorder %s22, 0
    %p222 = por %p220, %p221
    %s224 = sadd.s32 %s223, 1
    %p227 = scmp.eq.s32.totalorder %s16, 3
    %p228 = scmp.ne.s32.totalorder %s223, %s225
    %p229 = scmp.eq.s32.totalorder %s16, 0
    %p230 = por %p228, %p229
    %p231 = scmp.ne.s32.totalorder %s223, %s225
    %p232 = scmp.eq.s32.totalorder %s21, 3
    %p233 = por %p231, %p232
    %p234 = scmp.ne.s32.totalorder %s225, %s226
    %p235 = scmp.eq.s32.totalorder %s21, 0
    %p236 = por %p234, %p235
    %p237 = scmp.ne.s32.totalorder %s225, %s226
    %p238 = scmp.eq.s32.totalorder %s22, 3
    %p239 = por %p237, %p238
    %p241 = scmp.ne.s32.totalorder %s226, %s240
    %p242 = scmp.eq.s32.totalorder %s22, 0
    %p243 = por %p241, %p242
    %s245 = sadd.s32 %s244, 1
    %p248 = scmp.eq.s32.totalorder %s16, 3
    %p249 = scmp.ne.s32.totalorder %s244, %s246
    %p250 = scmp.eq.s32.totalorder %s16, 0
    %p251 = por %p249, %p250
    %p252 = scmp.ne.s32.totalorder %s244, %s246
    %p253 = scmp.eq.s32.totalorder %s21, 3
    %p254 = por %p252, %p253
    %p255 = scmp.ne.s32.totalorder %s246, %s247
    %p256 = scmp.eq.s32.totalorder %s21, 0
    %p257 = por %p255, %p256
    %p258 = scmp.ne.s32.totalorder %s246, %s247
    %p259 = scmp.eq.s32.totalorder %s22, 3
    %p260 = por %p258, %p259
    %p262 = scmp.ne.s32.totalorder %s247, %s261
    %p263 = scmp.eq.s32.totalorder %s22, 0
    %p264 = por %p262, %p263
    %p265 = scmp.le.s32.totalorder 1, %s16
    %p266 = scmp.lt.s32.totalorder %s16, 5
    %p267 = pnand %p265, %p266
    %p268 = pneg %p267
    // Predicated region
    $region9: #{forward.3} parent=5 // pred_check
      _
    $region10: #{forward.3} parent=5 // pred_check_branch
      %270 = sbr.rel (%p267) target = $region12
    $region11: #{forward.3} parent=5 // pred_region
      %s271 = ssub.s32 %s16, 1
      // Predicated region
      $region13: #{forward.3} parent=11 // pred_check
        %p272 = pneg %p63
      $region14: #{forward.3} parent=11 // pred_check_branch
        %274 = sbr.rel (%p272) target = $region16
      $region15: #{forward.3} parent=11 // pred_region
        _
      $region16: #{forward.3} parent=11 // pred_fallthru
        _
      // Predicated region
      $region17: #{forward.3} parent=11 // pred_check
        %p275 = pneg %p110
      $region18: #{forward.3} parent=11 // pred_check_branch
        %277 = sbr.rel (%p275) target = $region20
      $region19: #{forward.3} parent=11 // pred_region
        _
      $region20: #{forward.3} parent=11 // pred_fallthru
        _
      // Predicated region
      $region21: #{forward.3} parent=11 // pred_check
        %p278 = pneg %p131
      $region22: #{forward.3} parent=11 // pred_check_branch
        %280 = sbr.rel (%p278) target = $region24
      $region23: #{forward.3} parent=11 // pred_region
        _
      $region24: #{forward.3} parent=11 // pred_fallthru
        _
      // Predicated region
      $region25: #{forward.3} parent=11 // pred_check
        %p281 = pneg %p152
      $region26: #{forward.3} parent=11 // pred_check_branch
        %283 = sbr.rel (%p281) target = $region28
      $region27: #{forward.3} parent=11 // pred_region
        _
      $region28: #{forward.3} parent=11 // pred_fallthru
        _
      // Predicated region
      $region29: #{forward.3} parent=11 // pred_check
        %p284 = pneg %p173
      $region30: #{forward.3} parent=11 // pred_check_branch
        %286 = sbr.rel (%p284) target = $region32
      $region31: #{forward.3} parent=11 // pred_region
        _
      $region32: #{forward.3} parent=11 // pred_fallthru
        _
      // Predicated region
      $region33: #{forward.3} parent=11 // pred_check
        %p287 = pneg %p194
      $region34: #{forward.3} parent=11 // pred_check_branch
        %289 = sbr.rel (%p287) target = $region36
      $region35: #{forward.3} parent=11 // pred_region
        _
      $region36: #{forward.3} parent=11 // pred_fallthru
        _
      // Predicated region
      $region37: #{forward.3} parent=11 // pred_check
        %p290 = pneg %p215
      $region38: #{forward.3} parent=11 // pred_check_branch
        %292 = sbr.rel (%p290) target = $region40
      $region39: #{forward.3} parent=11 // pred_region
        _
      $region40: #{forward.3} parent=11 // pred_fallthru
        _
      // Predicated region
      $region41: #{forward.3} parent=11 // pred_check
        %p293 = pneg %p236
      $region42: #{forward.3} parent=11 // pred_check_branch
        %295 = sbr.rel (%p293) target = $region44
      $region43: #{forward.3} parent=11 // pred_region
        _
      $region44: #{forward.3} parent=11 // pred_fallthru
        _
    $region12: #{forward.3} parent=5 // pred_fallthru
      _
    %p296 = scmp.lt.s32.totalorder %s16, 4
    // Predicated region
    $region45: #{forward.3} parent=5 // pred_check
      %p297 = pneg %p296
    $region46: #{forward.3} parent=5 // pred_check_branch
      %299 = sbr.rel (%p297) target = $region48
    $region47: #{forward.3} parent=5 // pred_region
      // Predicated region
      $region49: #{forward.3} parent=47 // pred_check
        %p300 = pneg %p36
      $region50: #{forward.3} parent=47 // pred_check_branch
        %302 = sbr.rel (%p300) target = $region52
      $region51: #{forward.3} parent=47 // pred_region
        %s303 = smul.u32 8, %s16
        %p304 = scmp.lt.s32.totalorder %s303, 31
        %s305 = scalar_select %p304, %s303, 31
        %s306 = smul.addr %s305, 8
        %s307 = scalar_lea.vmem %s0, %s306
        %s308 = smul.u32 8, %s16
      $region52: #{forward.3} parent=47 // pred_fallthru
        _
      // Predicated region
      $region53: #{forward.3} parent=47 // pred_check
        %p309 = pneg %p83
      $region54: #{forward.3} parent=47 // pred_check_branch
        %311 = sbr.rel (%p309) target = $region56
      $region55: #{forward.3} parent=47 // pred_region
        %s312 = smul.u32 128, %s16
        %p313 = scmp.lt.s32.totalorder %s312, 511
        %s314 = scalar_select %p313, %s312, 511
        %s315 = smul.addr %s314, 4
        %s316 = scalar_lea.vmem %s2, %s315
        %s317 = smul.u32 128, %s16
      $region56: #{forward.3} parent=47 // pred_fallthru
        _
    $region48: #{forward.3} parent=5 // pred_fallthru
      _
    %p318 = scmp.le.s32.totalorder 1, %s16
    %p319 = scmp.lt.s32.totalorder %s16, 5
    %p320 = pnand %p318, %p319
    %p321 = pneg %p320
    // Predicated region
    $region57: #{forward.3} parent=5 // pred_check
      _
    $region58: #{forward.3} parent=5 // pred_check_branch
      %323 = sbr.rel (%p320) target = $region60
    $region59: #{forward.3} parent=5 // pred_region
      %s324 = ssub.s32 %s16, 1
      %s325 = smul.u32 8, %s21
      %p326 = scmp.lt.s32.totalorder %s325, 31
      %s327 = scalar_select %p326, %s325, 31
      %s328 = smul.addr %s327, 8
      %s329 = scalar_lea.vmem %s0, %s328
      %p330 = pneg %p42
      %p331 = pneg %p39
      %p332 = pneg %p63
      %p333 = pneg %p60
      %s334 = smul.u32 128, %s21
      %p335 = scmp.lt.s32.totalorder %s334, 511
      %s336 = scalar_select %p335, %s334, 511
      %s337 = smul.addr %s336, 4
      %s338 = scalar_lea.vmem %s2, %s337
      %p339 = pneg %p89
      %p340 = pneg %p86
      %p341 = pneg %p110
      %p342 = pneg %p107
      %p343 = pneg %p131
      %p344 = pneg %p128
      %p345 = pneg %p152
      %p346 = pneg %p149
      %p347 = pneg %p173
      %p348 = pneg %p170
      %p349 = pneg %p194
      %p350 = pneg %p191
      %p351 = pneg %p215
      %p352 = pneg %p212
      %p353 = pneg %p236
      %p354 = pneg %p233
      %p355 = pneg %p257
      %p356 = pneg %p254
      %s357 = smul.u32 8, %s21
      %p358 = scmp.lt.s32.totalorder %s357, 31
      %s359 = scalar_select %p358, %s357, 31
      %s360 = smul.addr %s359, 8
      %s361 = scalar_lea.vmem %s0, %s360
      %s362 = smul.u32 8, %s21
      %s363 = smul.u32 128, %s21
      %p364 = scmp.lt.s32.totalorder %s363, 511
      %s365 = scalar_select %p364, %s363, 511
      %s366 = smul.addr %s365, 4
      %s367 = scalar_lea.vmem %s2, %s366
      %s368 = smul.u32 128, %s21
      %p370 = scmp.eq.s32.totalorder %s21, 0
      // Predicated region
      $region61: #{forward.3} parent=59 // pred_check
        %p371 = pneg %p370
      $region62: #{forward.3} parent=59 // pred_check_branch
        %373 = sbr.rel (%p371) target = $region64
      $region63: #{forward.3} parent=59 // pred_region
        %374 = vst [vmem:[#allocation2] sm:$0xff] 0.0
      $region64: #{forward.3} parent=59 // pred_fallthru
        _
      %v375 = vld [vmem:[#allocation2] sm:$0xff]
      %v376 = vld [vmem:[%s361] sm:$0xff]
      %v377 = vld [vmem:[%s361 + $0x8] sm:$0xff]
      %v378 = vld [vmem:[%s361 + $0x10] sm:$0xff]
      %v379 = vld [vmem:[%s361 + $0x18] sm:$0xff]
      %v380 = vld [vmem:[%s361 + $0x20] sm:$0xff]
      %v381 = vld [vmem:[%s361 + $0x28] sm:$0xff]
      %v382 = vld [vmem:[%s361 + $0x30] sm:$0xff]
      %v383 = vld [vmem:[%s361 + $0x38] sm:$0xff]
      %v384 = vpack.c.bf16 %v376, %v376
      %v385 = vpack.c.bf16 %v377, %v377
      %v386 = vpack.c.bf16 %v378, %v378
      %v387 = vpack.c.bf16 %v379, %v379
      %v388 = vpack.c.bf16 %v380, %v380
      %v389 = vpack.c.bf16 %v381, %v381
      %v390 = vpack.c.bf16 %v382, %v382
      %v391 = vpack.c.bf16 %v383, %v383
      %v392 = vld [vmem:[%s367] sm:$0xf]
      %v393 = vld [vmem:[%s367 + $0x4] sm:$0xf]
      %v394 = vld [vmem:[%s367 + $0x8] sm:$0xf]
      %v395 = vld [vmem:[%s367 + $0xc] sm:$0xf]
      %v396 = vld [vmem:[%s367 + $0x10] sm:$0xf]
      %v397 = vld [vmem:[%s367 + $0x14] sm:$0xf]
      %v398 = vld [vmem:[%s367 + $0x18] sm:$0xf]
      %v399 = vld [vmem:[%s367 + $0x1c] sm:$0xf]
      %v400 = vld [vmem:[%s367 + $0x20] sm:$0xf]
      %v401 = vld [vmem:[%s367 + $0x24] sm:$0xf]
      %v402 = vld [vmem:[%s367 + $0x28] sm:$0xf]
      %v403 = vld [vmem:[%s367 + $0x2c] sm:$0xf]
      %v404 = vld [vmem:[%s367 + $0x30] sm:$0xf]
      %v405 = vld [vmem:[%s367 + $0x34] sm:$0xf]
      %v406 = vld [vmem:[%s367 + $0x38] sm:$0xf]
      %v407 = vld [vmem:[%s367 + $0x3c] sm:$0xf]
      %v408 = vld [vmem:[%s367 + $0x40] sm:$0xf]
      %v409 = vld [vmem:[%s367 + $0x44] sm:$0xf]
      %v410 = vld [vmem:[%s367 + $0x48] sm:$0xf]
      %v411 = vld [vmem:[%s367 + $0x4c] sm:$0xf]
      %v412 = vld [vmem:[%s367 + $0x50] sm:$0xf]
      %v413 = vld [vmem:[%s367 + $0x54] sm:$0xf]
      %v414 = vld [vmem:[%s367 + $0x58] sm:$0xf]
      %v415 = vld [vmem:[%s367 + $0x5c] sm:$0xf]
      %v416 = vld [vmem:[%s367 + $0x60] sm:$0xf]
      %v417 = vld [vmem:[%s367 + $0x64] sm:$0xf]
      %v418 = vld [vmem:[%s367 + $0x68] sm:$0xf]
      %v419 = vld [vmem:[%s367 + $0x6c] sm:$0xf]
      %v420 = vld [vmem:[%s367 + $0x70] sm:$0xf]
      %v421 = vld [vmem:[%s367 + $0x74] sm:$0xf]
      %v422 = vld [vmem:[%s367 + $0x78] sm:$0xf]
      %v423 = vld [vmem:[%s367 + $0x7c] sm:$0xf]
      %v424 = vld [vmem:[%s367 + $0x80] sm:$0xf]
      %v425 = vld [vmem:[%s367 + $0x84] sm:$0xf]
      %v426 = vld [vmem:[%s367 + $0x88] sm:$0xf]
      %v427 = vld [vmem:[%s367 + $0x8c] sm:$0xf]
      %v428 = vld [vmem:[%s367 + $0x90] sm:$0xf]
      %v429 = vld [vmem:[%s367 + $0x94] sm:$0xf]
      %v430 = vld [vmem:[%s367 + $0x98] sm:$0xf]
      %v431 = vld [vmem:[%s367 + $0x9c] sm:$0xf]
      %v432 = vld [vmem:[%s367 + $0xa0] sm:$0xf]
      %v433 = vld [vmem:[%s367 + $0xa4] sm:$0xf]
      %v434 = vld [vmem:[%s367 + $0xa8] sm:$0xf]
      %v435 = vld [vmem:[%s367 + $0xac] sm:$0xf]
      %v436 = vld [vmem:[%s367 + $0xb0] sm:$0xf]
      %v437 = vld [vmem:[%s367 + $0xb4] sm:$0xf]
      %v438 = vld [vmem:[%s367 + $0xb8] sm:$0xf]
      %v439 = vld [vmem:[%s367 + $0xbc] sm:$0xf]
      %v440 = vld [vmem:[%s367 + $0xc0] sm:$0xf]
      %v441 = vld [vmem:[%s367 + $0xc4] sm:$0xf]
      %v442 = vld [vmem:[%s367 + $0xc8] sm:$0xf]
      %v443 = vld [vmem:[%s367 + $0xcc] sm:$0xf]
      %v444 = vld [vmem:[%s367 + $0xd0] sm:$0xf]
      %v445 = vld [vmem:[%s367 + $0xd4] sm:$0xf]
      %v446 = vld [vmem:[%s367 + $0xd8] sm:$0xf]
      %v447 = vld [vmem:[%s367 + $0xdc] sm:$0xf]
      %v448 = vld [vmem:[%s367 + $0xe0] sm:$0xf]
      %v449 = vld [vmem:[%s367 + $0xe4] sm:$0xf]
      %v450 = vld [vmem:[%s367 + $0xe8] sm:$0xf]
      %v451 = vld [vmem:[%s367 + $0xec] sm:$0xf]
      %v452 = vld [vmem:[%s367 + $0xf0] sm:$0xf]
      %v453 = vld [vmem:[%s367 + $0xf4] sm:$0xf]
      %v454 = vld [vmem:[%s367 + $0xf8] sm:$0xf]
      %v455 = vld [vmem:[%s367 + $0xfc] sm:$0xf]
      %v456 = vld [vmem:[%s367 + $0x100] sm:$0xf]
      %v457 = vld [vmem:[%s367 + $0x104] sm:$0xf]
      %v458 = vld [vmem:[%s367 + $0x108] sm:$0xf]
      %v459 = vld [vmem:[%s367 + $0x10c] sm:$0xf]
      %v460 = vld [vmem:[%s367 + $0x110] sm:$0xf]
      %v461 = vld [vmem:[%s367 + $0x114] sm:$0xf]
      %v462 = vld [vmem:[%s367 + $0x118] sm:$0xf]
      %v463 = vld [vmem:[%s367 + $0x11c] sm:$0xf]
      %v464 = vld [vmem:[%s367 + $0x120] sm:$0xf]
      %v465 = vld [vmem:[%s367 + $0x124] sm:$0xf]
      %v466 = vld [vmem:[%s367 + $0x128] sm:$0xf]
      %v467 = vld [vmem:[%s367 + $0x12c] sm:$0xf]
      %v468 = vld [vmem:[%s367 + $0x130] sm:$0xf]
      %v469 = vld [vmem:[%s367 + $0x134] sm:$0xf]
      %v470 = vld [vmem:[%s367 + $0x138] sm:$0xf]
      %v471 = vld [vmem:[%s367 + $0x13c] sm:$0xf]
      %v472 = vld [vmem:[%s367 + $0x140] sm:$0xf]
      %v473 = vld [vmem:[%s367 + $0x144] sm:$0xf]
      %v474 = vld [vmem:[%s367 + $0x148] sm:$0xf]
      %v475 = vld [vmem:[%s367 + $0x14c] sm:$0xf]
      %v476 = vld [vmem:[%s367 + $0x150] sm:$0xf]
      %v477 = vld [vmem:[%s367 + $0x154] sm:$0xf]
      %v478 = vld [vmem:[%s367 + $0x158] sm:$0xf]
      %v479 = vld [vmem:[%s367 + $0x15c] sm:$0xf]
      %v480 = vld [vmem:[%s367 + $0x160] sm:$0xf]
      %v481 = vld [vmem:[%s367 + $0x164] sm:$0xf]
      %v482 = vld [vmem:[%s367 + $0x168] sm:$0xf]
      %v483 = vld [vmem:[%s367 + $0x16c] sm:$0xf]
      %v484 = vld [vmem:[%s367 + $0x170] sm:$0xf]
      %v485 = vld [vmem:[%s367 + $0x174] sm:$0xf]
      %v486 = vld [vmem:[%s367 + $0x178] sm:$0xf]
      %v487 = vld [vmem:[%s367 + $0x17c] sm:$0xf]
      %v488 = vld [vmem:[%s367 + $0x180] sm:$0xf]
      %v489 = vld [vmem:[%s367 + $0x184] sm:$0xf]
      %v490 = vld [vmem:[%s367 + $0x188] sm:$0xf]
      %v491 = vld [vmem:[%s367 + $0x18c] sm:$0xf]
      %v492 = vld [vmem:[%s367 + $0x190] sm:$0xf]
      %v493 = vld [vmem:[%s367 + $0x194] sm:$0xf]
      %v494 = vld [vmem:[%s367 + $0x198] sm:$0xf]
      %v495 = vld [vmem:[%s367 + $0x19c] sm:$0xf]
      %v496 = vld [vmem:[%s367 + $0x1a0] sm:$0xf]
      %v497 = vld [vmem:[%s367 + $0x1a4] sm:$0xf]
      %v498 = vld [vmem:[%s367 + $0x1a8] sm:$0xf]
      %v499 = vld [vmem:[%s367 + $0x1ac] sm:$0xf]
      %v500 = vld [vmem:[%s367 + $0x1b0] sm:$0xf]
      %v501 = vld [vmem:[%s367 + $0x1b4] sm:$0xf]
      %v502 = vld [vmem:[%s367 + $0x1b8] sm:$0xf]
      %v503 = vld [vmem:[%s367 + $0x1bc] sm:$0xf]
      %v504 = vld [vmem:[%s367 + $0x1c0] sm:$0xf]
      %v505 = vld [vmem:[%s367 + $0x1c4] sm:$0xf]
      %v506 = vld [vmem:[%s367 + $0x1c8] sm:$0xf]
      %v507 = vld [vmem:[%s367 + $0x1cc] sm:$0xf]
      %v508 = vld [vmem:[%s367 + $0x1d0] sm:$0xf]
      %v509 = vld [vmem:[%s367 + $0x1d4] sm:$0xf]
      %v510 = vld [vmem:[%s367 + $0x1d8] sm:$0xf]
      %v511 = vld [vmem:[%s367 + $0x1dc] sm:$0xf]
      %v512 = vld [vmem:[%s367 + $0x1e0] sm:$0xf]
      %v513 = vld [vmem:[%s367 + $0x1e4] sm:$0xf]
      %v514 = vld [vmem:[%s367 + $0x1e8] sm:$0xf]
      %v515 = vld [vmem:[%s367 + $0x1ec] sm:$0xf]
      %v516 = vld [vmem:[%s367 + $0x1f0] sm:$0xf]
      %v517 = vld [vmem:[%s367 + $0x1f4] sm:$0xf]
      %v518 = vld [vmem:[%s367 + $0x1f8] sm:$0xf]
      %v519 = vld [vmem:[%s367 + $0x1fc] sm:$0xf]
      %v648 = vunpack.c.l.b16 %v392
      %v649 = vunpack.c.l.b16 %v393
      %v650 = vunpack.c.l.b16 %v394
      %v651 = vunpack.c.l.b16 %v395
      %v652 = vunpack.c.l.b16 %v396
      %v653 = vunpack.c.l.b16 %v397
      %v654 = vunpack.c.l.b16 %v398
      %v655 = vunpack.c.l.b16 %v399
      %v656 = vunpack.c.l.b16 %v400
      %v657 = vunpack.c.l.b16 %v401
      %v658 = vunpack.c.l.b16 %v402
      %v659 = vunpack.c.l.b16 %v403
      %v660 = vunpack.c.l.b16 %v404
      %v661 = vunpack.c.l.b16 %v405
      %v662 = vunpack.c.l.b16 %v406
      %v663 = vunpack.c.l.b16 %v407
      %v664 = vunpack.c.l.b16 %v408
      %v665 = vunpack.c.l.b16 %v409
      %v666 = vunpack.c.l.b16 %v410
      %v667 = vunpack.c.l.b16 %v411
      %v668 = vunpack.c.l.b16 %v412
      %v669 = vunpack.c.l.b16 %v413
      %v670 = vunpack.c.l.b16 %v414
      %v671 = vunpack.c.l.b16 %v415
      %v672 = vunpack.c.l.b16 %v416
      %v673 = vunpack.c.l.b16 %v417
      %v674 = vunpack.c.l.b16 %v418
      %v675 = vunpack.c.l.b16 %v419
      %v676 = vunpack.c.l.b16 %v420
      %v677 = vunpack.c.l.b16 %v421
      %v678 = vunpack.c.l.b16 %v422
      %v679 = vunpack.c.l.b16 %v423
      %v680 = vunpack.c.l.b16 %v424
      %v681 = vunpack.c.l.b16 %v425
      %v682 = vunpack.c.l.b16 %v426
      %v683 = vunpack.c.l.b16 %v427
      %v684 = vunpack.c.l.b16 %v428
      %v685 = vunpack.c.l.b16 %v429
      %v686 = vunpack.c.l.b16 %v430
      %v687 = vunpack.c.l.b16 %v431
      %v688 = vunpack.c.l.b16 %v432
      %v689 = vunpack.c.l.b16 %v433
      %v690 = vunpack.c.l.b16 %v434
      %v691 = vunpack.c.l.b16 %v435
      %v692 = vunpack.c.l.b16 %v436
      %v693 = vunpack.c.l.b16 %v437
      %v694 = vunpack.c.l.b16 %v438
      %v695 = vunpack.c.l.b16 %v439
      %v696 = vunpack.c.l.b16 %v440
      %v697 = vunpack.c.l.b16 %v441
      %v698 = vunpack.c.l.b16 %v442
      %v699 = vunpack.c.l.b16 %v443
      %v700 = vunpack.c.l.b16 %v444
      %v701 = vunpack.c.l.b16 %v445
      %v702 = vunpack.c.l.b16 %v446
      %v703 = vunpack.c.l.b16 %v447
      %v704 = vunpack.c.l.b16 %v448
      %v705 = vunpack.c.l.b16 %v449
      %v706 = vunpack.c.l.b16 %v450
      %v707 = vunpack.c.l.b16 %v451
      %v708 = vunpack.c.l.b16 %v452
      %v709 = vunpack.c.l.b16 %v453
      %v710 = vunpack.c.l.b16 %v454
      %v711 = vunpack.c.l.b16 %v455
      %v712 = vunpack.c.l.b16 %v456
      %v713 = vunpack.c.l.b16 %v457
      %v714 = vunpack.c.l.b16 %v458
      %v715 = vunpack.c.l.b16 %v459
      %v716 = vunpack.c.l.b16 %v460
      %v717 = vunpack.c.l.b16 %v461
      %v718 = vunpack.c.l.b16 %v462
      %v719 = vunpack.c.l.b16 %v463
      %v720 = vunpack.c.l.b16 %v464
      %v721 = vunpack.c.l.b16 %v465
      %v722 = vunpack.c.l.b16 %v466
      %v723 = vunpack.c.l.b16 %v467
      %v724 = vunpack.c.l.b16 %v468
      %v725 = vunpack.c.l.b16 %v469
      %v726 = vunpack.c.l.b16 %v470
      %v727 = vunpack.c.l.b16 %v471
      %v728 = vunpack.c.l.b16 %v472
      %v729 = vunpack.c.l.b16 %v473
      %v730 = vunpack.c.l.b16 %v474
      %v731 = vunpack.c.l.b16 %v475
      %v732 = vunpack.c.l.b16 %v476
      %v733 = vunpack.c.l.b16 %v477
      %v734 = vunpack.c.l.b16 %v478
      %v735 = vunpack.c.l.b16 %v479
      %v736 = vunpack.c.l.b16 %v480
      %v737 = vunpack.c.l.b16 %v481
      %v738 = vunpack.c.l.b16 %v482
      %v739 = vunpack.c.l.b16 %v483
      %v740 = vunpack.c.l.b16 %v484
      %v741 = vunpack.c.l.b16 %v485
      %v742 = vunpack.c.l.b16 %v486
      %v743 = vunpack.c.l.b16 %v487
      %v744 = vunpack.c.l.b16 %v488
      %v745 = vunpack.c.l.b16 %v489
      %v746 = vunpack.c.l.b16 %v490
      %v747 = vunpack.c.l.b16 %v491
      %v748 = vunpack.c.l.b16 %v492
      %v749 = vunpack.c.l.b16 %v493
      %v750 = vunpack.c.l.b16 %v494
      %v751 = vunpack.c.l.b16 %v495
      %v752 = vunpack.c.l.b16 %v496
      %v753 = vunpack.c.l.b16 %v497
      %v754 = vunpack.c.l.b16 %v498
      %v755 = vunpack.c.l.b16 %v499
      %v756 = vunpack.c.l.b16 %v500
      %v757 = vunpack.c.l.b16 %v501
      %v758 = vunpack.c.l.b16 %v502
      %v759 = vunpack.c.l.b16 %v503
      %v760 = vunpack.c.l.b16 %v504
      %v761 = vunpack.c.l.b16 %v505
      %v762 = vunpack.c.l.b16 %v506
      %v763 = vunpack.c.l.b16 %v507
      %v764 = vunpack.c.l.b16 %v508
      %v765 = vunpack.c.l.b16 %v509
      %v766 = vunpack.c.l.b16 %v510
      %v767 = vunpack.c.l.b16 %v511
      %v768 = vunpack.c.l.b16 %v512
      %v769 = vunpack.c.l.b16 %v513
      %v770 = vunpack.c.l.b16 %v514
      %v771 = vunpack.c.l.b16 %v515
      %v772 = vunpack.c.l.b16 %v516
      %v773 = vunpack.c.l.b16 %v517
      %v774 = vunpack.c.l.b16 %v518
      %v775 = vunpack.c.l.b16 %v519
      %v776 = vpack.c.b16 %v649, %v648
      %v777 = vpack.c.b16 %v651, %v650
      %v778 = vpack.c.b16 %v653, %v652
      %v779 = vpack.c.b16 %v655, %v654
      %v780 = vpack.c.b16 %v657, %v656
      %v781 = vpack.c.b16 %v659, %v658
      %v782 = vpack.c.b16 %v661, %v660
      %v783 = vpack.c.b16 %v663, %v662
      %v784 = vpack.c.b16 %v665, %v664
      %v785 = vpack.c.b16 %v667, %v666
      %v786 = vpack.c.b16 %v669, %v668
      %v787 = vpack.c.b16 %v671, %v670
      %v788 = vpack.c.b16 %v673, %v672
      %v789 = vpack.c.b16 %v675, %v674
      %v790 = vpack.c.b16 %v677, %v676
      %v791 = vpack.c.b16 %v679, %v678
      %v792 = vpack.c.b16 %v681, %v680
      %v793 = vpack.c.b16 %v683, %v682
      %v794 = vpack.c.b16 %v685, %v684
      %v795 = vpack.c.b16 %v687, %v686
      %v796 = vpack.c.b16 %v689, %v688
      %v797 = vpack.c.b16 %v691, %v690
      %v798 = vpack.c.b16 %v693, %v692
      %v799 = vpack.c.b16 %v695, %v694
      %v800 = vpack.c.b16 %v697, %v696
      %v801 = vpack.c.b16 %v699, %v698
      %v802 = vpack.c.b16 %v701, %v700
      %v803 = vpack.c.b16 %v703, %v702
      %v804 = vpack.c.b16 %v705, %v704
      %v805 = vpack.c.b16 %v707, %v706
      %v806 = vpack.c.b16 %v709, %v708
      %v807 = vpack.c.b16 %v711, %v710
      %v808 = vpack.c.b16 %v713, %v712
      %v809 = vpack.c.b16 %v715, %v714
      %v810 = vpack.c.b16 %v717, %v716
      %v811 = vpack.c.b16 %v719, %v718
      %v812 = vpack.c.b16 %v721, %v720
      %v813 = vpack.c.b16 %v723, %v722
      %v814 = vpack.c.b16 %v725, %v724
      %v815 = vpack.c.b16 %v727, %v726
      %v816 = vpack.c.b16 %v729, %v728
      %v817 = vpack.c.b16 %v731, %v730
      %v818 = vpack.c.b16 %v733, %v732
      %v819 = vpack.c.b16 %v735, %v734
      %v820 = vpack.c.b16 %v737, %v736
      %v821 = vpack.c.b16 %v739, %v738
      %v822 = vpack.c.b16 %v741, %v740
      %v823 = vpack.c.b16 %v743, %v742
      %v824 = vpack.c.b16 %v745, %v744
      %v825 = vpack.c.b16 %v747, %v746
      %v826 = vpack.c.b16 %v749, %v748
      %v827 = vpack.c.b16 %v751, %v750
      %v828 = vpack.c.b16 %v753, %v752
      %v829 = vpack.c.b16 %v755, %v754
      %v830 = vpack.c.b16 %v757, %v756
      %v831 = vpack.c.b16 %v759, %v758
      %v832 = vpack.c.b16 %v761, %v760
      %v833 = vpack.c.b16 %v763, %v762
      %v834 = vpack.c.b16 %v765, %v764
      %v835 = vpack.c.b16 %v767, %v766
      %v836 = vpack.c.b16 %v769, %v768
      %v837 = vpack.c.b16 %v771, %v770
      %v838 = vpack.c.b16 %v773, %v772
      %v839 = vpack.c.b16 %v775, %v774
      %904 = vmatprep.subr.bf16.mxu0 0
      %905 = vmatpush1.bf16.msra.mxu0 %v783
      %906 = vmatprep.subr.bf16.mxu0 0
      %907 = vmatpush1.bf16.msra.mxu0 %v782
      %908 = vmatprep.subr.bf16.mxu0 0
      %909 = vmatpush1.bf16.msra.mxu0 %v781
      %910 = vmatprep.subr.bf16.mxu0 0
      %911 = vmatpush1.bf16.msra.mxu0 %v780
      %912 = vmatprep.subr.bf16.mxu0 0
      %913 = vmatpush1.bf16.msra.mxu0 %v779
      %914 = vmatprep.subr.bf16.mxu0 0
      %915 = vmatpush1.bf16.msra.mxu0 %v778
      %916 = vmatprep.subr.bf16.mxu0 0
      %917 = vmatpush1.bf16.msra.mxu0 %v777
      %918 = vmatprep.subr.bf16.mxu0 0
      %919 = vmatpush1.bf16.msra.mxu0 %v776
      %920 = vmatprep.subr.bf16.mxu0 0
      %921 = vmatpush2.bf16.msra.mxu0 %v791
      %922 = vmatprep.subr.bf16.mxu0 0
      %923 = vmatpush2.bf16.msra.mxu0 %v790
      %924 = vmatprep.subr.bf16.mxu0 0
      %925 = vmatpush2.bf16.msra.mxu0 %v789
      %926 = vmatprep.subr.bf16.mxu0 0
      %927 = vmatpush2.bf16.msra.mxu0 %v788
      %928 = vmatprep.subr.bf16.mxu0 0
      %929 = vmatpush2.bf16.msra.mxu0 %v787
      %930 = vmatprep.subr.bf16.mxu0 0
      %931 = vmatpush2.bf16.msra.mxu0 %v786
      %932 = vmatprep.subr.bf16.mxu0 0
      %933 = vmatpush2.bf16.msra.mxu0 %v785
      %934 = vmatprep.subr.bf16.mxu0 0
      %935 = vmatpush2.bf16.msra.mxu0 %v784
      %936 = vmatprep.mubr.bf16.mxu0 %v385
      %937 = vmatmul.mubr.bf16.gmra.mxu0 %v384
      %v938 = vpop.f32.mrf.mxu0
      %v939 = vadd.f32 0.0, %v938
      %v940 = vpop.f32.mrf.mxu0
      %v941 = vpop.f32.mrf.mxu0
      %v942 = vpop.f32.mrf.mxu0
      %943 = vdwg.mxu0
      %944 = vmatprep.subr.bf16.mxu0 0
      %945 = vmatpush1.bf16.msra.mxu0 %v799
      %946 = vmatprep.subr.bf16.mxu0 0
      %947 = vmatpush1.bf16.msra.mxu0 %v798
      %948 = vmatprep.subr.bf16.mxu0 0
      %949 = vmatpush1.bf16.msra.mxu0 %v797
      %950 = vmatprep.subr.bf16.mxu0 0
      %951 = vmatpush1.bf16.msra.mxu0 %v796
      %952 = vmatprep.subr.bf16.mxu0 0
      %953 = vmatpush1.bf16.msra.mxu0 %v795
      %954 = vmatprep.subr.bf16.mxu0 0
      %955 = vmatpush1.bf16.msra.mxu0 %v794
      %956 = vmatprep.subr.bf16.mxu0 0
      %957 = vmatpush1.bf16.msra.mxu0 %v793
      %958 = vmatprep.subr.bf16.mxu0 0
      %959 = vmatpush1.bf16.msra.mxu0 %v792
      %960 = vmatprep.subr.bf16.mxu0 0
      %961 = vmatpush2.bf16.msra.mxu0 %v807
      %962 = vmatprep.subr.bf16.mxu0 0
      %963 = vmatpush2.bf16.msra.mxu0 %v806
      %964 = vmatprep.subr.bf16.mxu0 0
      %965 = vmatpush2.bf16.msra.mxu0 %v805
      %966 = vmatprep.subr.bf16.mxu0 0
      %967 = vmatpush2.bf16.msra.mxu0 %v804
      %968 = vmatprep.subr.bf16.mxu0 0
      %969 = vmatpush2.bf16.msra.mxu0 %v803
      %970 = vmatprep.subr.bf16.mxu0 0
      %971 = vmatpush2.bf16.msra.mxu0 %v802
      %972 = vmatprep.subr.bf16.mxu0 0
      %973 = vmatpush2.bf16.msra.mxu0 %v801
      %974 = vmatprep.subr.bf16.mxu0 0
      %975 = vmatpush2.bf16.msra.mxu0 %v800
      %976 = vmatprep.mubr.bf16.mxu0 %v387
      %977 = vmatmul.mubr.bf16.gmra.mxu0 %v386
      %v978 = vpop.f32.mrf.mxu0
      %v979 = vadd.f32 %v939, %v978
      %v980 = vpop.f32.mrf.mxu0
      %v981 = vpop.f32.mrf.mxu0
      %v982 = vpop.f32.mrf.mxu0
      %983 = vdwg.mxu0
      %984 = vmatprep.subr.bf16.mxu0 0
      %985 = vmatpush1.bf16.msra.mxu0 %v815
      %986 = vmatprep.subr.bf16.mxu0 0
      %987 = vmatpush1.bf16.msra.mxu0 %v814
      %988 = vmatprep.subr.bf16.mxu0 0
      %989 = vmatpush1.bf16.msra.mxu0 %v813
      %990 = vmatprep.subr.bf16.mxu0 0
      %991 = vmatpush1.bf16.msra.mxu0 %v812
      %992 = vmatprep.subr.bf16.mxu0 0
      %993 = vmatpush1.bf16.msra.mxu0 %v811
      %994 = vmatprep.subr.bf16.mxu0 0
      %995 = vmatpush1.bf16.msra.mxu0 %v810
      %996 = vmatprep.subr.bf16.mxu0 0
      %997 = vmatpush1.bf16.msra.mxu0 %v809
      %998 = vmatprep.subr.bf16.mxu0 0
      %999 = vmatpush1.bf16.msra.mxu0 %v808
      %1000 = vmatprep.subr.bf16.mxu0 0
      %1001 = vmatpush2.bf16.msra.mxu0 %v823
      %1002 = vmatprep.subr.bf16.mxu0 0
      %1003 = vmatpush2.bf16.msra.mxu0 %v822
      %1004 = vmatprep.subr.bf16.mxu0 0
      %1005 = vmatpush2.bf16.msra.mxu0 %v821
      %1006 = vmatprep.subr.bf16.mxu0 0
      %1007 = vmatpush2.bf16.msra.mxu0 %v820
      %1008 = vmatprep.subr.bf16.mxu0 0
      %1009 = vmatpush2.bf16.msra.mxu0 %v819
      %1010 = vmatprep.subr.bf16.mxu0 0
      %1011 = vmatpush2.bf16.msra.mxu0 %v818
      %1012 = vmatprep.subr.bf16.mxu0 0
      %1013 = vmatpush2.bf16.msra.mxu0 %v817
      %1014 = vmatprep.subr.bf16.mxu0 0
      %1015 = vmatpush2.bf16.msra.mxu0 %v816
      %1016 = vmatprep.mubr.bf16.mxu0 %v389
      %1017 = vmatmul.mubr.bf16.gmra.mxu0 %v388
      %v1018 = vpop.f32.mrf.mxu0
      %v1019 = vadd.f32 %v979, %v1018
      %v1020 = vpop.f32.mrf.mxu0
      %v1021 = vpop.f32.mrf.mxu0
      %v1022 = vpop.f32.mrf.mxu0
      %1023 = vdwg.mxu0
      %1024 = vmatprep.subr.bf16.mxu0 0
      %1025 = vmatpush1.bf16.msra.mxu0 %v831
      %1026 = vmatprep.subr.bf16.mxu0 0
      %1027 = vmatpush1.bf16.msra.mxu0 %v830
      %1028 = vmatprep.subr.bf16.mxu0 0
      %1029 = vmatpush1.bf16.msra.mxu0 %v829
      %1030 = vmatprep.subr.bf16.mxu0 0
      %1031 = vmatpush1.bf16.msra.mxu0 %v828
      %1032 = vmatprep.subr.bf16.mxu0 0
      %1033 = vmatpush1.bf16.msra.mxu0 %v827
      %1034 = vmatprep.subr.bf16.mxu0 0
      %1035 = vmatpush1.bf16.msra.mxu0 %v826
      %1036 = vmatprep.subr.bf16.mxu0 0
      %1037 = vmatpush1.bf16.msra.mxu0 %v825
      %1038 = vmatprep.subr.bf16.mxu0 0
      %1039 = vmatpush1.bf16.msra.mxu0 %v824
      %1040 = vmatprep.subr.bf16.mxu0 0
      %1041 = vmatpush2.bf16.msra.mxu0 %v839
      %1042 = vmatprep.subr.bf16.mxu0 0
      %1043 = vmatpush2.bf16.msra.mxu0 %v838
      %1044 = vmatprep.subr.bf16.mxu0 0
      %1045 = vmatpush2.bf16.msra.mxu0 %v837
      %1046 = vmatprep.subr.bf16.mxu0 0
      %1047 = vmatpush2.bf16.msra.mxu0 %v836
      %1048 = vmatprep.subr.bf16.mxu0 0
      %1049 = vmatpush2.bf16.msra.mxu0 %v835
      %1050 = vmatprep.subr.bf16.mxu0 0
      %1051 = vmatpush2.bf16.msra.mxu0 %v834
      %1052 = vmatprep.subr.bf16.mxu0 0
      %1053 = vmatpush2.bf16.msra.mxu0 %v833
      %1054 = vmatprep.subr.bf16.mxu0 0
      %1055 = vmatpush2.bf16.msra.mxu0 %v832
      %1056 = vmatprep.mubr.bf16.mxu0 %v391
      %1057 = vmatmul.mubr.bf16.gmra.mxu0 %v390
      %v1058 = vpop.f32.mrf.mxu0
      %v1059 = vadd.f32 %v1019, %v1058
      %v1060 = vpop.f32.mrf.mxu0
      %v1061 = vpop.f32.mrf.mxu0
      %v1062 = vpop.f32.mrf.mxu0
      %1063 = vdwg.mxu0
      %v1064 = vadd.f32 %v375, %v1059
      %1065 = vst [vmem:[#allocation2] sm:$0xff] %v1064
      %p1066 = scmp.eq.s32.totalorder %s21, 3
      // Predicated region
      $region65: #{forward.3} parent=59 // pred_check
        %p1067 = pneg %p1066
      $region66: #{forward.3} parent=59 // pred_check_branch
        %1069 = sbr.rel (%p1067) target = $region68
      $region67: #{forward.3} parent=59 // pred_region
        %v1070 = vld [vmem:[%s1] sm:$0xff]
        %vm1071 = vcmp.gt.f32.partialorder %v1070, 0.0
        %v1072 = vsel %vm1071, 0.0, -1e+30
        %v1073 = vld [vmem:[#allocation2] sm:$0xff]
        %v1074 = vld [vmem:[%s3] sm:$0x1]
        %v1075 = vld [vmem:[%s4] sm:$0x1]
        %v1076 = vld [vmem:[%s5] sm:$0x1]
        %1077 = vmatprep.subr.mxu0 0.0
        %1078 = vmatpush1.xpose.msra.mxu0 0.0
        %1079 = vmatprep.subr.mxu0 0.0
        %1080 = vmatpush1.xpose.msra.mxu0 0.0
        %1081 = vmatprep.subr.mxu0 0.0
        %1082 = vmatpush1.xpose.msra.mxu0 0.0
        %1083 = vmatprep.subr.mxu0 0.0
        %1084 = vmatpush1.xpose.msra.mxu0 0.0
        %1085 = vmatprep.subr.mxu0 0.0
        %1086 = vmatpush1.xpose.msra.mxu0 0.0
        %1087 = vmatprep.subr.mxu0 0.0
        %1088 = vmatpush1.xpose.msra.mxu0 0.0
        %1089 = vmatprep.subr.mxu0 0.0
        %1090 = vmatpush1.xpose.msra.mxu0 0.0
        %1091 = vmatprep.subr.mxu0 0.0
        %1092 = vmatpush1.xpose.msra.mxu0 0.0
        %1093 = vmatprep.subr.mxu0 0.0
        %1094 = vmatpush1.xpose.msra.mxu0 0.0
        %1095 = vmatprep.subr.mxu0 0.0
        %1096 = vmatpush1.xpose.msra.mxu0 0.0
        %1097 = vmatprep.subr.mxu0 0.0
        %1098 = vmatpush1.xpose.msra.mxu0 0.0
        %1099 = vmatprep.subr.mxu0 0.0
        %1100 = vmatpush1.xpose.msra.mxu0 0.0
        %1101 = vmatprep.subr.mxu0 0.0
        %1102 = vmatpush1.xpose.msra.mxu0 0.0
        %1103 = vmatprep.subr.mxu0 0.0
        %1104 = vmatpush1.xpose.msra.mxu0 0.0
        %1105 = vmatprep.subr.mxu0 0.0
        %1106 = vmatpush1.xpose.msra.mxu0 0.0
        %1107 = vmatprep.subr.mxu0 0.0
        %1108 = vmatpush1.xpose.msra.mxu0 %v1073
        %1109 = vmatprep.subr.mxu0 0.0
        %1110 = vmatpush2.xpose.msra.mxu0 0.0
        %1111 = vmatprep.subr.mxu0 0.0
        %1112 = vmatpush2.xpose.msra.mxu0 0.0
        %1113 = vmatprep.subr.mxu0 0.0
        %1114 = vmatpush2.xpose.msra.mxu0 0.0
        %1115 = vmatprep.subr.mxu0 0.0
        %1116 = vmatpush2.xpose.msra.mxu0 0.0
        %1117 = vmatprep.subr.mxu0 0.0
        %1118 = vmatpush2.xpose.msra.mxu0 0.0
        %1119 = vmatprep.subr.mxu0 0.0
        %1120 = vmatpush2.xpose.msra.mxu0 0.0
        %1121 = vmatprep.subr.mxu0 0.0
        %1122 = vmatpush2.xpose.msra.mxu0 0.0
        %1123 = vmatprep.subr.mxu0 0.0
        %1124 = vmatpush2.xpose.msra.mxu0 0.0
        %1125 = vmatprep.subr.mxu0 0.0
        %1126 = vmatpush2.xpose.msra.mxu0 0.0
        %1127 = vmatprep.subr.mxu0 0.0
        %1128 = vmatpush2.xpose.msra.mxu0 0.0
        %1129 = vmatprep.subr.mxu0 0.0
        %1130 = vmatpush2.xpose.msra.mxu0 0.0
        %1131 = vmatprep.subr.mxu0 0.0
        %1132 = vmatpush2.xpose.msra.mxu0 0.0
        %1133 = vmatprep.subr.mxu0 0.0
        %1134 = vmatpush2.xpose.msra.mxu0 0.0
        %1135 = vmatprep.subr.mxu0 0.0
        %1136 = vmatpush2.xpose.msra.mxu0 0.0
        %1137 = vmatprep.subr.mxu0 0.0
        %1138 = vmatpush2.xpose.msra.mxu0 0.0
        %1139 = vmatprep.subr.mxu0 0.0
        %1140 = vmatpush2.xpose.msra.mxu0 0.0
        %1141 = vmatprep.mubr.f32.mxu0 0.0
        %1142 = vmatmul.mubr.f32.gmra.mxu0 %v1074
        %v1143 = vpop.f32.mrf.mxu0
        %v1144 = vadd.f32 0.0, %v1143
        %v1145 = vpop.f32.mrf.mxu0
        %1146 = vdwg.mxu0
        %v1148 = vlaneseq
        %v1149 = vshrl.u32 %v1148, 7
        %v1150 = vsub.s32 0, %v1149
        %v1151 = vrot.slane %v1075, %v1150
        %v1153 = vmul.f32 %v1073, %v1151
        %1154 = vadd.xlane.f32.xlu0 %v1153
        %v1155 = vpop.xlane.xlu0 %1154
        %v1156 = vlaneseq
        %v1157 = vshrl.u32 %v1156, 7
        %v1158 = vsub.s32 0, %v1157
        %v1159 = vrot.slane %v1144, %v1158
        %v1160 = vadd.f32 %v1155, %v1159
        %vm1161 = vcmp.gt.f32.partialorder %v1160, 0.0
        %v1162 = vmul.f32 %v1160, 0.2
        %v1163 = vsel %vm1161, %v1160, %v1162
        %v1164 = vadd.f32 %v1163, %v1072
        %vm1165 = vcmask 64512
        %v1166 = vsel %vm1165, %v1164, -inf
        %1167 = vmax.xlane.f32.xlu0 %v1166
        %v1168 = vpop.xlane.xlu0 %1167
        %v1169 = vsub.f32 %v1164, %v1168
        %v1170 = vmul.f32 %v1169, 1.442695
        %v1171 = vpow.pop %v1170
        %v1172 = vmul.f32 %v1171, %v1070
        %v1173 = vsel %vm1165, %v1172, 0.0
        %1174 = vadd.xlane.f32.xlu0 %v1173
        %v1175 = vpop.xlane.xlu0 %1174
        %vm1176 = vcmp.gt.f32.partialorder %v1175, 0.0
        %v1177 = vrcp.pop %v1175
        %v1178 = vsel %vm1176, %v1177, 0.0
        %v1179 = vmul.f32 %v1172, %v1178
        %v1180 = vpack.c.bf16 %v1179, %v1179
        %v1181 = vpack.c.bf16 %v1073, %v1073
        %v1183 = vlaneseq
        %v1184 = vshrl.u32 %v1183, 7
        %v1185 = vsub.s32 0, %v1184
        %v1186 = vrot.slane %v1076, %v1185
        %v1189 = vsel %vm1165, %v1180, 0
        %vm1191 = vcmask 1043456
        %v1193 = vsel %vm1191, %v1181, 0
        %1195 = vmatprep.subr.bf16.mxu0 0
        %1196 = vmatpush1.bf16.msra.mxu0 0
        %1197 = vmatprep.subr.bf16.mxu0 0
        %1198 = vmatpush1.bf16.msra.mxu0 0
        %1199 = vmatprep.subr.bf16.mxu0 0
        %1200 = vmatpush1.bf16.msra.mxu0 0
        %1201 = vmatprep.subr.bf16.mxu0 0
        %1202 = vmatpush1.bf16.msra.mxu0 0
        %1203 = vmatprep.subr.bf16.mxu0 0
        %1204 = vmatpush1.bf16.msra.mxu0 0
        %1205 = vmatprep.subr.bf16.mxu0 0
        %1206 = vmatpush1.bf16.msra.mxu0 0
        %1207 = vmatprep.subr.bf16.mxu0 0
        %1208 = vmatpush1.bf16.msra.mxu0 0
        %1209 = vmatprep.subr.bf16.mxu0 0
        %1210 = vmatpush1.bf16.msra.mxu0 %v1193
        %1211 = vmatprep.subr.bf16.mxu0 0
        %1212 = vmatpush2.bf16.msra.mxu0 0
        %1213 = vmatprep.subr.bf16.mxu0 0
        %1214 = vmatpush2.bf16.msra.mxu0 0
        %1215 = vmatprep.subr.bf16.mxu0 0
        %1216 = vmatpush2.bf16.msra.mxu0 0
        %1217 = vmatprep.subr.bf16.mxu0 0
        %1218 = vmatpush2.bf16.msra.mxu0 0
        %1219 = vmatprep.subr.bf16.mxu0 0
        %1220 = vmatpush2.bf16.msra.mxu0 0
        %1221 = vmatprep.subr.bf16.mxu0 0
        %1222 = vmatpush2.bf16.msra.mxu0 0
        %1223 = vmatprep.subr.bf16.mxu0 0
        %1224 = vmatpush2.bf16.msra.mxu0 0
        %1225 = vmatprep.subr.bf16.mxu0 0
        %1226 = vmatpush2.bf16.msra.mxu0 0
        %1227 = vmatprep.mubr.bf16.mxu0 0
        %1228 = vmatmul.mubr.bf16.gmra.mxu0 %v1189
        %v1229 = vpop.f32.mrf.mxu0
        %v1230 = vadd.f32 %v1186, %v1229
        %v1231 = vpop.f32.mrf.mxu0
        %v1232 = vpop.f32.mrf.mxu0
        %v1233 = vpop.f32.mrf.mxu0
        %1234 = vdwg.mxu0
        %v1235 = vmax.f32 %v1230, 0.0
        %v1236 = vpack.c.bf16 %v1235, %v1235
        %v1237 = vld [vmem:[%s6] sm:$0xf]
        %v1238 = vld [vmem:[%s6 + $0x4] sm:$0xf]
        %v1239 = vld [vmem:[%s6 + $0x8] sm:$0xf]
        %v1240 = vld [vmem:[%s6 + $0xc] sm:$0xf]
        %v1241 = vld [vmem:[%s6 + $0x10] sm:$0xf]
        %v1242 = vld [vmem:[%s6 + $0x14] sm:$0xf]
        %v1243 = vld [vmem:[%s6 + $0x18] sm:$0xf]
        %v1244 = vld [vmem:[%s6 + $0x1c] sm:$0xf]
        %v1245 = vld [vmem:[%s6 + $0x20] sm:$0xf]
        %v1246 = vld [vmem:[%s6 + $0x24] sm:$0xf]
        %v1247 = vld [vmem:[%s6 + $0x28] sm:$0xf]
        %v1248 = vld [vmem:[%s6 + $0x2c] sm:$0xf]
        %v1249 = vld [vmem:[%s6 + $0x30] sm:$0xf]
        %v1250 = vld [vmem:[%s6 + $0x34] sm:$0xf]
        %v1251 = vld [vmem:[%s6 + $0x38] sm:$0xf]
        %v1252 = vld [vmem:[%s6 + $0x3c] sm:$0xf]
        %v1253 = vld [vmem:[%s7] sm:$0x1]
        %v1255 = vlaneseq
        %v1256 = vshrl.u32 %v1255, 7
        %v1257 = vsub.s32 0, %v1256
        %v1258 = vrot.slane %v1253, %v1257
        %v1276 = vunpack.c.l.b16 %v1237
        %v1277 = vunpack.c.l.b16 %v1238
        %v1278 = vunpack.c.l.b16 %v1239
        %v1279 = vunpack.c.l.b16 %v1240
        %v1280 = vunpack.c.l.b16 %v1241
        %v1281 = vunpack.c.l.b16 %v1242
        %v1282 = vunpack.c.l.b16 %v1243
        %v1283 = vunpack.c.l.b16 %v1244
        %v1284 = vunpack.c.l.b16 %v1245
        %v1285 = vunpack.c.l.b16 %v1246
        %v1286 = vunpack.c.l.b16 %v1247
        %v1287 = vunpack.c.l.b16 %v1248
        %v1288 = vunpack.c.l.b16 %v1249
        %v1289 = vunpack.c.l.b16 %v1250
        %v1290 = vunpack.c.l.b16 %v1251
        %v1291 = vunpack.c.l.b16 %v1252
        %v1292 = vpack.c.b16 %v1277, %v1276
        %v1293 = vpack.c.b16 %v1279, %v1278
        %v1294 = vpack.c.b16 %v1281, %v1280
        %v1295 = vpack.c.b16 %v1283, %v1282
        %v1296 = vpack.c.b16 %v1285, %v1284
        %v1297 = vpack.c.b16 %v1287, %v1286
        %v1298 = vpack.c.b16 %v1289, %v1288
        %v1299 = vpack.c.b16 %v1291, %v1290
        %1308 = vmatprep.subr.bf16.mxu0 0
        %1309 = vmatpush1.bf16.msra.mxu0 %v1299
        %1310 = vmatprep.subr.bf16.mxu0 0
        %1311 = vmatpush1.bf16.msra.mxu0 %v1298
        %1312 = vmatprep.subr.bf16.mxu0 0
        %1313 = vmatpush1.bf16.msra.mxu0 %v1297
        %1314 = vmatprep.subr.bf16.mxu0 0
        %1315 = vmatpush1.bf16.msra.mxu0 %v1296
        %1316 = vmatprep.subr.bf16.mxu0 0
        %1317 = vmatpush1.bf16.msra.mxu0 %v1295
        %1318 = vmatprep.subr.bf16.mxu0 0
        %1319 = vmatpush1.bf16.msra.mxu0 %v1294
        %1320 = vmatprep.subr.bf16.mxu0 0
        %1321 = vmatpush1.bf16.msra.mxu0 %v1293
        %1322 = vmatprep.subr.bf16.mxu0 0
        %1323 = vmatpush1.bf16.msra.mxu0 %v1292
        %1324 = vmatprep.subr.bf16.mxu0 0
        %1325 = vmatpush2.bf16.msra.mxu0 0
        %1326 = vmatprep.subr.bf16.mxu0 0
        %1327 = vmatpush2.bf16.msra.mxu0 0
        %1328 = vmatprep.subr.bf16.mxu0 0
        %1329 = vmatpush2.bf16.msra.mxu0 0
        %1330 = vmatprep.subr.bf16.mxu0 0
        %1331 = vmatpush2.bf16.msra.mxu0 0
        %1332 = vmatprep.subr.bf16.mxu0 0
        %1333 = vmatpush2.bf16.msra.mxu0 0
        %1334 = vmatprep.subr.bf16.mxu0 0
        %1335 = vmatpush2.bf16.msra.mxu0 0
        %1336 = vmatprep.subr.bf16.mxu0 0
        %1337 = vmatpush2.bf16.msra.mxu0 0
        %1338 = vmatprep.subr.bf16.mxu0 0
        %1339 = vmatpush2.bf16.msra.mxu0 0
        %1340 = vmatprep.mubr.bf16.mxu0 0
        %1341 = vmatmul.mubr.bf16.gmra.mxu0 %v1236
        %v1342 = vpop.f32.mrf.mxu0
        %v1343 = vadd.f32 %v1258, %v1342
        %v1344 = vpop.f32.mrf.mxu0
        %v1345 = vpop.f32.mrf.mxu0
        %v1346 = vpop.f32.mrf.mxu0
        %1347 = vdwg.mxu0
        %v1348 = vmax.f32 %v1343, 0.0
        %v1349 = vld [vmem:[%s8] sm:$0xff]
        %v1350 = vld [vmem:[%s8 + $0x8] sm:$0xff]
        %v1351 = vld [vmem:[%s8 + $0x10] sm:$0xff]
        %v1352 = vld [vmem:[%s8 + $0x18] sm:$0xff]
        %v1353 = vld [vmem:[%s8 + $0x20] sm:$0xff]
        %v1354 = vld [vmem:[%s8 + $0x28] sm:$0xff]
        %v1355 = vld [vmem:[%s8 + $0x30] sm:$0xff]
        %v1356 = vld [vmem:[%s8 + $0x38] sm:$0xff]
        %v1357 = vld [vmem:[%s8 + $0x40] sm:$0xff]
        %v1358 = vld [vmem:[%s8 + $0x48] sm:$0xff]
        %v1359 = vld [vmem:[%s8 + $0x50] sm:$0xff]
        %v1360 = vld [vmem:[%s8 + $0x58] sm:$0xff]
        %v1361 = vld [vmem:[%s8 + $0x60] sm:$0xff]
        %v1362 = vld [vmem:[%s8 + $0x68] sm:$0xff]
        %v1363 = vld [vmem:[%s8 + $0x70] sm:$0xff]
        %v1364 = vld [vmem:[%s8 + $0x78] sm:$0xff]
        %v1365 = vld [vmem:[%s9] sm:$0x1]
        %v1367 = vlaneseq
        %v1368 = vshrl.u32 %v1367, 7
        %v1369 = vsub.s32 0, %v1368
        %v1370 = vrot.slane %v1365, %v1369
        %1372 = vmatprep.subr.mxu0 0.0
        %1373 = vmatpush1.msra.mxu0 %v1364
        %1374 = vmatprep.subr.mxu0 0.0
        %1375 = vmatpush1.msra.mxu0 %v1363
        %1376 = vmatprep.subr.mxu0 0.0
        %1377 = vmatpush1.msra.mxu0 %v1362
        %1378 = vmatprep.subr.mxu0 0.0
        %1379 = vmatpush1.msra.mxu0 %v1361
        %1380 = vmatprep.subr.mxu0 0.0
        %1381 = vmatpush1.msra.mxu0 %v1360
        %1382 = vmatprep.subr.mxu0 0.0
        %1383 = vmatpush1.msra.mxu0 %v1359
        %1384 = vmatprep.subr.mxu0 0.0
        %1385 = vmatpush1.msra.mxu0 %v1358
        %1386 = vmatprep.subr.mxu0 0.0
        %1387 = vmatpush1.msra.mxu0 %v1357
        %1388 = vmatprep.subr.mxu0 0.0
        %1389 = vmatpush1.msra.mxu0 %v1356
        %1390 = vmatprep.subr.mxu0 0.0
        %1391 = vmatpush1.msra.mxu0 %v1355
        %1392 = vmatprep.subr.mxu0 0.0
        %1393 = vmatpush1.msra.mxu0 %v1354
        %1394 = vmatprep.subr.mxu0 0.0
        %1395 = vmatpush1.msra.mxu0 %v1353
        %1396 = vmatprep.subr.mxu0 0.0
        %1397 = vmatpush1.msra.mxu0 %v1352
        %1398 = vmatprep.subr.mxu0 0.0
        %1399 = vmatpush1.msra.mxu0 %v1351
        %1400 = vmatprep.subr.mxu0 0.0
        %1401 = vmatpush1.msra.mxu0 %v1350
        %1402 = vmatprep.subr.mxu0 0.0
        %1403 = vmatpush1.msra.mxu0 %v1349
        %1404 = vmatprep.subr.mxu0 0.0
        %1405 = vmatpush2.msra.mxu0 0.0
        %1406 = vmatprep.subr.mxu0 0.0
        %1407 = vmatpush2.msra.mxu0 0.0
        %1408 = vmatprep.subr.mxu0 0.0
        %1409 = vmatpush2.msra.mxu0 0.0
        %1410 = vmatprep.subr.mxu0 0.0
        %1411 = vmatpush2.msra.mxu0 0.0
        %1412 = vmatprep.subr.mxu0 0.0
        %1413 = vmatpush2.msra.mxu0 0.0
        %1414 = vmatprep.subr.mxu0 0.0
        %1415 = vmatpush2.msra.mxu0 0.0
        %1416 = vmatprep.subr.mxu0 0.0
        %1417 = vmatpush2.msra.mxu0 0.0
        %1418 = vmatprep.subr.mxu0 0.0
        %1419 = vmatpush2.msra.mxu0 0.0
        %1420 = vmatprep.subr.mxu0 0.0
        %1421 = vmatpush2.msra.mxu0 0.0
        %1422 = vmatprep.subr.mxu0 0.0
        %1423 = vmatpush2.msra.mxu0 0.0
        %1424 = vmatprep.subr.mxu0 0.0
        %1425 = vmatpush2.msra.mxu0 0.0
        %1426 = vmatprep.subr.mxu0 0.0
        %1427 = vmatpush2.msra.mxu0 0.0
        %1428 = vmatprep.subr.mxu0 0.0
        %1429 = vmatpush2.msra.mxu0 0.0
        %1430 = vmatprep.subr.mxu0 0.0
        %1431 = vmatpush2.msra.mxu0 0.0
        %1432 = vmatprep.subr.mxu0 0.0
        %1433 = vmatpush2.msra.mxu0 0.0
        %1434 = vmatprep.subr.mxu0 0.0
        %1435 = vmatpush2.msra.mxu0 0.0
        %1436 = vmatprep.mubr.f32.mxu0 0.0
        %1437 = vmatmul.mubr.f32.gmra.mxu0 %v1348
        %v1438 = vpop.f32.mrf.mxu0
        %v1439 = vadd.f32 %v1370, %v1438
        %v1440 = vpop.f32.mrf.mxu0
        %1441 = vdwg.mxu0
        %vm1442 = vcmask 15360
        %1443 = vst.msk [vmem:[%s10] sm:$0xff] %vm1442, %v1439
      $region68: #{forward.3} parent=59 // pred_fallthru
        _
      // Predicated region
      $region69: #{forward.3} parent=59 // pred_check
        %p1444 = pneg %p254
      $region70: #{forward.3} parent=59 // pred_check_branch
        %1446 = sbr.rel (%p1444) target = $region72
      $region71: #{forward.3} parent=59 // pred_region
        _
      $region72: #{forward.3} parent=59 // pred_fallthru
        _
      // Predicated region
      $region73: #{forward.3} parent=59 // pred_check
        %p1447 = pneg %p254
      $region74: #{forward.3} parent=59 // pred_check_branch
        %1449 = sbr.rel (%p1447) target = $region76
      $region75: #{forward.3} parent=59 // pred_region
        _
      $region76: #{forward.3} parent=59 // pred_fallthru
        _
    $region60: #{forward.3} parent=5 // pred_fallthru
      _
    %p1450 = scmp.le.s32.totalorder 2, %s16
    // Predicated region
    $region77: #{forward.3} parent=5 // pred_check
      %p1451 = pneg %p1450
    $region78: #{forward.3} parent=5 // pred_check_branch
      %1453 = sbr.rel (%p1451) target = $region80
    $region79: #{forward.3} parent=5 // pred_region
      %s1454 = ssub.s32 %s16, 2
    $region80: #{forward.3} parent=5 // pred_fallthru
      _
  $region6: #{forward.3} parent=0 // loop_footer
    %s20 = sadd.s32 1, %s16
  $region7: #{forward.3} parent=0 // loop_footer_branch
    %15 = sbr.rel target = $region3
  $region8: #{forward.3} parent=0 // loop_exit
    _

</llo_original>
